<compile_context>
chip_gen: v7x
topology: tpu7x:2x2x1
jax: 0.10.0
libtpu: 0.0.40
codegen_flags: <defaults>
</compile_context>

<pallas_src>
import functools

import jax
import jax.numpy as jnp
from jax.experimental import pallas as pl
from jax.experimental.pallas import tpu as pltpu

DP = 128               # padded feature width (TPU lane dimension)
MAX_TILE_ROWS = 512    # row tile cap (sublane dim); VMEM-safe on v5e/v6e/v7x
DTYPE = jnp.bfloat16   # streaming dtype for activations / big weights

_PARALLEL = pltpu.CompilerParams(dimension_semantics=("parallel",))


# ----------------------------------------------------------------------------
# helpers
# ----------------------------------------------------------------------------
def _round_up(n, m):
    return ((n + m - 1) // m) * m


def _row_tile(rows):
    """Returns (padded_rows, tile). Guarantees >=2 grid steps when rows>=16 so
    the parallel row axis can split across v7x's two TensorCores."""
    rp = _round_up(max(int(rows), 1), 8)
    if rp >= 16:
        tile = min(MAX_TILE_ROWS, _round_up((rp + 1) // 2, 8))
    else:
        tile = rp
    rp = _round_up(rp, tile)
    return rp, tile


def _row_spec(tile, width):
    return pl.BlockSpec((tile, width), lambda i: (i, 0))


def _pin_spec(arr):
    return pl.BlockSpec(arr.shape, lambda i: (0,) * arr.ndim)


def _smem_spec():
    return pl.BlockSpec(memory_space=pltpu.MemorySpace.SMEM)


def _segment_inv_count(index, num_segments):
    counts = jax.ops.segment_sum(jnp.ones(index.shape, jnp.float32), index,
                                 num_segments=num_segments)
    return (1.0 / jnp.maximum(counts, 1.0))[:, None]


# ----------------------------------------------------------------------------
# Pallas kernel bodies
# ----------------------------------------------------------------------------
def _gru_body(x, h, wrz, win, whn, brz, bn, bhn):
    """PyTorch nn.GRUCell semantics.  x, h, weights are bf16; accumulation and
    all elementwise math in f32.  r/z gates come from one K=2*DP matmul
    (good MXU depth utilization on v6e/v7x); the n-gate keeps gi_n / gh_n
    separate.  Returns f32 new hidden (padded lanes stay exactly zero)."""
    xh = jnp.concatenate([x, h], axis=1)                       # (tile, 2*DP) bf16
    g_rz = jnp.dot(xh, wrz, preferred_element_type=jnp.float32) + brz
    g_in = jnp.dot(x, win, preferred_element_type=jnp.float32) + bn
    g_hn = jnp.dot(h, whn, preferred_element_type=jnp.float32) + bhn
    r = jax.nn.sigmoid(g_rz[:, :DP])
    z = jax.nn.sigmoid(g_rz[:, DP:])
    n = jnp.tanh(g_in + r * g_hn)
    return (1.0 - z) * n + z * h.astype(jnp.float32)


def _gru_kernel(x_ref, h_ref, wrz_ref, win_ref, whn_ref,
                brz_ref, bn_ref, bhn_ref, out_ref):
    h_new = _gru_body(x_ref[...], h_ref[...], wrz_ref[...], win_ref[...],
                      whn_ref[...], brz_ref[...], bn_ref[...], bhn_ref[...])
    out_ref[...] = h_new.astype(out_ref.dtype)


def _gate_msg_kernel(xi_ref, xj_ref, wa_ref, wb_ref, b_ref, out_ref):
    """MessagePassing_Gate.message: sigmoid(Linear(cat[x_i, x_j])) * x_i.
    Linear(2D->1) as VPU mul + XLU lane-reduce (no 1-column MXU matmul)."""
    xi = xi_ref[...].astype(jnp.float32)
    xj = xj_ref[...].astype(jnp.float32)
    logit = jnp.sum(xi * wa_ref[...] + xj * wb_ref[...],
                    axis=-1, keepdims=True) + b_ref[0]
    out_ref[...] = (jax.nn.sigmoid(logit) * xi).astype(out_ref.dtype)


def _edge_fused_kernel(xi_ref, xj_ref, ef_ref, geo_ref, *rest, has_tadd):
    """Fused MessagePassing_VGfM.message (5 sigmoid gates) + edge GRU update.

    Gate k is Linear(2D->1): sigmoid(sum(first*w1[k] + edge*w2[k]) + b[k]),
    computed on the VPU/XLU.  tadd (optional, compile-time) is the
    pre-aggregated temporal-edge message.  new edge_feature = GRU(edge_msg, ef).
    """
    if has_tadd:
        (tadd_ref, w1_ref, w2_ref, bg_ref, wrz_ref, win_ref, whn_ref,
         brz_ref, bn_ref, bhn_ref, node_msg_ref, ef_out_ref) = rest
    else:
        (w1_ref, w2_ref, bg_ref, wrz_ref, win_ref, whn_ref,
         brz_ref, bn_ref, bhn_ref, node_msg_ref, ef_out_ref) = rest

    xi = xi_ref[...].astype(jnp.float32)
    xj = xj_ref[...].astype(jnp.float32)
    ef_bf = ef_ref[...]
    ef = ef_bf.astype(jnp.float32)
    geo = geo_ref[...].astype(jnp.float32)
    w1 = w1_ref[...]            # (8, DP) f32: rows 0..4 per-gate "first" weights
    w2 = w2_ref[...]            # (8, DP) f32: rows 0..4 per-gate edge weights

    def gate(first, k):
        logit = jnp.sum(first * w1[k:k + 1, :] + ef * w2[k:k + 1, :],
                        axis=-1, keepdims=True) + bg_ref[k]
        return jax.nn.sigmoid(logit)

    node_msg = (gate(xi, 0) + gate(xj, 1)) * ef
    edge_msg = gate(xi, 2) * xi + gate(xj, 3) * xj + gate(geo, 4) * geo
    if has_tadd:
        edge_msg = edge_msg + tadd_ref[...].astype(jnp.float32)

    node_msg_ref[...] = node_msg.astype(node_msg_ref.dtype)

    ef_new = _gru_body(edge_msg.astype(DTYPE), ef_bf,
                       wrz_ref[...], win_ref[...], whn_ref[...],
                       brz_ref[...], bn_ref[...], bhn_ref[...])
    ef_out_ref[...] = ef_new.astype(ef_out_ref.dtype)


def _linear_kernel(x_ref, w_ref, b_ref, out_ref):
    y = jnp.dot(x_ref[...], w_ref[...],
                preferred_element_type=jnp.float32) + b_ref[...]
    out_ref[...] = y.astype(out_ref.dtype)


# ----------------------------------------------------------------------------
# Wrappers: row-tiled 1-D grids, pinned weights, parallel row axis
# ----------------------------------------------------------------------------
def gru_cell(x, h, params, tile):
    wrz, win, whn, brz, bn, bhn = params
    rows = x.shape[0]
    return pl.pallas_call(
        _gru_kernel,
        grid=(rows // tile,),
        out_shape=jax.ShapeDtypeStruct((rows, DP), DTYPE),
        in_specs=[_row_spec(tile, DP), _row_spec(tile, DP),
                  _pin_spec(wrz), _pin_spec(win), _pin_spec(whn),
                  _pin_spec(brz), _pin_spec(bn), _pin_spec(bhn)],
        out_specs=_row_spec(tile, DP),
        input_output_aliases={1: 0},          # hidden buffer reused for output
        compiler_params=_PARALLEL,
    )(x, h, wrz, win, whn, brz, bn, bhn)


def gate_message(x_i, x_j, params, tile):
    wa, wb, b = params
    rows = x_i.shape[0]
    return pl.pallas_call(
        _gate_msg_kernel,
        grid=(rows // tile,),
        out_shape=jax.ShapeDtypeStruct((rows, DP), DTYPE),
        in_specs=[_row_spec(tile, DP), _row_spec(tile, DP),
                  _pin_spec(wa), _pin_spec(wb), _smem_spec()],
        out_specs=_row_spec(tile, DP),
        compiler_params=_PARALLEL,
    )(x_i, x_j, wa, wb, b)


def edge_fused(x_i, x_j, ef, geo, t_add, vgfm_params, gru_params, tile):
    """Fused VGfM per-edge messages + edge GRU.  t_add may be None (its input
    stream and the add are then removed at compile time)."""
    w1, w2, bg = vgfm_params
    rows = ef.shape[0]
    rs = _row_spec(tile, DP)
    has_tadd = t_add is not None

    stream = [x_i, x_j, ef, geo] + ([t_add] if has_tadd else [])
    stream_specs = [rs] * len(stream)
    weights = [w1, w2, bg, *gru_params]
    weight_specs = [_pin_spec(w1), _pin_spec(w2), _smem_spec()] + \
                   [_pin_spec(w) for w in gru_params]

    return pl.pallas_call(
        functools.partial(_edge_fused_kernel, has_tadd=has_tadd),
        grid=(rows // tile,),
        out_shape=(jax.ShapeDtypeStruct((rows, DP), DTYPE),
                   jax.ShapeDtypeStruct((rows, DP), DTYPE)),
        in_specs=stream_specs + weight_specs,
        out_specs=(rs, rs),
        input_output_aliases={2: 1},          # old edge_feature -> new one
        compiler_params=_PARALLEL,
    )(*stream, *weights)


def linear(x, params, tile):
    w, b = params
    rows, width = x.shape
    return pl.pallas_call(
        _linear_kernel,
        grid=(rows // tile,),
        out_shape=jax.ShapeDtypeStruct((rows, w.shape[1]), DTYPE),
        in_specs=[_row_spec(tile, width), _pin_spec(w), _pin_spec(b)],
        out_specs=_row_spec(tile, w.shape[1]),
        compiler_params=_PARALLEL,
    )(x, w, b)


# ----------------------------------------------------------------------------
# Forward pass (JAX glue for gathers / scatter-mean, f32 accumulation)
# ----------------------------------------------------------------------------
def triplet_vgfm_forward(params, x, edge_feature, geo_feature, edge_index,
                         temporal_node_graph, temporal_edge_graph, num_layers):
    N, D = x.shape
    E = edge_feature.shape[0]

    N_p, n_tile = _row_tile(N)
    E_p, e_tile = _row_tile(E)

    # Lane/row padding; zeros keep padded lanes exactly zero end-to-end.
    x_p = jnp.pad(x, ((0, N_p - N), (0, DP - D))).astype(DTYPE)
    ef_p = jnp.pad(edge_feature, ((0, E_p - E), (0, DP - D))).astype(DTYPE)

    src = edge_index[0]   # j (source), PyG flow='source_to_target'
    dst = edge_index[1]   # i (target), aggregation index
    dst_p = jnp.pad(dst, (0, E_p - E))     # padded index vectors: gathers land
    src_p = jnp.pad(src, (0, E_p - E))     # directly at (E_p, DP), no extra pad

    # Initial GRU calls with h=None -> zero hidden state (PyTorch GRUCell).
    x_p = gru_cell(x_p, jnp.zeros_like(x_p), params["node_gru"], n_tile)
    ef_p = gru_cell(ef_p, jnp.zeros_like(ef_p), params["edge_gru"], e_tile)

    # TODO(synk): EdgeEncoder_VGfM source not provided; approximated as a
    # Linear(2*dim_geo -> dim_node) over concatenated endpoint geo descriptors.
    we, _ = params["edge_encoder"]
    GP = we.shape[0]
    geo_cat = jnp.concatenate([geo_feature[dst], geo_feature[src]], axis=1)
    geo_cat_p = jnp.pad(geo_cat, ((0, E_p - E),
                                  (0, GP - geo_cat.shape[1]))).astype(DTYPE)
    ext_geo_p = linear(geo_cat_p, params["edge_encoder"], e_tile)   # (E_p, DP)

    # Hoisted mean denominators (edge indices never change across layers).
    inv_dst = _segment_inv_count(dst, N_p)

    has_tnode = temporal_node_graph.shape[0] == 2
    has_tedge = temporal_edge_graph.shape[0] == 2
    if has_tnode:
        ts, tt = temporal_node_graph[0], temporal_node_graph[1]
        Tn = tt.shape[0]
        Tn_p, tn_tile = _row_tile(Tn)
        tt_p = jnp.pad(tt, (0, Tn_p - Tn))
        ts_p = jnp.pad(ts, (0, Tn_p - Tn))
        inv_tt = _segment_inv_count(tt, N_p)
    if has_tedge:
        es, et = temporal_edge_graph[0], temporal_edge_graph[1]
        Te = et.shape[0]
        Te_p, te_tile = _row_tile(Te)
        et_p = jnp.pad(et, (0, Te_p - Te))
        es_p = jnp.pad(es, (0, Te_p - Te))
        inv_et = _segment_inv_count(et, E_p)

    for _ in range(num_layers):
        # Temporal-edge gated messages (pre-aggregated, fed into fused kernel).
        if has_tedge:
            emsg = gate_message(ef_p[et_p], ef_p[es_p], params["t_edge"],
                                te_tile)
            t_add = (jax.ops.segment_sum(emsg[:Te].astype(jnp.float32), et,
                                         num_segments=E_p) * inv_et
                     ).astype(DTYPE)
        else:
            t_add = None       # compile-time variant: no zeros stream

        x_i = x_p[dst_p]       # (E_p, DP) bf16 XLA gathers
        x_j = x_p[src_p]

        # Fused: VGfM 5-gate per-edge messages + edge GRU state update.
        node_msg_e, ef_p = edge_fused(x_i, x_j, ef_p, ext_geo_p, t_add,
                                      params["vgfm"], params["edge_gru"],
                                      e_tile)

        # Scatter-mean node messages at targets (aggr='mean'), f32 accumulate.
        node_msg = jax.ops.segment_sum(node_msg_e[:E].astype(jnp.float32), dst,
                                       num_segments=N_p) * inv_dst
        if has_tnode:
            tmsg = gate_message(x_p[tt_p], x_p[ts_p], params["t_node"],
                                tn_tile)
            node_msg = node_msg + jax.ops.segment_sum(
                tmsg[:Tn].astype(jnp.float32), tt, num_segments=N_p) * inv_tt

        x_p = gru_cell(node_msg.astype(DTYPE), x_p, params["node_gru"], n_tile)

    return (x_p[:N, :D].astype(jnp.float32),
            ef_p[:E, :D].astype(jnp.float32))


# ----------------------------------------------------------------------------
# Deterministic synthetic parameters (logical sizes) + padded kernel layout
# ----------------------------------------------------------------------------
def init_params(key, dim_node, dim_geo):
    ks = jax.random.split(key, 16)
    s = 0.1
    D = dim_node

    def gru(k1, k2, k3, k4):
        return dict(wih=s * jax.random.normal(k1, (D, 3 * D), jnp.float32),
                    whh=s * jax.random.normal(k2, (D, 3 * D), jnp.float32),
                    bih=s * jax.random.normal(k3, (3 * D,), jnp.float32),
                    bhh=s * jax.random.normal(k4, (3 * D,), jnp.float32))

    return {
        "node_gru": gru(ks[0], ks[1], ks[2], ks[3]),
        "edge_gru": gru(ks[4], ks[5], ks[6], ks[7]),
        # 5 VGfM gates: [subj_node, obj_node, subj_edge, obj_edge, geo_edge];
        # w1 multiplies the first half of the concat, w2 the edge_feature half.
        "vgfm": dict(w1=s * jax.random.normal(ks[8], (D, 5), jnp.float32),
                     w2=s * jax.random.normal(ks[9], (D, 5), jnp.float32),
                     b=s * jax.random.normal(ks[10], (5,), jnp.float32)),
        "t_node": dict(wa=s * jax.random.normal(ks[11], (D,), jnp.float32),
                       wb=s * jax.random.normal(ks[12], (D,), jnp.float32),
                       b=jnp.zeros((), jnp.float32)),
        "t_edge": dict(wa=s * jax.random.normal(ks[13], (D,), jnp.float32),
                       wb=s * jax.random.normal(ks[14], (D,), jnp.float32),
                       b=jnp.zeros((), jnp.float32)),
        "edge_encoder": dict(
            w=s * jax.random.normal(ks[15], (2 * dim_geo, D), jnp.float32),
            b=jnp.zeros((D,), jnp.float32)),
    }


def pad_params(p, dim_node, dim_geo):
    """Pad logical params into the 128-lane-aligned bf16 kernel layout.

    GRU layout (PyTorch gate order r, z, n):
      wrz (2*DP, 2*DP): rows [0:D]->x, [DP:DP+D]->h; cols [0:DP]->r, [DP:2DP]->z
      win/whn (DP, DP): n-gate input / hidden weights
      brz (1, 2*DP) = bih+bhh for r,z;  bn/bhn (1, DP) = bih_n / bhh_n
    """
    D = dim_node
    assert D <= DP

    def pad_gru(g):
        wih, whh, bih, bhh = g["wih"], g["whh"], g["bih"], g["bhh"]
        wrz = jnp.zeros((2 * DP, 2 * DP), jnp.float32)
        wrz = wrz.at[:D, :D].set(wih[:, 0:D])
        wrz = wrz.at[:D, DP:DP + D].set(wih[:, D:2 * D])
        wrz = wrz.at[DP:DP + D, :D].set(whh[:, 0:D])
        wrz = wrz.at[DP:DP + D, DP:DP + D].set(whh[:, D:2 * D])
        brz = jnp.zeros((1, 2 * DP), jnp.float32)
        brz = brz.at[0, :D].set(bih[0:D] + bhh[0:D])
        brz = brz.at[0, DP:DP + D].set(bih[D:2 * D] + bhh[D:2 * D])
        win = jnp.zeros((DP, DP), jnp.float32).at[:D, :D].set(wih[:, 2 * D:])
        whn = jnp.zeros((DP, DP), jnp.float32).at[:D, :D].set(whh[:, 2 * D:])
        bn = jnp.zeros((1, DP), jnp.float32).at[0, :D].set(bih[2 * D:])
        bhn = jnp.zeros((1, DP), jnp.float32).at[0, :D].set(bhh[2 * D:])
        return (wrz.astype(DTYPE), win.astype(DTYPE), whn.astype(DTYPE),
                brz, bn, bhn)

    def pad_gate(g):
        wa = jnp.zeros((1, DP), jnp.float32).at[0, :D].set(g["wa"])
        wb = jnp.zeros((1, DP), jnp.float32).at[0, :D].set(g["wb"])
        b = jnp.reshape(g["b"], (1,)).astype(jnp.float32)
        return (wa, wb, b)

    w1 = jnp.zeros((8, DP), jnp.float32).at[:5, :D].set(p["vgfm"]["w1"].T)
    w2 = jnp.zeros((8, DP), jnp.float32).at[:5, :D].set(p["vgfm"]["w2"].T)
    bg = jnp.zeros((8,), jnp.float32).at[:5].set(p["vgfm"]["b"])

    GP = _round_up(2 * dim_geo, DP)
    we = jnp.zeros((GP, DP), jnp.float32).at[:2 * dim_geo, :D].set(
        p["edge_encoder"]["w"]).astype(DTYPE)
    be = jnp.zeros((1, DP), jnp.float32).at[0, :D].set(p["edge_encoder"]["b"])

    return {
        "node_gru": pad_gru(p["node_gru"]),
        "edge_gru": pad_gru(p["edge_gru"]),
        "vgfm": (w1, w2, bg),
        "t_node": pad_gate(p["t_node"]),
        "t_edge": pad_gate(p["t_edge"]),
        "edge_encoder": (we, be),
    }


# ----------------------------------------------------------------------------
if __name__ == "__main__":
    dim_node = 32
    dim_geo = 16
    num_nodes = 8
    num_edges = 16
    num_layers = 2

    key = jax.random.PRNGKey(0)
    k_x, k_e, k_g, k_ei, k_tn, k_te, k_p = jax.random.split(key, 7)

    x = jax.random.normal(k_x, (num_nodes, dim_node), jnp.float32)
    edge_feature = jax.random.normal(k_e, (num_edges, dim_node), jnp.float32)
    geo_feature = jax.random.normal(k_g, (num_nodes, dim_geo), jnp.float32)
    edge_index = jax.random.randint(k_ei, (2, num_edges), 0, num_nodes,
                                    dtype=jnp.int32)
    temporal_node_graph = jax.random.randint(k_tn, (2, 6), 0, num_nodes,
                                             dtype=jnp.int32)
    temporal_edge_graph = jax.random.randint(k_te, (2, 6), 0, num_edges,
                                             dtype=jnp.int32)

    params = pad_params(init_params(k_p, dim_node, dim_geo), dim_node, dim_geo)

    fwd = jax.jit(triplet_vgfm_forward, static_argnames=("num_layers",))
    out_x, out_e = fwd(params, x, edge_feature, geo_feature, edge_index,
                       temporal_node_graph, temporal_edge_graph,
                       num_layers=num_layers)

    jax.block_until_ready((out_x, out_e))
    assert out_x.shape == (num_nodes, dim_node)
    assert out_e.shape == (num_edges, dim_node)
    assert bool(jnp.all(jnp.isfinite(out_x))) and bool(jnp.all(jnp.isfinite(out_e)))
    print("KERNEL_OK")
</pallas_src>

<mosaic_0001>
module attributes {stable_mosaic.version = 11 : i64} {
  func.func private @main(%arg0: i32) attributes {dimension_semantics = [#tpu.dimension_semantics<core_parallel>], iteration_bounds = array<i64: 2>, tpu.core_type = #tpu.core_type<sc_scalar_subcore>, window_params = []} {
    return
  }
}

module attributes {stable_mosaic.version = 11 : i64} {
  func.func private @main(%arg0: i32) attributes {dimension_semantics = [#tpu.dimension_semantics<core_parallel>], iteration_bounds = array<i64: 2>, tpu.core_type = #tpu.core_type<sc_scalar_subcore>, window_params = []} {
    return
  }
}

module attributes {stable_mosaic.version = 11 : i64} {
  func.func @_gate_msg_kernel(%arg0: i32, %arg1: memref<8x128xbf16, #tpu.memory_space<vmem>>, %arg2: memref<8x128xbf16, #tpu.memory_space<vmem>>, %arg3: memref<1x128xf32, #tpu.memory_space<vmem>>, %arg4: memref<1x128xf32, #tpu.memory_space<vmem>>, %arg5: memref<1xf32, #tpu.memory_space<smem>>, %arg6: memref<8x128xbf16, #tpu.memory_space<vmem>>) attributes {dimension_semantics = [#tpu.dimension_semantics<parallel>], iteration_bounds = array<i64: 1>, scalar_prefetch = 0 : i64, scratch_operands = 0 : i64, tpu.core_type = #tpu.core_type<tc>, window_params = [{transform_indices = @transform_0, window_bounds = array<i64: 8, 128>}, {transform_indices = @transform_1, window_bounds = array<i64: 8, 128>}, {pipeline_mode = #tpu.pipeline_mode<synchronous>, transform_indices = @transform_2, window_bounds = array<i64: 1, 128>}, {pipeline_mode = #tpu.pipeline_mode<synchronous>, transform_indices = @transform_3, window_bounds = array<i64: 1, 128>}, {transform_indices = @transform_4, window_bounds = array<i64: 1>}, {transform_indices = @transform_5, window_bounds = array<i64: 8, 128>}]} {
    %c0 = arith.constant 0 : index
    %c0_0 = arith.constant 0 : index
    %0 = vector.load %arg1[%c0, %c0_0] : memref<8x128xbf16, #tpu.memory_space<vmem>>, vector<8x128xbf16>
    %1 = arith.extf %0 : vector<8x128xbf16> to vector<8x128xf32>
    %c0_1 = arith.constant 0 : index
    %c0_2 = arith.constant 0 : index
    %2 = vector.load %arg2[%c0_1, %c0_2] : memref<8x128xbf16, #tpu.memory_space<vmem>>, vector<8x128xbf16>
    %3 = arith.extf %2 : vector<8x128xbf16> to vector<8x128xf32>
    %c0_3 = arith.constant 0 : index
    %c0_4 = arith.constant 0 : index
    %4 = vector.load %arg3[%c0_3, %c0_4] : memref<1x128xf32, #tpu.memory_space<vmem>>, vector<1x128xf32>
    %5 = vector.broadcast %4 : vector<1x128xf32> to vector<8x128xf32>
    %6 = arith.mulf %1, %5 : vector<8x128xf32>
    %c0_5 = arith.constant 0 : index
    %c0_6 = arith.constant 0 : index
    %7 = vector.load %arg4[%c0_5, %c0_6] : memref<1x128xf32, #tpu.memory_space<vmem>>, vector<1x128xf32>
    %8 = vector.broadcast %7 : vector<1x128xf32> to vector<8x128xf32>
    %9 = arith.mulf %3, %8 : vector<8x128xf32>
    %10 = arith.addf %6, %9 : vector<8x128xf32>
    %cst = arith.constant dense<0.000000e+00> : vector<8xf32>
    %11 = vector.multi_reduction <add>, %10, %cst [1] : vector<8x128xf32> to vector<8xf32>
    %12 = vector.shape_cast %11 : vector<8xf32> to vector<8x1xf32>
    %c0_7 = arith.constant 0 : index
    %13 = memref.load %arg5[%c0_7] : memref<1xf32, #tpu.memory_space<smem>>
    %14 = vector.broadcast %13 : f32 to vector<8x1xf32>
    %15 = arith.addf %12, %14 : vector<8x1xf32>
    %16 = arith.negf %15 : vector<8x1xf32>
    %17 = math.exp %16 : vector<8x1xf32>
    %cst_8 = arith.constant 1.000000e+00 : f32
    %18 = vector.broadcast %cst_8 : f32 to vector<8x1xf32>
    %19 = arith.addf %18, %17 : vector<8x1xf32>
    %20 = arith.divf %18, %19 : vector<8x1xf32>
    %21 = vector.broadcast %20 : vector<8x1xf32> to vector<8x128xf32>
    %22 = arith.mulf %21, %1 : vector<8x128xf32>
    %23 = arith.truncf %22 : vector<8x128xf32> to vector<8x128xbf16>
    %c0_9 = arith.constant 0 : index
    %c0_10 = arith.constant 0 : index
    %24 = vector.load %arg6[%c0_9, %c0_10] : memref<8x128xbf16, #tpu.memory_space<vmem>>, vector<8x128xbf16>
    tpu.vector_store %arg6[%c0_9, %c0_10], %23 {strides = array<i32>} : memref<8x128xbf16, #tpu.memory_space<vmem>>, vector<8x128xbf16>,
    return
  }
  func.func @transform_0(%arg0: i32) -> (i32, i32) {
    %c0_i32 = arith.constant 0 : i32
    %c0_i32_0 = arith.constant 0 : i32
    return %arg0, %c0_i32 : i32, i32
  }
  func.func @transform_1(%arg0: i32) -> (i32, i32) {
    %c0_i32 = arith.constant 0 : i32
    %c0_i32_0 = arith.constant 0 : i32
    return %arg0, %c0_i32 : i32, i32
  }
  func.func @transform_2(%arg0: i32) -> (i32, i32) {
    %c0_i32 = arith.constant 0 : i32
    %c0_i32_0 = arith.constant 0 : i32
    %c0_i32_1 = arith.constant 0 : i32
    return %c0_i32, %c0_i32_0 : i32, i32
  }
  func.func @transform_3(%arg0: i32) -> (i32, i32) {
    %c0_i32 = arith.constant 0 : i32
    %c0_i32_0 = arith.constant 0 : i32
    %c0_i32_1 = arith.constant 0 : i32
    return %c0_i32, %c0_i32_0 : i32, i32
  }
  func.func @transform_4(%arg0: i32) -> i32 {
    %c0_i32 = arith.constant 0 : i32
    %c0_i32_0 = arith.constant 0 : i32
    return %c0_i32 : i32
  }
  func.func @transform_5(%arg0: i32) -> (i32, i32) {
    %c0_i32 = arith.constant 0 : i32
    %c0_i32_0 = arith.constant 0 : i32
    return %arg0, %c0_i32 : i32, i32
  }
}

module attributes {stable_mosaic.version = 11 : i64} {
  func.func @_gru_kernel(%arg0: i32, %arg1: memref<8x128xbf16, #tpu.memory_space<vmem>>, %arg2: memref<8x128xbf16, #tpu.memory_space<vmem>>, %arg3: memref<256x256xbf16, #tpu.memory_space<vmem>>, %arg4: memref<128x128xbf16, #tpu.memory_space<vmem>>, %arg5: memref<128x128xbf16, #tpu.memory_space<vmem>>, %arg6: memref<1x256xf32, #tpu.memory_space<vmem>>, %arg7: memref<1x128xf32, #tpu.memory_space<vmem>>, %arg8: memref<1x128xf32, #tpu.memory_space<vmem>>, %arg9: memref<8x128xbf16, #tpu.memory_space<vmem>>) attributes {dimension_semantics = [#tpu.dimension_semantics<parallel>], iteration_bounds = array<i64: 1>, scalar_prefetch = 0 : i64, scratch_operands = 0 : i64, tpu.core_type = #tpu.core_type<tc>, window_params = [{transform_indices = @transform_0, window_bounds = array<i64: 8, 128>}, {transform_indices = @transform_1, window_bounds = array<i64: 8, 128>}, {pipeline_mode = #tpu.pipeline_mode<synchronous>, transform_indices = @transform_2, window_bounds = array<i64: 256, 256>}, {pipeline_mode = #tpu.pipeline_mode<synchronous>, transform_indices = @transform_3, window_bounds = array<i64: 128, 128>}, {pipeline_mode = #tpu.pipeline_mode<synchronous>, transform_indices = @transform_4, window_bounds = array<i64: 128, 128>}, {pipeline_mode = #tpu.pipeline_mode<synchronous>, transform_indices = @transform_5, window_bounds = array<i64: 1, 256>}, {pipeline_mode = #tpu.pipeline_mode<synchronous>, transform_indices = @transform_6, window_bounds = array<i64: 1, 128>}, {pipeline_mode = #tpu.pipeline_mode<synchronous>, transform_indices = @transform_7, window_bounds = array<i64: 1, 128>}, {transform_indices = @transform_8, window_bounds = array<i64: 8, 128>}]} {
    %c0 = arith.constant 0 : index
    %c0_0 = arith.constant 0 : index
    %0 = vector.load %arg1[%c0, %c0_0] : memref<8x128xbf16, #tpu.memory_space<vmem>>, vector<8x128xbf16>
    %c0_1 = arith.constant 0 : index
    %c0_2 = arith.constant 0 : index
    %1 = vector.load %arg2[%c0_1, %c0_2] : memref<8x128xbf16, #tpu.memory_space<vmem>>, vector<8x128xbf16>
    %c0_3 = arith.constant 0 : index
    %c0_4 = arith.constant 0 : index
    %2 = vector.load %arg3[%c0_3, %c0_4] : memref<256x256xbf16, #tpu.memory_space<vmem>>, vector<256x256xbf16>
    %c0_5 = arith.constant 0 : index
    %c0_6 = arith.constant 0 : index
    %3 = vector.load %arg4[%c0_5, %c0_6] : memref<128x128xbf16, #tpu.memory_space<vmem>>, vector<128x128xbf16>
    %c0_7 = arith.constant 0 : index
    %c0_8 = arith.constant 0 : index
    %4 = vector.load %arg5[%c0_7, %c0_8] : memref<128x128xbf16, #tpu.memory_space<vmem>>, vector<128x128xbf16>
    %c0_9 = arith.constant 0 : index
    %c0_10 = arith.constant 0 : index
    %5 = vector.load %arg6[%c0_9, %c0_10] : memref<1x256xf32, #tpu.memory_space<vmem>>, vector<1x256xf32>
    %c0_11 = arith.constant 0 : index
    %c0_12 = arith.constant 0 : index
    %6 = vector.load %arg7[%c0_11, %c0_12] : memref<1x128xf32, #tpu.memory_space<vmem>>, vector<1x128xf32>
    %c0_13 = arith.constant 0 : index
    %c0_14 = arith.constant 0 : index
    %7 = vector.load %arg8[%c0_13, %c0_14] : memref<1x128xf32, #tpu.memory_space<vmem>>, vector<1x128xf32>
    %8 = tpu.concatenate %0, %1 in 1 : vector<8x128xbf16>, vector<8x128xbf16> -> vector<8x256xbf16>
    %cst = arith.constant dense<0.000000e+00> : vector<8x256xf32>
    %9 = tpu.matmul %8, %2, %cst {dimension_numbers = #tpu.dot_dimension_numbers<[1], [0], [0], [1], [0, 0, 1, 1], [], []>} : vector<8x256xbf16>, vector<256x256xbf16>, vector<8x256xf32> -> vector<8x256xf32>
    %10 = vector.broadcast %5 : vector<1x256xf32> to vector<8x256xf32>
    %11 = arith.addf %9, %10 : vector<8x256xf32>
    %cst_15 = arith.constant dense<0.000000e+00> : vector<8x128xf32>
    %12 = tpu.matmul %0, %3, %cst_15 {dimension_numbers = #tpu.dot_dimension_numbers<[1], [0], [0], [1], [0, 0, 1, 1], [], []>} : vector<8x128xbf16>, vector<128x128xbf16>, vector<8x128xf32> -> vector<8x128xf32>
    %13 = vector.broadcast %6 : vector<1x128xf32> to vector<8x128xf32>
    %14 = arith.addf %12, %13 : vector<8x128xf32>
    %cst_16 = arith.constant dense<0.000000e+00> : vector<8x128xf32>
    %15 = tpu.matmul %1, %4, %cst_16 {dimension_numbers = #tpu.dot_dimension_numbers<[1], [0], [0], [1], [0, 0, 1, 1], [], []>} : vector<8x128xbf16>, vector<128x128xbf16>, vector<8x128xf32> -> vector<8x128xf32>
    %16 = vector.broadcast %7 : vector<1x128xf32> to vector<8x128xf32>
    %17 = arith.addf %15, %16 : vector<8x128xf32>
    %18 = vector.extract_strided_slice %11 {offsets = [0, 0], sizes = [8, 128], strides = [1, 1]} : vector<8x256xf32> to vector<8x128xf32>
    %19 = arith.negf %18 : vector<8x128xf32>
    %20 = math.exp %19 : vector<8x128xf32>
    %cst_17 = arith.constant 1.000000e+00 : f32
    %21 = vector.broadcast %cst_17 : f32 to vector<8x128xf32>
    %22 = arith.addf %21, %20 : vector<8x128xf32>
    %23 = arith.divf %21, %22 : vector<8x128xf32>
    %24 = vector.extract_strided_slice %11 {offsets = [0, 128], sizes = [8, 128], strides = [1, 1]} : vector<8x256xf32> to vector<8x128xf32>
    %25 = arith.negf %24 : vector<8x128xf32>
    %26 = math.exp %25 : vector<8x128xf32>
    %cst_18 = arith.constant 1.000000e+00 : f32
    %27 = vector.broadcast %cst_18 : f32 to vector<8x128xf32>
    %28 = arith.addf %27, %26 : vector<8x128xf32>
    %29 = arith.divf %27, %28 : vector<8x128xf32>
    %30 = arith.mulf %23, %17 : vector<8x128xf32>
    %31 = arith.addf %14, %30 : vector<8x128xf32>
    %32 = math.tanh %31 : vector<8x128xf32>
    %cst_19 = arith.constant 1.000000e+00 : f32
    %33 = vector.broadcast %cst_19 : f32 to vector<8x128xf32>
    %34 = arith.subf %33, %29 : vector<8x128xf32>
    %35 = arith.mulf %34, %32 : vector<8x128xf32>
    %36 = arith.extf %1 : vector<8x128xbf16> to vector<8x128xf32>
    %37 = arith.mulf %29, %36 : vector<8x128xf32>
    %38 = arith.addf %35, %37 : vector<8x128xf32>
    %39 = arith.truncf %38 : vector<8x128xf32> to vector<8x128xbf16>
    %c0_20 = arith.constant 0 : index
    %c0_21 = arith.constant 0 : index
    %40 = vector.load %arg9[%c0_20, %c0_21] : memref<8x128xbf16, #tpu.memory_space<vmem>>, vector<8x128xbf16>
    tpu.vector_store %arg9[%c0_20, %c0_21], %39 {strides = array<i32>} : memref<8x128xbf16, #tpu.memory_space<vmem>>, vector<8x128xbf16>,
    return
  }
  func.func @transform_0(%arg0: i32) -> (i32, i32) {
    %c0_i32 = arith.constant 0 : i32
    %c0_i32_0 = arith.constant 0 : i32
    return %arg0, %c0_i32 : i32, i32
  }
  func.func @transform_1(%arg0: i32) -> (i32, i32) {
    %c0_i32 = arith.constant 0 : i32
    %c0_i32_0 = arith.constant 0 : i32
    return %arg0, %c0_i32 : i32, i32
  }
  func.func @transform_2(%arg0: i32) -> (i32, i32) {
    %c0_i32 = arith.constant 0 : i32
    %c0_i32_0 = arith.constant 0 : i32
    %c0_i32_1 = arith.constant 0 : i32
    return %c0_i32, %c0_i32_0 : i32, i32
  }
  func.func @transform_3(%arg0: i32) -> (i32, i32) {
    %c0_i32 = arith.constant 0 : i32
    %c0_i32_0 = arith.constant 0 : i32
    %c0_i32_1 = arith.constant 0 : i32
    return %c0_i32, %c0_i32_0 : i32, i32
  }
  func.func @transform_4(%arg0: i32) -> (i32, i32) {
    %c0_i32 = arith.constant 0 : i32
    %c0_i32_0 = arith.constant 0 : i32
    %c0_i32_1 = arith.constant 0 : i32
    return %c0_i32, %c0_i32_0 : i32, i32
  }
  func.func @transform_5(%arg0: i32) -> (i32, i32) {
    %c0_i32 = arith.constant 0 : i32
    %c0_i32_0 = arith.constant 0 : i32
    %c0_i32_1 = arith.constant 0 : i32
    return %c0_i32, %c0_i32_0 : i32, i32
  }
  func.func @transform_6(%arg0: i32) -> (i32, i32) {
    %c0_i32 = arith.constant 0 : i32
    %c0_i32_0 = arith.constant 0 : i32
    %c0_i32_1 = arith.constant 0 : i32
    return %c0_i32, %c0_i32_0 : i32, i32
  }
  func.func @transform_7(%arg0: i32) -> (i32, i32) {
    %c0_i32 = arith.constant 0 : i32
    %c0_i32_0 = arith.constant 0 : i32
    %c0_i32_1 = arith.constant 0 : i32
    return %c0_i32, %c0_i32_0 : i32, i32
  }
  func.func @transform_8(%arg0: i32) -> (i32, i32) {
    %c0_i32 = arith.constant 0 : i32
    %c0_i32_0 = arith.constant 0 : i32
    return %arg0, %c0_i32 : i32, i32
  }
}

module attributes {stable_mosaic.version = 11 : i64} {
  func.func @_gru_kernel(%arg0: i32, %arg1: memref<8x128xbf16, #tpu.memory_space<vmem>>, %arg2: memref<8x128xbf16, #tpu.memory_space<vmem>>, %arg3: memref<256x256xbf16, #tpu.memory_space<vmem>>, %arg4: memref<128x128xbf16, #tpu.memory_space<vmem>>, %arg5: memref<128x128xbf16, #tpu.memory_space<vmem>>, %arg6: memref<1x256xf32, #tpu.memory_space<vmem>>, %arg7: memref<1x128xf32, #tpu.memory_space<vmem>>, %arg8: memref<1x128xf32, #tpu.memory_space<vmem>>, %arg9: memref<8x128xbf16, #tpu.memory_space<vmem>>) attributes {dimension_semantics = [#tpu.dimension_semantics<parallel>], iteration_bounds = array<i64: 2>, scalar_prefetch = 0 : i64, scratch_operands = 0 : i64, tpu.core_type = #tpu.core_type<tc>, window_params = [{transform_indices = @transform_0, window_bounds = array<i64: 8, 128>}, {transform_indices = @transform_1, window_bounds = array<i64: 8, 128>}, {pipeline_mode = #tpu.pipeline_mode<synchronous>, transform_indices = @transform_2, window_bounds = array<i64: 256, 256>}, {pipeline_mode = #tpu.pipeline_mode<synchronous>, transform_indices = @transform_3, window_bounds = array<i64: 128, 128>}, {pipeline_mode = #tpu.pipeline_mode<synchronous>, transform_indices = @transform_4, window_bounds = array<i64: 128, 128>}, {pipeline_mode = #tpu.pipeline_mode<synchronous>, transform_indices = @transform_5, window_bounds = array<i64: 1, 256>}, {pipeline_mode = #tpu.pipeline_mode<synchronous>, transform_indices = @transform_6, window_bounds = array<i64: 1, 128>}, {pipeline_mode = #tpu.pipeline_mode<synchronous>, transform_indices = @transform_7, window_bounds = array<i64: 1, 128>}, {transform_indices = @transform_8, window_bounds = array<i64: 8, 128>}]} {
    %c0 = arith.constant 0 : index
    %c0_0 = arith.constant 0 : index
    %0 = vector.load %arg1[%c0, %c0_0] : memref<8x128xbf16, #tpu.memory_space<vmem>>, vector<8x128xbf16>
    %c0_1 = arith.constant 0 : index
    %c0_2 = arith.constant 0 : index
    %1 = vector.load %arg2[%c0_1, %c0_2] : memref<8x128xbf16, #tpu.memory_space<vmem>>, vector<8x128xbf16>
    %c0_3 = arith.constant 0 : index
    %c0_4 = arith.constant 0 : index
    %2 = vector.load %arg3[%c0_3, %c0_4] : memref<256x256xbf16, #tpu.memory_space<vmem>>, vector<256x256xbf16>
    %c0_5 = arith.constant 0 : index
    %c0_6 = arith.constant 0 : index
    %3 = vector.load %arg4[%c0_5, %c0_6] : memref<128x128xbf16, #tpu.memory_space<vmem>>, vector<128x128xbf16>
    %c0_7 = arith.constant 0 : index
    %c0_8 = arith.constant 0 : index
    %4 = vector.load %arg5[%c0_7, %c0_8] : memref<128x128xbf16, #tpu.memory_space<vmem>>, vector<128x128xbf16>
    %c0_9 = arith.constant 0 : index
    %c0_10 = arith.constant 0 : index
    %5 = vector.load %arg6[%c0_9, %c0_10] : memref<1x256xf32, #tpu.memory_space<vmem>>, vector<1x256xf32>
    %c0_11 = arith.constant 0 : index
    %c0_12 = arith.constant 0 : index
    %6 = vector.load %arg7[%c0_11, %c0_12] : memref<1x128xf32, #tpu.memory_space<vmem>>, vector<1x128xf32>
    %c0_13 = arith.constant 0 : index
    %c0_14 = arith.constant 0 : index
    %7 = vector.load %arg8[%c0_13, %c0_14] : memref<1x128xf32, #tpu.memory_space<vmem>>, vector<1x128xf32>
    %8 = tpu.concatenate %0, %1 in 1 : vector<8x128xbf16>, vector<8x128xbf16> -> vector<8x256xbf16>
    %cst = arith.constant dense<0.000000e+00> : vector<8x256xf32>
    %9 = tpu.matmul %8, %2, %cst {dimension_numbers = #tpu.dot_dimension_numbers<[1], [0], [0], [1], [0, 0, 1, 1], [], []>} : vector<8x256xbf16>, vector<256x256xbf16>, vector<8x256xf32> -> vector<8x256xf32>
    %10 = vector.broadcast %5 : vector<1x256xf32> to vector<8x256xf32>
    %11 = arith.addf %9, %10 : vector<8x256xf32>
    %cst_15 = arith.constant dense<0.000000e+00> : vector<8x128xf32>
    %12 = tpu.matmul %0, %3, %cst_15 {dimension_numbers = #tpu.dot_dimension_numbers<[1], [0], [0], [1], [0, 0, 1, 1], [], []>} : vector<8x128xbf16>, vector<128x128xbf16>, vector<8x128xf32> -> vector<8x128xf32>
    %13 = vector.broadcast %6 : vector<1x128xf32> to vector<8x128xf32>
    %14 = arith.addf %12, %13 : vector<8x128xf32>
    %cst_16 = arith.constant dense<0.000000e+00> : vector<8x128xf32>
    %15 = tpu.matmul %1, %4, %cst_16 {dimension_numbers = #tpu.dot_dimension_numbers<[1], [0], [0], [1], [0, 0, 1, 1], [], []>} : vector<8x128xbf16>, vector<128x128xbf16>, vector<8x128xf32> -> vector<8x128xf32>
    %16 = vector.broadcast %7 : vector<1x128xf32> to vector<8x128xf32>
    %17 = arith.addf %15, %16 : vector<8x128xf32>
    %18 = vector.extract_strided_slice %11 {offsets = [0, 0], sizes = [8, 128], strides = [1, 1]} : vector<8x256xf32> to vector<8x128xf32>
    %19 = arith.negf %18 : vector<8x128xf32>
    %20 = math.exp %19 : vector<8x128xf32>
    %cst_17 = arith.constant 1.000000e+00 : f32
    %21 = vector.broadcast %cst_17 : f32 to vector<8x128xf32>
    %22 = arith.addf %21, %20 : vector<8x128xf32>
    %23 = arith.divf %21, %22 : vector<8x128xf32>
    %24 = vector.extract_strided_slice %11 {offsets = [0, 128], sizes = [8, 128], strides = [1, 1]} : vector<8x256xf32> to vector<8x128xf32>
    %25 = arith.negf %24 : vector<8x128xf32>
    %26 = math.exp %25 : vector<8x128xf32>
    %cst_18 = arith.constant 1.000000e+00 : f32
    %27 = vector.broadcast %cst_18 : f32 to vector<8x128xf32>
    %28 = arith.addf %27, %26 : vector<8x128xf32>
    %29 = arith.divf %27, %28 : vector<8x128xf32>
    %30 = arith.mulf %23, %17 : vector<8x128xf32>
    %31 = arith.addf %14, %30 : vector<8x128xf32>
    %32 = math.tanh %31 : vector<8x128xf32>
    %cst_19 = arith.constant 1.000000e+00 : f32
    %33 = vector.broadcast %cst_19 : f32 to vector<8x128xf32>
    %34 = arith.subf %33, %29 : vector<8x128xf32>
    %35 = arith.mulf %34, %32 : vector<8x128xf32>
    %36 = arith.extf %1 : vector<8x128xbf16> to vector<8x128xf32>
    %37 = arith.mulf %29, %36 : vector<8x128xf32>
    %38 = arith.addf %35, %37 : vector<8x128xf32>
    %39 = arith.truncf %38 : vector<8x128xf32> to vector<8x128xbf16>
    %c0_20 = arith.constant 0 : index
    %c0_21 = arith.constant 0 : index
    %40 = vector.load %arg9[%c0_20, %c0_21] : memref<8x128xbf16, #tpu.memory_space<vmem>>, vector<8x128xbf16>
    tpu.vector_store %arg9[%c0_20, %c0_21], %39 {strides = array<i32>} : memref<8x128xbf16, #tpu.memory_space<vmem>>, vector<8x128xbf16>,
    return
  }
  func.func @transform_0(%arg0: i32) -> (i32, i32) {
    %c0_i32 = arith.constant 0 : i32
    %c0_i32_0 = arith.constant 0 : i32
    return %arg0, %c0_i32 : i32, i32
  }
  func.func @transform_1(%arg0: i32) -> (i32, i32) {
    %c0_i32 = arith.constant 0 : i32
    %c0_i32_0 = arith.constant 0 : i32
    return %arg0, %c0_i32 : i32, i32
  }
  func.func @transform_2(%arg0: i32) -> (i32, i32) {
    %c0_i32 = arith.constant 0 : i32
    %c0_i32_0 = arith.constant 0 : i32
    %c0_i32_1 = arith.constant 0 : i32
    return %c0_i32, %c0_i32_0 : i32, i32
  }
  func.func @transform_3(%arg0: i32) -> (i32, i32) {
    %c0_i32 = arith.constant 0 : i32
    %c0_i32_0 = arith.constant 0 : i32
    %c0_i32_1 = arith.constant 0 : i32
    return %c0_i32, %c0_i32_0 : i32, i32
  }
  func.func @transform_4(%arg0: i32) -> (i32, i32) {
    %c0_i32 = arith.constant 0 : i32
    %c0_i32_0 = arith.constant 0 : i32
    %c0_i32_1 = arith.constant 0 : i32
    return %c0_i32, %c0_i32_0 : i32, i32
  }
  func.func @transform_5(%arg0: i32) -> (i32, i32) {
    %c0_i32 = arith.constant 0 : i32
    %c0_i32_0 = arith.constant 0 : i32
    %c0_i32_1 = arith.constant 0 : i32
    return %c0_i32, %c0_i32_0 : i32, i32
  }
  func.func @transform_6(%arg0: i32) -> (i32, i32) {
    %c0_i32 = arith.constant 0 : i32
    %c0_i32_0 = arith.constant 0 : i32
    %c0_i32_1 = arith.constant 0 : i32
    return %c0_i32, %c0_i32_0 : i32, i32
  }
  func.func @transform_7(%arg0: i32) -> (i32, i32) {
    %c0_i32 = arith.constant 0 : i32
    %c0_i32_0 = arith.constant 0 : i32
    %c0_i32_1 = arith.constant 0 : i32
    return %c0_i32, %c0_i32_0 : i32, i32
  }
  func.func @transform_8(%arg0: i32) -> (i32, i32) {
    %c0_i32 = arith.constant 0 : i32
    %c0_i32_0 = arith.constant 0 : i32
    return %arg0, %c0_i32 : i32, i32
  }
}

module attributes {stable_mosaic.version = 11 : i64} {
  func.func @_linear_kernel(%arg0: i32, %arg1: memref<8x128xbf16, #tpu.memory_space<vmem>>, %arg2: memref<128x128xbf16, #tpu.memory_space<vmem>>, %arg3: memref<1x128xf32, #tpu.memory_space<vmem>>, %arg4: memref<8x128xbf16, #tpu.memory_space<vmem>>) attributes {dimension_semantics = [#tpu.dimension_semantics<parallel>], iteration_bounds = array<i64: 2>, scalar_prefetch = 0 : i64, scratch_operands = 0 : i64, tpu.core_type = #tpu.core_type<tc>, window_params = [{transform_indices = @transform_0, window_bounds = array<i64: 8, 128>}, {pipeline_mode = #tpu.pipeline_mode<synchronous>, transform_indices = @transform_1, window_bounds = array<i64: 128, 128>}, {pipeline_mode = #tpu.pipeline_mode<synchronous>, transform_indices = @transform_2, window_bounds = array<i64: 1, 128>}, {transform_indices = @transform_3, window_bounds = array<i64: 8, 128>}]} {
    %c0 = arith.constant 0 : index
    %c0_0 = arith.constant 0 : index
    %0 = vector.load %arg1[%c0, %c0_0] : memref<8x128xbf16, #tpu.memory_space<vmem>>, vector<8x128xbf16>
    %c0_1 = arith.constant 0 : index
    %c0_2 = arith.constant 0 : index
    %1 = vector.load %arg2[%c0_1, %c0_2] : memref<128x128xbf16, #tpu.memory_space<vmem>>, vector<128x128xbf16>
    %cst = arith.constant dense<0.000000e+00> : vector<8x128xf32>
    %2 = tpu.matmul %0, %1, %cst {dimension_numbers = #tpu.dot_dimension_numbers<[1], [0], [0], [1], [0, 0, 1, 1], [], []>} : vector<8x128xbf16>, vector<128x128xbf16>, vector<8x128xf32> -> vector<8x128xf32>
    %c0_3 = arith.constant 0 : index
    %c0_4 = arith.constant 0 : index
    %3 = vector.load %arg3[%c0_3, %c0_4] : memref<1x128xf32, #tpu.memory_space<vmem>>, vector<1x128xf32>
    %4 = vector.broadcast %3 : vector<1x128xf32> to vector<8x128xf32>
    %5 = arith.addf %2, %4 : vector<8x128xf32>
    %6 = arith.truncf %5 : vector<8x128xf32> to vector<8x128xbf16>
    %c0_5 = arith.constant 0 : index
    %c0_6 = arith.constant 0 : index
    %7 = vector.load %arg4[%c0_5, %c0_6] : memref<8x128xbf16, #tpu.memory_space<vmem>>, vector<8x128xbf16>
    tpu.vector_store %arg4[%c0_5, %c0_6], %6 {strides = array<i32>} : memref<8x128xbf16, #tpu.memory_space<vmem>>, vector<8x128xbf16>,
    return
  }
  func.func @transform_0(%arg0: i32) -> (i32, i32) {
    %c0_i32 = arith.constant 0 : i32
    %c0_i32_0 = arith.constant 0 : i32
    return %arg0, %c0_i32 : i32, i32
  }
  func.func @transform_1(%arg0: i32) -> (i32, i32) {
    %c0_i32 = arith.constant 0 : i32
    %c0_i32_0 = arith.constant 0 : i32
    %c0_i32_1 = arith.constant 0 : i32
    return %c0_i32, %c0_i32_0 : i32, i32
  }
  func.func @transform_2(%arg0: i32) -> (i32, i32) {
    %c0_i32 = arith.constant 0 : i32
    %c0_i32_0 = arith.constant 0 : i32
    %c0_i32_1 = arith.constant 0 : i32
    return %c0_i32, %c0_i32_0 : i32, i32
  }
  func.func @transform_3(%arg0: i32) -> (i32, i32) {
    %c0_i32 = arith.constant 0 : i32
    %c0_i32_0 = arith.constant 0 : i32
    return %arg0, %c0_i32 : i32, i32
  }
}

module attributes {stable_mosaic.version = 11 : i64} {
  func.func @_edge_fused_kernel(%arg0: i32, %arg1: memref<8x128xbf16, #tpu.memory_space<vmem>>, %arg2: memref<8x128xbf16, #tpu.memory_space<vmem>>, %arg3: memref<8x128xbf16, #tpu.memory_space<vmem>>, %arg4: memref<8x128xbf16, #tpu.memory_space<vmem>>, %arg5: memref<8x128xbf16, #tpu.memory_space<vmem>>, %arg6: memref<8x128xf32, #tpu.memory_space<vmem>>, %arg7: memref<8x128xf32, #tpu.memory_space<vmem>>, %arg8: memref<8xf32, #tpu.memory_space<smem>>, %arg9: memref<256x256xbf16, #tpu.memory_space<vmem>>, %arg10: memref<128x128xbf16, #tpu.memory_space<vmem>>, %arg11: memref<128x128xbf16, #tpu.memory_space<vmem>>, %arg12: memref<1x256xf32, #tpu.memory_space<vmem>>, %arg13: memref<1x128xf32, #tpu.memory_space<vmem>>, %arg14: memref<1x128xf32, #tpu.memory_space<vmem>>, %arg15: memref<8x128xbf16, #tpu.memory_space<vmem>>, %arg16: memref<8x128xbf16, #tpu.memory_space<vmem>>) attributes {dimension_semantics = [#tpu.dimension_semantics<parallel>], iteration_bounds = array<i64: 2>, scalar_prefetch = 0 : i64, scratch_operands = 0 : i64, tpu.core_type = #tpu.core_type<tc>, window_params = [{transform_indices = @transform_0, window_bounds = array<i64: 8, 128>}, {transform_indices = @transform_1, window_bounds = array<i64: 8, 128>}, {transform_indices = @transform_2, window_bounds = array<i64: 8, 128>}, {transform_indices = @transform_3, window_bounds = array<i64: 8, 128>}, {transform_indices = @transform_4, window_bounds = array<i64: 8, 128>}, {pipeline_mode = #tpu.pipeline_mode<synchronous>, transform_indices = @transform_5, window_bounds = array<i64: 8, 128>}, {pipeline_mode = #tpu.pipeline_mode<synchronous>, transform_indices = @transform_6, window_bounds = array<i64: 8, 128>}, {transform_indices = @transform_7, window_bounds = array<i64: 8>}, {pipeline_mode = #tpu.pipeline_mode<synchronous>, transform_indices = @transform_8, window_bounds = array<i64: 256, 256>}, {pipeline_mode = #tpu.pipeline_mode<synchronous>, transform_indices = @transform_9, window_bounds = array<i64: 128, 128>}, {pipeline_mode = #tpu.pipeline_mode<synchronous>, transform_indices = @transform_10, window_bounds = array<i64: 128, 128>}, {pipeline_mode = #tpu.pipeline_mode<synchronous>, transform_indices = @transform_11, window_bounds = array<i64: 1, 256>}, {pipeline_mode = #tpu.pipeline_mode<synchronous>, transform_indices = @transform_12, window_bounds = array<i64: 1, 128>}, {pipeline_mode = #tpu.pipeline_mode<synchronous>, transform_indices = @transform_13, window_bounds = array<i64: 1, 128>}, {transform_indices = @transform_14, window_bounds = array<i64: 8, 128>}, {transform_indices = @transform_15, window_bounds = array<i64: 8, 128>}]} {
    %c0 = arith.constant 0 : index
    %c0_0 = arith.constant 0 : index
    %0 = vector.load %arg1[%c0, %c0_0] : memref<8x128xbf16, #tpu.memory_space<vmem>>, vector<8x128xbf16>
    %1 = arith.extf %0 : vector<8x128xbf16> to vector<8x128xf32>
    %c0_1 = arith.constant 0 : index
    %c0_2 = arith.constant 0 : index
    %2 = vector.load %arg2[%c0_1, %c0_2] : memref<8x128xbf16, #tpu.memory_space<vmem>>, vector<8x128xbf16>
    %3 = arith.extf %2 : vector<8x128xbf16> to vector<8x128xf32>
    %c0_3 = arith.constant 0 : index
    %c0_4 = arith.constant 0 : index
    %4 = vector.load %arg3[%c0_3, %c0_4] : memref<8x128xbf16, #tpu.memory_space<vmem>>, vector<8x128xbf16>
    %5 = arith.extf %4 : vector<8x128xbf16> to vector<8x128xf32>
    %c0_5 = arith.constant 0 : index
    %c0_6 = arith.constant 0 : index
    %6 = vector.load %arg4[%c0_5, %c0_6] : memref<8x128xbf16, #tpu.memory_space<vmem>>, vector<8x128xbf16>
    %7 = arith.extf %6 : vector<8x128xbf16> to vector<8x128xf32>
    %c0_7 = arith.constant 0 : index
    %c0_8 = arith.constant 0 : index
    %8 = vector.load %arg6[%c0_7, %c0_8] : memref<8x128xf32, #tpu.memory_space<vmem>>, vector<8x128xf32>
    %c0_9 = arith.constant 0 : index
    %c0_10 = arith.constant 0 : index
    %9 = vector.load %arg7[%c0_9, %c0_10] : memref<8x128xf32, #tpu.memory_space<vmem>>, vector<8x128xf32>
    %10 = vector.extract_strided_slice %8 {offsets = [0, 0], sizes = [1, 128], strides = [1, 1]} : vector<8x128xf32> to vector<1x128xf32>
    %11 = vector.broadcast %10 : vector<1x128xf32> to vector<8x128xf32>
    %12 = arith.mulf %1, %11 : vector<8x128xf32>
    %13 = vector.extract_strided_slice %9 {offsets = [0, 0], sizes = [1, 128], strides = [1, 1]} : vector<8x128xf32> to vector<1x128xf32>
    %14 = vector.broadcast %13 : vector<1x128xf32> to vector<8x128xf32>
    %15 = arith.mulf %5, %14 : vector<8x128xf32>
    %16 = arith.addf %12, %15 : vector<8x128xf32>
    %cst = arith.constant dense<0.000000e+00> : vector<8xf32>
    %17 = vector.multi_reduction <add>, %16, %cst [1] : vector<8x128xf32> to vector<8xf32>
    %18 = vector.shape_cast %17 : vector<8xf32> to vector<8x1xf32>
    %c0_11 = arith.constant 0 : index
    %19 = memref.load %arg8[%c0_11] : memref<8xf32, #tpu.memory_space<smem>>
    %20 = vector.broadcast %19 : f32 to vector<8x1xf32>
    %21 = arith.addf %18, %20 : vector<8x1xf32>
    %22 = arith.negf %21 : vector<8x1xf32>
    %23 = math.exp %22 : vector<8x1xf32>
    %cst_12 = arith.constant 1.000000e+00 : f32
    %24 = vector.broadcast %cst_12 : f32 to vector<8x1xf32>
    %25 = arith.addf %24, %23 : vector<8x1xf32>
    %26 = arith.divf %24, %25 : vector<8x1xf32>
    %27 = vector.extract_strided_slice %8 {offsets = [1, 0], sizes = [1, 128], strides = [1, 1]} : vector<8x128xf32> to vector<1x128xf32>
    %28 = vector.broadcast %27 : vector<1x128xf32> to vector<8x128xf32>
    %29 = arith.mulf %3, %28 : vector<8x128xf32>
    %30 = vector.extract_strided_slice %9 {offsets = [1, 0], sizes = [1, 128], strides = [1, 1]} : vector<8x128xf32> to vector<1x128xf32>
    %31 = vector.broadcast %30 : vector<1x128xf32> to vector<8x128xf32>
    %32 = arith.mulf %5, %31 : vector<8x128xf32>
    %33 = arith.addf %29, %32 : vector<8x128xf32>
    %cst_13 = arith.constant dense<0.000000e+00> : vector<8xf32>
    %34 = vector.multi_reduction <add>, %33, %cst_13 [1] : vector<8x128xf32> to vector<8xf32>
    %35 = vector.shape_cast %34 : vector<8xf32> to vector<8x1xf32>
    %c1 = arith.constant 1 : index
    %36 = memref.load %arg8[%c1] : memref<8xf32, #tpu.memory_space<smem>>
    %37 = vector.broadcast %36 : f32 to vector<8x1xf32>
    %38 = arith.addf %35, %37 : vector<8x1xf32>
    %39 = arith.negf %38 : vector<8x1xf32>
    %40 = math.exp %39 : vector<8x1xf32>
    %cst_14 = arith.constant 1.000000e+00 : f32
    %41 = vector.broadcast %cst_14 : f32 to vector<8x1xf32>
    %42 = arith.addf %41, %40 : vector<8x1xf32>
    %43 = arith.divf %41, %42 : vector<8x1xf32>
    %44 = arith.addf %26, %43 : vector<8x1xf32>
    %45 = vector.broadcast %44 : vector<8x1xf32> to vector<8x128xf32>
    %46 = arith.mulf %45, %5 : vector<8x128xf32>
    %47 = vector.extract_strided_slice %8 {offsets = [2, 0], sizes = [1, 128], strides = [1, 1]} : vector<8x128xf32> to vector<1x128xf32>
    %48 = vector.broadcast %47 : vector<1x128xf32> to vector<8x128xf32>
    %49 = arith.mulf %1, %48 : vector<8x128xf32>
    %50 = vector.extract_strided_slice %9 {offsets = [2, 0], sizes = [1, 128], strides = [1, 1]} : vector<8x128xf32> to vector<1x128xf32>
    %51 = vector.broadcast %50 : vector<1x128xf32> to vector<8x128xf32>
    %52 = arith.mulf %5, %51 : vector<8x128xf32>
    %53 = arith.addf %49, %52 : vector<8x128xf32>
    %cst_15 = arith.constant dense<0.000000e+00> : vector<8xf32>
    %54 = vector.multi_reduction <add>, %53, %cst_15 [1] : vector<8x128xf32> to vector<8xf32>
    %55 = vector.shape_cast %54 : vector<8xf32> to vector<8x1xf32>
    %c2 = arith.constant 2 : index
    %56 = memref.load %arg8[%c2] : memref<8xf32, #tpu.memory_space<smem>>
    %57 = vector.broadcast %56 : f32 to vector<8x1xf32>
    %58 = arith.addf %55, %57 : vector<8x1xf32>
    %59 = arith.negf %58 : vector<8x1xf32>
    %60 = math.exp %59 : vector<8x1xf32>
    %cst_16 = arith.constant 1.000000e+00 : f32
    %61 = vector.broadcast %cst_16 : f32 to vector<8x1xf32>
    %62 = arith.addf %61, %60 : vector<8x1xf32>
    %63 = arith.divf %61, %62 : vector<8x1xf32>
    %64 = vector.broadcast %63 : vector<8x1xf32> to vector<8x128xf32>
    %65 = arith.mulf %64, %1 : vector<8x128xf32>
    %66 = vector.extract_strided_slice %8 {offsets = [3, 0], sizes = [1, 128], strides = [1, 1]} : vector<8x128xf32> to vector<1x128xf32>
    %67 = vector.broadcast %66 : vector<1x128xf32> to vector<8x128xf32>
    %68 = arith.mulf %3, %67 : vector<8x128xf32>
    %69 = vector.extract_strided_slice %9 {offsets = [3, 0], sizes = [1, 128], strides = [1, 1]} : vector<8x128xf32> to vector<1x128xf32>
    %70 = vector.broadcast %69 : vector<1x128xf32> to vector<8x128xf32>
    %71 = arith.mulf %5, %70 : vector<8x128xf32>
    %72 = arith.addf %68, %71 : vector<8x128xf32>
    %cst_17 = arith.constant dense<0.000000e+00> : vector<8xf32>
    %73 = vector.multi_reduction <add>, %72, %cst_17 [1] : vector<8x128xf32> to vector<8xf32>
    %74 = vector.shape_cast %73 : vector<8xf32> to vector<8x1xf32>
    %c3 = arith.constant 3 : index
    %75 = memref.load %arg8[%c3] : memref<8xf32, #tpu.memory_space<smem>>
    %76 = vector.broadcast %75 : f32 to vector<8x1xf32>
    %77 = arith.addf %74, %76 : vector<8x1xf32>
    %78 = arith.negf %77 : vector<8x1xf32>
    %79 = math.exp %78 : vector<8x1xf32>
    %cst_18 = arith.constant 1.000000e+00 : f32
    %80 = vector.broadcast %cst_18 : f32 to vector<8x1xf32>
    %81 = arith.addf %80, %79 : vector<8x1xf32>
    %82 = arith.divf %80, %81 : vector<8x1xf32>
    %83 = vector.broadcast %82 : vector<8x1xf32> to vector<8x128xf32>
    %84 = arith.mulf %83, %3 : vector<8x128xf32>
    %85 = arith.addf %65, %84 : vector<8x128xf32>
    %86 = vector.extract_strided_slice %8 {offsets = [4, 0], sizes = [1, 128], strides = [1, 1]} : vector<8x128xf32> to vector<1x128xf32>
    %87 = vector.broadcast %86 : vector<1x128xf32> to vector<8x128xf32>
    %88 = arith.mulf %7, %87 : vector<8x128xf32>
    %89 = vector.extract_strided_slice %9 {offsets = [4, 0], sizes = [1, 128], strides = [1, 1]} : vector<8x128xf32> to vector<1x128xf32>
    %90 = vector.broadcast %89 : vector<1x128xf32> to vector<8x128xf32>
    %91 = arith.mulf %5, %90 : vector<8x128xf32>
    %92 = arith.addf %88, %91 : vector<8x128xf32>
    %cst_19 = arith.constant dense<0.000000e+00> : vector<8xf32>
    %93 = vector.multi_reduction <add>, %92, %cst_19 [1] : vector<8x128xf32> to vector<8xf32>
    %94 = vector.shape_cast %93 : vector<8xf32> to vector<8x1xf32>
    %c4 = arith.constant 4 : index
    %95 = memref.load %arg8[%c4] : memref<8xf32, #tpu.memory_space<smem>>
    %96 = vector.broadcast %95 : f32 to vector<8x1xf32>
    %97 = arith.addf %94, %96 : vector<8x1xf32>
    %98 = arith.negf %97 : vector<8x1xf32>
    %99 = math.exp %98 : vector<8x1xf32>
    %cst_20 = arith.constant 1.000000e+00 : f32
    %100 = vector.broadcast %cst_20 : f32 to vector<8x1xf32>
    %101 = arith.addf %100, %99 : vector<8x1xf32>
    %102 = arith.divf %100, %101 : vector<8x1xf32>
    %103 = vector.broadcast %102 : vector<8x1xf32> to vector<8x128xf32>
    %104 = arith.mulf %103, %7 : vector<8x128xf32>
    %105 = arith.addf %85, %104 : vector<8x128xf32>
    %c0_21 = arith.constant 0 : index
    %c0_22 = arith.constant 0 : index
    %106 = vector.load %arg5[%c0_21, %c0_22] : memref<8x128xbf16, #tpu.memory_space<vmem>>, vector<8x128xbf16>
    %107 = arith.extf %106 : vector<8x128xbf16> to vector<8x128xf32>
    %108 = arith.addf %105, %107 : vector<8x128xf32>
    %109 = arith.truncf %46 : vector<8x128xf32> to vector<8x128xbf16>
    %c0_23 = arith.constant 0 : index
    %c0_24 = arith.constant 0 : index
    %110 = vector.load %arg15[%c0_23, %c0_24] : memref<8x128xbf16, #tpu.memory_space<vmem>>, vector<8x128xbf16>
    tpu.vector_store %arg15[%c0_23, %c0_24], %109 {strides = array<i32>} : memref<8x128xbf16, #tpu.memory_space<vmem>>, vector<8x128xbf16>,
    %111 = arith.truncf %108 : vector<8x128xf32> to vector<8x128xbf16>
    %c0_25 = arith.constant 0 : index
    %c0_26 = arith.constant 0 : index
    %112 = vector.load %arg9[%c0_25, %c0_26] : memref<256x256xbf16, #tpu.memory_space<vmem>>, vector<256x256xbf16>
    %c0_27 = arith.constant 0 : index
    %c0_28 = arith.constant 0 : index
    %113 = vector.load %arg10[%c0_27, %c0_28] : memref<128x128xbf16, #tpu.memory_space<vmem>>, vector<128x128xbf16>
    %c0_29 = arith.constant 0 : index
    %c0_30 = arith.constant 0 : index
    %114 = vector.load %arg11[%c0_29, %c0_30] : memref<128x128xbf16, #tpu.memory_space<vmem>>, vector<128x128xbf16>
    %c0_31 = arith.constant 0 : index
    %c0_32 = arith.constant 0 : index
    %115 = vector.load %arg12[%c0_31, %c0_32] : memref<1x256xf32, #tpu.memory_space<vmem>>, vector<1x256xf32>
    %c0_33 = arith.constant 0 : index
    %c0_34 = arith.constant 0 : index
    %116 = vector.load %arg13[%c0_33, %c0_34] : memref<1x128xf32, #tpu.memory_space<vmem>>, vector<1x128xf32>
    %c0_35 = arith.constant 0 : index
    %c0_36 = arith.constant 0 : index
    %117 = vector.load %arg14[%c0_35, %c0_36] : memref<1x128xf32, #tpu.memory_space<vmem>>, vector<1x128xf32>
    %118 = tpu.concatenate %111, %4 in 1 : vector<8x128xbf16>, vector<8x128xbf16> -> vector<8x256xbf16>
    %cst_37 = arith.constant dense<0.000000e+00> : vector<8x256xf32>
    %119 = tpu.matmul %118, %112, %cst_37 {dimension_numbers = #tpu.dot_dimension_numbers<[1], [0], [0], [1], [0, 0, 1, 1], [], []>} : vector<8x256xbf16>, vector<256x256xbf16>, vector<8x256xf32> -> vector<8x256xf32>
    %120 = vector.broadcast %115 : vector<1x256xf32> to vector<8x256xf32>
    %121 = arith.addf %119, %120 : vector<8x256xf32>
    %cst_38 = arith.constant dense<0.000000e+00> : vector<8x128xf32>
    %122 = tpu.matmul %111, %113, %cst_38 {dimension_numbers = #tpu.dot_dimension_numbers<[1], [0], [0], [1], [0, 0, 1, 1], [], []>} : vector<8x128xbf16>, vector<128x128xbf16>, vector<8x128xf32> -> vector<8x128xf32>
    %123 = vector.broadcast %116 : vector<1x128xf32> to vector<8x128xf32>
    %124 = arith.addf %122, %123 : vector<8x128xf32>
    %cst_39 = arith.constant dense<0.000000e+00> : vector<8x128xf32>
    %125 = tpu.matmul %4, %114, %cst_39 {dimension_numbers = #tpu.dot_dimension_numbers<[1], [0], [0], [1], [0, 0, 1, 1], [], []>} : vector<8x128xbf16>, vector<128x128xbf16>, vector<8x128xf32> -> vector<8x128xf32>
    %126 = vector.broadcast %117 : vector<1x128xf32> to vector<8x128xf32>
    %127 = arith.addf %125, %126 : vector<8x128xf32>
    %128 = vector.extract_strided_slice %121 {offsets = [0, 0], sizes = [8, 128], strides = [1, 1]} : vector<8x256xf32> to vector<8x128xf32>
    %129 = arith.negf %128 : vector<8x128xf32>
    %130 = math.exp %129 : vector<8x128xf32>
    %cst_40 = arith.constant 1.000000e+00 : f32
    %131 = vector.broadcast %cst_40 : f32 to vector<8x128xf32>
    %132 = arith.addf %131, %130 : vector<8x128xf32>
    %133 = arith.divf %131, %132 : vector<8x128xf32>
    %134 = vector.extract_strided_slice %121 {offsets = [0, 128], sizes = [8, 128], strides = [1, 1]} : vector<8x256xf32> to vector<8x128xf32>
    %135 = arith.negf %134 : vector<8x128xf32>
    %136 = math.exp %135 : vector<8x128xf32>
    %cst_41 = arith.constant 1.000000e+00 : f32
    %137 = vector.broadcast %cst_41 : f32 to vector<8x128xf32>
    %138 = arith.addf %137, %136 : vector<8x128xf32>
    %139 = arith.divf %137, %138 : vector<8x128xf32>
    %140 = arith.mulf %133, %127 : vector<8x128xf32>
    %141 = arith.addf %124, %140 : vector<8x128xf32>
    %142 = math.tanh %141 : vector<8x128xf32>
    %cst_42 = arith.constant 1.000000e+00 : f32
    %143 = vector.broadcast %cst_42 : f32 to vector<8x128xf32>
    %144 = arith.subf %143, %139 : vector<8x128xf32>
    %145 = arith.mulf %144, %142 : vector<8x128xf32>
    %146 = arith.extf %4 : vector<8x128xbf16> to vector<8x128xf32>
    %147 = arith.mulf %139, %146 : vector<8x128xf32>
    %148 = arith.addf %145, %147 : vector<8x128xf32>
    %149 = arith.truncf %148 : vector<8x128xf32> to vector<8x128xbf16>
    %c0_43 = arith.constant 0 : index
    %c0_44 = arith.constant 0 : index
    %150 = vector.load %arg16[%c0_43, %c0_44] : memref<8x128xbf16, #tpu.memory_space<vmem>>, vector<8x128xbf16>
    tpu.vector_store %arg16[%c0_43, %c0_44], %149 {strides = array<i32>} : memref<8x128xbf16, #tpu.memory_space<vmem>>, vector<8x128xbf16>,
    return
  }
  func.func @transform_0(%arg0: i32) -> (i32, i32) {
    %c0_i32 = arith.constant 0 : i32
    %c0_i32_0 = arith.constant 0 : i32
    return %arg0, %c0_i32 : i32, i32
  }
  func.func @transform_1(%arg0: i32) -> (i32, i32) {
    %c0_i32 = arith.constant 0 : i32
    %c0_i32_0 = arith.constant 0 : i32
    return %arg0, %c0_i32 : i32, i32
  }
  func.func @transform_2(%arg0: i32) -> (i32, i32) {
    %c0_i32 = arith.constant 0 : i32
    %c0_i32_0 = arith.constant 0 : i32
    return %arg0, %c0_i32 : i32, i32
  }
  func.func @transform_3(%arg0: i32) -> (i32, i32) {
    %c0_i32 = arith.constant 0 : i32
    %c0_i32_0 = arith.constant 0 : i32
    return %arg0, %c0_i32 : i32, i32
  }
  func.func @transform_4(%arg0: i32) -> (i32, i32) {
    %c0_i32 = arith.constant 0 : i32
    %c0_i32_0 = arith.constant 0 : i32
    return %arg0, %c0_i32 : i32, i32
  }
  func.func @transform_5(%arg0: i32) -> (i32, i32) {
    %c0_i32 = arith.constant 0 : i32
    %c0_i32_0 = arith.constant 0 : i32
    %c0_i32_1 = arith.constant 0 : i32
    return %c0_i32, %c0_i32_0 : i32, i32
  }
  func.func @transform_6(%arg0: i32) -> (i32, i32) {
    %c0_i32 = arith.constant 0 : i32
    %c0_i32_0 = arith.constant 0 : i32
    %c0_i32_1 = arith.constant 0 : i32
    return %c0_i32, %c0_i32_0 : i32, i32
  }
  func.func @transform_7(%arg0: i32) -> i32 {
    %c0_i32 = arith.constant 0 : i32
    %c0_i32_0 = arith.constant 0 : i32
    return %c0_i32 : i32
  }
  func.func @transform_8(%arg0: i32) -> (i32, i32) {
    %c0_i32 = arith.constant 0 : i32
    %c0_i32_0 = arith.constant 0 : i32
    %c0_i32_1 = arith.constant 0 : i32
    return %c0_i32, %c0_i32_0 : i32, i32
  }
  func.func @transform_9(%arg0: i32) -> (i32, i32) {
    %c0_i32 = arith.constant 0 : i32
    %c0_i32_0 = arith.constant 0 : i32
    %c0_i32_1 = arith.constant 0 : i32
    return %c0_i32, %c0_i32_0 : i32, i32
  }
  func.func @transform_10(%arg0: i32) -> (i32, i32) {
    %c0_i32 = arith.constant 0 : i32
    %c0_i32_0 = arith.constant 0 : i32
    %c0_i32_1 = arith.constant 0 : i32
    return %c0_i32, %c0_i32_0 : i32, i32
  }
  func.func @transform_11(%arg0: i32) -> (i32, i32) {
    %c0_i32 = arith.constant 0 : i32
    %c0_i32_0 = arith.constant 0 : i32
    %c0_i32_1 = arith.constant 0 : i32
    return %c0_i32, %c0_i32_0 : i32, i32
  }
  func.func @transform_12(%arg0: i32) -> (i32, i32) {
    %c0_i32 = arith.constant 0 : i32
    %c0_i32_0 = arith.constant 0 : i32
    %c0_i32_1 = arith.constant 0 : i32
    return %c0_i32, %c0_i32_0 : i32, i32
  }
  func.func @transform_13(%arg0: i32) -> (i32, i32) {
    %c0_i32 = arith.constant 0 : i32
    %c0_i32_0 = arith.constant 0 : i32
    %c0_i32_1 = arith.constant 0 : i32
    return %c0_i32, %c0_i32_0 : i32, i32
  }
  func.func @transform_14(%arg0: i32) -> (i32, i32) {
    %c0_i32 = arith.constant 0 : i32
    %c0_i32_0 = arith.constant 0 : i32
    return %arg0, %c0_i32 : i32, i32
  }
  func.func @transform_15(%arg0: i32) -> (i32, i32) {
    %c0_i32 = arith.constant 0 : i32
    %c0_i32_0 = arith.constant 0 : i32
    return %arg0, %c0_i32 : i32, i32
  }
}

module attributes {stable_mosaic.version = 11 : i64} {
  func.func @_gru_kernel(%arg0: i32, %arg1: memref<8x128xbf16, #tpu.memory_space<vmem>>, %arg2: memref<8x128xbf16, #tpu.memory_space<vmem>>, %arg3: memref<256x256xbf16, #tpu.memory_space<vmem>>, %arg4: memref<128x128xbf16, #tpu.memory_space<vmem>>, %arg5: memref<128x128xbf16, #tpu.memory_space<vmem>>, %arg6: memref<1x256xf32, #tpu.memory_space<vmem>>, %arg7: memref<1x128xf32, #tpu.memory_space<vmem>>, %arg8: memref<1x128xf32, #tpu.memory_space<vmem>>, %arg9: memref<8x128xbf16, #tpu.memory_space<vmem>>) attributes {dimension_semantics = [#tpu.dimension_semantics<parallel>], iteration_bounds = array<i64: 1>, scalar_prefetch = 0 : i64, scratch_operands = 0 : i64, tpu.core_type = #tpu.core_type<tc>, window_params = [{transform_indices = @transform_0, window_bounds = array<i64: 8, 128>}, {transform_indices = @transform_1, window_bounds = array<i64: 8, 128>}, {pipeline_mode = #tpu.pipeline_mode<synchronous>, transform_indices = @transform_2, window_bounds = array<i64: 256, 256>}, {pipeline_mode = #tpu.pipeline_mode<synchronous>, transform_indices = @transform_3, window_bounds = array<i64: 128, 128>}, {pipeline_mode = #tpu.pipeline_mode<synchronous>, transform_indices = @transform_4, window_bounds = array<i64: 128, 128>}, {pipeline_mode = #tpu.pipeline_mode<synchronous>, transform_indices = @transform_5, window_bounds = array<i64: 1, 256>}, {pipeline_mode = #tpu.pipeline_mode<synchronous>, transform_indices = @transform_6, window_bounds = array<i64: 1, 128>}, {pipeline_mode = #tpu.pipeline_mode<synchronous>, transform_indices = @transform_7, window_bounds = array<i64: 1, 128>}, {transform_indices = @transform_8, window_bounds = array<i64: 8, 128>}]} {
    %c0 = arith.constant 0 : index
    %c0_0 = arith.constant 0 : index
    %0 = vector.load %arg1[%c0, %c0_0] : memref<8x128xbf16, #tpu.memory_space<vmem>>, vector<8x128xbf16>
    %c0_1 = arith.constant 0 : index
    %c0_2 = arith.constant 0 : index
    %1 = vector.load %arg2[%c0_1, %c0_2] : memref<8x128xbf16, #tpu.memory_space<vmem>>, vector<8x128xbf16>
    %c0_3 = arith.constant 0 : index
    %c0_4 = arith.constant 0 : index
    %2 = vector.load %arg3[%c0_3, %c0_4] : memref<256x256xbf16, #tpu.memory_space<vmem>>, vector<256x256xbf16>
    %c0_5 = arith.constant 0 : index
    %c0_6 = arith.constant 0 : index
    %3 = vector.load %arg4[%c0_5, %c0_6] : memref<128x128xbf16, #tpu.memory_space<vmem>>, vector<128x128xbf16>
    %c0_7 = arith.constant 0 : index
    %c0_8 = arith.constant 0 : index
    %4 = vector.load %arg5[%c0_7, %c0_8] : memref<128x128xbf16, #tpu.memory_space<vmem>>, vector<128x128xbf16>
    %c0_9 = arith.constant 0 : index
    %c0_10 = arith.constant 0 : index
    %5 = vector.load %arg6[%c0_9, %c0_10] : memref<1x256xf32, #tpu.memory_space<vmem>>, vector<1x256xf32>
    %c0_11 = arith.constant 0 : index
    %c0_12 = arith.constant 0 : index
    %6 = vector.load %arg7[%c0_11, %c0_12] : memref<1x128xf32, #tpu.memory_space<vmem>>, vector<1x128xf32>
    %c0_13 = arith.constant 0 : index
    %c0_14 = arith.constant 0 : index
    %7 = vector.load %arg8[%c0_13, %c0_14] : memref<1x128xf32, #tpu.memory_space<vmem>>, vector<1x128xf32>
    %8 = tpu.concatenate %0, %1 in 1 : vector<8x128xbf16>, vector<8x128xbf16> -> vector<8x256xbf16>
    %cst = arith.constant dense<0.000000e+00> : vector<8x256xf32>
    %9 = tpu.matmul %8, %2, %cst {dimension_numbers = #tpu.dot_dimension_numbers<[1], [0], [0], [1], [0, 0, 1, 1], [], []>} : vector<8x256xbf16>, vector<256x256xbf16>, vector<8x256xf32> -> vector<8x256xf32>
    %10 = vector.broadcast %5 : vector<1x256xf32> to vector<8x256xf32>
    %11 = arith.addf %9, %10 : vector<8x256xf32>
    %cst_15 = arith.constant dense<0.000000e+00> : vector<8x128xf32>
    %12 = tpu.matmul %0, %3, %cst_15 {dimension_numbers = #tpu.dot_dimension_numbers<[1], [0], [0], [1], [0, 0, 1, 1], [], []>} : vector<8x128xbf16>, vector<128x128xbf16>, vector<8x128xf32> -> vector<8x128xf32>
    %13 = vector.broadcast %6 : vector<1x128xf32> to vector<8x128xf32>
    %14 = arith.addf %12, %13 : vector<8x128xf32>
    %cst_16 = arith.constant dense<0.000000e+00> : vector<8x128xf32>
    %15 = tpu.matmul %1, %4, %cst_16 {dimension_numbers = #tpu.dot_dimension_numbers<[1], [0], [0], [1], [0, 0, 1, 1], [], []>} : vector<8x128xbf16>, vector<128x128xbf16>, vector<8x128xf32> -> vector<8x128xf32>
    %16 = vector.broadcast %7 : vector<1x128xf32> to vector<8x128xf32>
    %17 = arith.addf %15, %16 : vector<8x128xf32>
    %18 = vector.extract_strided_slice %11 {offsets = [0, 0], sizes = [8, 128], strides = [1, 1]} : vector<8x256xf32> to vector<8x128xf32>
    %19 = arith.negf %18 : vector<8x128xf32>
    %20 = math.exp %19 : vector<8x128xf32>
    %cst_17 = arith.constant 1.000000e+00 : f32
    %21 = vector.broadcast %cst_17 : f32 to vector<8x128xf32>
    %22 = arith.addf %21, %20 : vector<8x128xf32>
    %23 = arith.divf %21, %22 : vector<8x128xf32>
    %24 = vector.extract_strided_slice %11 {offsets = [0, 128], sizes = [8, 128], strides = [1, 1]} : vector<8x256xf32> to vector<8x128xf32>
    %25 = arith.negf %24 : vector<8x128xf32>
    %26 = math.exp %25 : vector<8x128xf32>
    %cst_18 = arith.constant 1.000000e+00 : f32
    %27 = vector.broadcast %cst_18 : f32 to vector<8x128xf32>
    %28 = arith.addf %27, %26 : vector<8x128xf32>
    %29 = arith.divf %27, %28 : vector<8x128xf32>
    %30 = arith.mulf %23, %17 : vector<8x128xf32>
    %31 = arith.addf %14, %30 : vector<8x128xf32>
    %32 = math.tanh %31 : vector<8x128xf32>
    %cst_19 = arith.constant 1.000000e+00 : f32
    %33 = vector.broadcast %cst_19 : f32 to vector<8x128xf32>
    %34 = arith.subf %33, %29 : vector<8x128xf32>
    %35 = arith.mulf %34, %32 : vector<8x128xf32>
    %36 = arith.extf %1 : vector<8x128xbf16> to vector<8x128xf32>
    %37 = arith.mulf %29, %36 : vector<8x128xf32>
    %38 = arith.addf %35, %37 : vector<8x128xf32>
    %39 = arith.truncf %38 : vector<8x128xf32> to vector<8x128xbf16>
    %c0_20 = arith.constant 0 : index
    %c0_21 = arith.constant 0 : index
    %40 = vector.load %arg9[%c0_20, %c0_21] : memref<8x128xbf16, #tpu.memory_space<vmem>>, vector<8x128xbf16>
    tpu.vector_store %arg9[%c0_20, %c0_21], %39 {strides = array<i32>} : memref<8x128xbf16, #tpu.memory_space<vmem>>, vector<8x128xbf16>,
    return
  }
  func.func @transform_0(%arg0: i32) -> (i32, i32) {
    %c0_i32 = arith.constant 0 : i32
    %c0_i32_0 = arith.constant 0 : i32
    return %arg0, %c0_i32 : i32, i32
  }
  func.func @transform_1(%arg0: i32) -> (i32, i32) {
    %c0_i32 = arith.constant 0 : i32
    %c0_i32_0 = arith.constant 0 : i32
    return %arg0, %c0_i32 : i32, i32
  }
  func.func @transform_2(%arg0: i32) -> (i32, i32) {
    %c0_i32 = arith.constant 0 : i32
    %c0_i32_0 = arith.constant 0 : i32
    %c0_i32_1 = arith.constant 0 : i32
    return %c0_i32, %c0_i32_0 : i32, i32
  }
  func.func @transform_3(%arg0: i32) -> (i32, i32) {
    %c0_i32 = arith.constant 0 : i32
    %c0_i32_0 = arith.constant 0 : i32
    %c0_i32_1 = arith.constant 0 : i32
    return %c0_i32, %c0_i32_0 : i32, i32
  }
  func.func @transform_4(%arg0: i32) -> (i32, i32) {
    %c0_i32 = arith.constant 0 : i32
    %c0_i32_0 = arith.constant 0 : i32
    %c0_i32_1 = arith.constant 0 : i32
    return %c0_i32, %c0_i32_0 : i32, i32
  }
  func.func @transform_5(%arg0: i32) -> (i32, i32) {
    %c0_i32 = arith.constant 0 : i32
    %c0_i32_0 = arith.constant 0 : i32
    %c0_i32_1 = arith.constant 0 : i32
    return %c0_i32, %c0_i32_0 : i32, i32
  }
  func.func @transform_6(%arg0: i32) -> (i32, i32) {
    %c0_i32 = arith.constant 0 : i32
    %c0_i32_0 = arith.constant 0 : i32
    %c0_i32_1 = arith.constant 0 : i32
    return %c0_i32, %c0_i32_0 : i32, i32
  }
  func.func @transform_7(%arg0: i32) -> (i32, i32) {
    %c0_i32 = arith.constant 0 : i32
    %c0_i32_0 = arith.constant 0 : i32
    %c0_i32_1 = arith.constant 0 : i32
    return %c0_i32, %c0_i32_0 : i32, i32
  }
  func.func @transform_8(%arg0: i32) -> (i32, i32) {
    %c0_i32 = arith.constant 0 : i32
    %c0_i32_0 = arith.constant 0 : i32
    return %arg0, %c0_i32 : i32, i32
  }
}

</mosaic_0001>

<llo_original>
// kernel: triplet_vgfm_forward.14
$region0: #{triplet_vgfm_forward.14}
  #allocation0 [shape = 'u32[]', space=smem, size = 0x4, offset = 0x4, fixed_abs, tag = 'smem constant byte address 0x4 - core index']
  #allocation1 [shape = 'u32[144,128]{1,0:T(1,128)}', space=vmem, size = 0x12000, scoped, tag = 'internal scratch']
  #allocation2 [shape = 'f32[1]{0:T(128)S(6)}', space=smem, size = 0x200, scoped, tag = 'scoped memory for triplet_vgfm_forward.14']
  %s0 = inlined_call_operand.vmem [shape: bf16[8,128], index: 0, kind: input, shape index: {}]
  %s1 = inlined_call_operand.vmem [shape: bf16[8,128], index: 1, kind: input, shape index: {}]
  %s2 = inlined_call_operand.vmem [shape: f32[1,128], index: 2, kind: input, shape index: {}]
  %s3 = inlined_call_operand.vmem [shape: f32[1,128], index: 3, kind: input, shape index: {}]
  %s4 = inlined_call_operand.<no memory space> [shape: f32[1], index: 4, kind: input, shape index: {}]
  %s5 = inlined_call_operand.vmem [shape: bf16[8,128], index: 5, kind: output, shape index: {}]
  %s6 = sld [smem:[#allocation0]]
  $region30: #{triplet_vgfm_forward.14} parent=0
    _
  %s8 = ssub.s32 1, %s6
  %s9 = scalar_select 0, %s8, %s6
  %10 = sst [smem:[#allocation2]] %s4
  // Predicated region
  $region2: #{triplet_vgfm_forward.14} parent=0 // pred_check
    _
  $region3: #{triplet_vgfm_forward.14} parent=0 // pred_check_branch
    %12 = sbr.rel (0) target = $region5
  $region4: #{triplet_vgfm_forward.14} parent=0 // pred_region
    _
  $region5: #{triplet_vgfm_forward.14} parent=0 // pred_fallthru
    _
  // Predicated region
  $region6: #{triplet_vgfm_forward.14} parent=0 // pred_check
    _
  $region7: #{triplet_vgfm_forward.14} parent=0 // pred_check_branch
    %14 = sbr.rel (0) target = $region9
  $region8: #{triplet_vgfm_forward.14} parent=0 // pred_region
    _
  $region9: #{triplet_vgfm_forward.14} parent=0 // pred_fallthru
    _
  // Predicated region
  $region10: #{triplet_vgfm_forward.14} parent=0 // pred_check
    _
  $region11: #{triplet_vgfm_forward.14} parent=0 // pred_check_branch
    %16 = sbr.rel (0) target = $region13
  $region12: #{triplet_vgfm_forward.14} parent=0 // pred_region
    _
  $region13: #{triplet_vgfm_forward.14} parent=0 // pred_fallthru
    _
  // Predicated region
  $region14: #{triplet_vgfm_forward.14} parent=0 // pred_check
    _
  $region15: #{triplet_vgfm_forward.14} parent=0 // pred_check_branch
    %18 = sbr.rel (0) target = $region17
  $region16: #{triplet_vgfm_forward.14} parent=0 // pred_region
    _
  $region17: #{triplet_vgfm_forward.14} parent=0 // pred_fallthru
    _
  // Predicated region
  $region18: #{triplet_vgfm_forward.14} parent=0 // pred_check
    _
  $region19: #{triplet_vgfm_forward.14} parent=0 // pred_check_branch
    %20 = sbr.rel (0) target = $region21
  $region20: #{triplet_vgfm_forward.14} parent=0 // pred_region
    _
  $region21: #{triplet_vgfm_forward.14} parent=0 // pred_fallthru
    _
  %v21 = vld [vmem:[%s0] sm:$0xf]
  %v22 = vunpack.c.l.bf16 %v21
  %v23 = vld [vmem:[%s1] sm:$0xf]
  %v24 = vunpack.c.l.bf16 %v23
  %v25 = vld [vmem:[%s2] sm:$0x1]
  %v27 = vlaneseq
  %v28 = vshrl.u32 %v27, 7
  %v29 = vsub.s32 0, %v28
  %v30 = vrot.slane %v25, %v29
  %v32 = vmul.f32 %v22, %v30
  %v33 = vld [vmem:[%s3] sm:$0x1]
  %v35 = vlaneseq
  %v36 = vshrl.u32 %v35, 7
  %v37 = vsub.s32 0, %v36
  %v38 = vrot.slane %v33, %v37
  %v40 = vmul.f32 %v24, %v38
  %v41 = vadd.f32 %v32, %v40
  %42 = vadd.xlane.f32.xlu0 %v41
  %v43 = vpop.xlane.xlu0 %42
  %s44 = sld [smem:[#allocation2]]
  %v45 = vstv %s44
  %v46 = vadd.f32 %v43, %v45
  %v47 = vxor.u32 %v46, 2147483648
  %v48 = vmul.f32 %v47, 1.442695
  %v49 = vpow.pop %v48
  %v50 = vadd.f32 %v49, 1.0
  %v51 = vrcp.pop %v50
  %v52 = vmul.f32 1.0, %v51
  %v53 = vmul.f32 %v52, %v22
  %v54 = vpack.c.bf16 %v53, %v53
  %55 = vst [vmem:[%s5] sm:$0xf] %v54
  // Predicated region
  $region22: #{triplet_vgfm_forward.14} parent=0 // pred_check
    _
  $region23: #{triplet_vgfm_forward.14} parent=0 // pred_check_branch
    %57 = sbr.rel (0) target = $region25
  $region24: #{triplet_vgfm_forward.14} parent=0 // pred_region
    _
  $region25: #{triplet_vgfm_forward.14} parent=0 // pred_fallthru
    _
  // Predicated region
  $region26: #{triplet_vgfm_forward.14} parent=0 // pred_check
    _
  $region27: #{triplet_vgfm_forward.14} parent=0 // pred_check_branch
    %59 = sbr.rel (0) target = $region29
  $region28: #{triplet_vgfm_forward.14} parent=0 // pred_region
    _
  $region29: #{triplet_vgfm_forward.14} parent=0 // pred_fallthru
    _

// kernel: triplet_vgfm_forward.13
$region0: #{triplet_vgfm_forward.13}
  #allocation0 [shape = 'u32[]', space=smem, size = 0x4, offset = 0x4, fixed_abs, tag = 'smem constant byte address 0x4 - core index']
  #allocation1 [shape = 'u32[144,128]{1,0:T(1,128)}', space=vmem, size = 0x12000, scoped, tag = 'internal scratch']
  %s0 = inlined_call_operand.vmem [shape: bf16[16,128], index: 0, kind: input, shape index: {}]
  %s1 = inlined_call_operand.vmem [shape: bf16[128,128], index: 1, kind: input, shape index: {}]
  %s2 = inlined_call_operand.vmem [shape: f32[1,128], index: 2, kind: input, shape index: {}]
  %s3 = inlined_call_operand.vmem [shape: bf16[16,128], index: 3, kind: output, shape index: {}]
  %s4 = sld [smem:[#allocation0]]
  $region45: #{triplet_vgfm_forward.13} parent=0
    _
  %s6 = ssub.s32 1, %s4
  %s7 = scalar_select 0, %s6, %s4
  loop: start=0, step=1, limit=4
  $region2: #{triplet_vgfm_forward.13} parent=0 // loop_pre_header
    _
  $region3: #{triplet_vgfm_forward.13} parent=0 // loop_header
    %s9 = sphi 0, %s13
    %p10 = scmp.ge.s32.totalorder %s9, 4
    %s19 = sphi 0, %s21
    %s22 = sphi 0, %s19
    %s23 = sphi 0, %s22
    %s39 = sphi 0, %s23
    %s43 = sphi 0, %s43
    %s45 = sphi 0, %s43
    %s46 = sphi 0, %s45
    %s60 = sphi 0, %s46
    %s64 = sphi 0, %s64
    %s66 = sphi 0, %s64
    %s67 = sphi 0, %s66
    %s81 = sphi 0, %s67
    %s87 = sphi 0, %s89
    %s90 = sphi 0, %s87
    %s91 = sphi 0, %s90
    %s107 = sphi 0, %s91
  $region4: #{triplet_vgfm_forward.13} parent=0 // loop_header_branch
    %12 = sbr.rel (%p10) target = $region8
  $region5: #{triplet_vgfm_forward.13} parent=0 // loop_body
    %s14 = ssub.s32 %s9, 1
    %s15 = ssub.s32 %s9, 2
    %s16 = sadd.s32 %s9, 1
    %s17 = ssub.s32 %s9, %s16
    %p18 = scmp.eq.s32.totalorder %s17, 0
    %s20 = sadd.s32 %s19, 1
    %s21 = scalar_select %p18, %s19, %s20
    %p24 = pneg %p18
    %p25 = scmp.eq.s32.totalorder %s9, 1
    %p26 = por %p24, %p25
    %p27 = scmp.ne.s32.totalorder %s19, %s22
    %p28 = scmp.eq.s32.totalorder %s9, 0
    %p29 = por %p27, %p28
    %p30 = scmp.ne.s32.totalorder %s19, %s22
    %p31 = scmp.eq.s32.totalorder %s14, 1
    %p32 = por %p30, %p31
    %p33 = scmp.ne.s32.totalorder %s22, %s23
    %p34 = scmp.eq.s32.totalorder %s14, 0
    %p35 = por %p33, %p34
    %p36 = scmp.ne.s32.totalorder %s22, %s23
    %p37 = scmp.eq.s32.totalorder %s15, 1
    %p38 = por %p36, %p37
    %p40 = scmp.ne.s32.totalorder %s23, %s39
    %p41 = scmp.eq.s32.totalorder %s15, 0
    %p42 = por %p40, %p41
    %s44 = sadd.s32 %s43, 1
    %p47 = scmp.eq.s32.totalorder %s9, 1
    %p48 = scmp.ne.s32.totalorder %s43, %s45
    %p49 = scmp.eq.s32.totalorder %s9, 0
    %p50 = por %p48, %p49
    %p51 = scmp.ne.s32.totalorder %s43, %s45
    %p52 = scmp.eq.s32.totalorder %s14, 1
    %p53 = por %p51, %p52
    %p54 = scmp.ne.s32.totalorder %s45, %s46
    %p55 = scmp.eq.s32.totalorder %s14, 0
    %p56 = por %p54, %p55
    %p57 = scmp.ne.s32.totalorder %s45, %s46
    %p58 = scmp.eq.s32.totalorder %s15, 1
    %p59 = por %p57, %p58
    %p61 = scmp.ne.s32.totalorder %s46, %s60
    %p62 = scmp.eq.s32.totalorder %s15, 0
    %p63 = por %p61, %p62
    %s65 = sadd.s32 %s64, 1
    %p68 = scmp.eq.s32.totalorder %s9, 1
    %p69 = scmp.ne.s32.totalorder %s64, %s66
    %p70 = scmp.eq.s32.totalorder %s9, 0
    %p71 = por %p69, %p70
    %p72 = scmp.ne.s32.totalorder %s64, %s66
    %p73 = scmp.eq.s32.totalorder %s14, 1
    %p74 = por %p72, %p73
    %p75 = scmp.ne.s32.totalorder %s66, %s67
    %p76 = scmp.eq.s32.totalorder %s14, 0
    %p77 = por %p75, %p76
    %p78 = scmp.ne.s32.totalorder %s66, %s67
    %p79 = scmp.eq.s32.totalorder %s15, 1
    %p80 = por %p78, %p79
    %p82 = scmp.ne.s32.totalorder %s67, %s81
    %p83 = scmp.eq.s32.totalorder %s15, 0
    %p84 = por %p82, %p83
    %s85 = ssub.s32 %s9, %s16
    %p86 = scmp.eq.s32.totalorder %s85, 0
    %s88 = sadd.s32 %s87, 1
    %s89 = scalar_select %p86, %s87, %s88
    %p92 = pneg %p86
    %p93 = scmp.eq.s32.totalorder %s9, 1
    %p94 = por %p92, %p93
    %p95 = scmp.ne.s32.totalorder %s87, %s90
    %p96 = scmp.eq.s32.totalorder %s9, 0
    %p97 = por %p95, %p96
    %p98 = scmp.ne.s32.totalorder %s87, %s90
    %p99 = scmp.eq.s32.totalorder %s14, 1
    %p100 = por %p98, %p99
    %p101 = scmp.ne.s32.totalorder %s90, %s91
    %p102 = scmp.eq.s32.totalorder %s14, 0
    %p103 = por %p101, %p102
    %p104 = scmp.ne.s32.totalorder %s90, %s91
    %p105 = scmp.eq.s32.totalorder %s15, 1
    %p106 = por %p104, %p105
    %p108 = scmp.ne.s32.totalorder %s91, %s107
    %p109 = scmp.eq.s32.totalorder %s15, 0
    %p110 = por %p108, %p109
    %p111 = scmp.le.s32.totalorder 1, %s9
    %p112 = scmp.lt.s32.totalorder %s9, 3
    %p113 = pnand %p111, %p112
    %p114 = pneg %p113
    // Predicated region
    $region9: #{triplet_vgfm_forward.13} parent=5 // pred_check
      _
    $region10: #{triplet_vgfm_forward.13} parent=5 // pred_check_branch
      %116 = sbr.rel (%p113) target = $region12
    $region11: #{triplet_vgfm_forward.13} parent=5 // pred_region
      %s117 = ssub.s32 %s9, 1
      // Predicated region
      $region13: #{triplet_vgfm_forward.13} parent=11 // pred_check
        %p118 = pneg %p56
      $region14: #{triplet_vgfm_forward.13} parent=11 // pred_check_branch
        %120 = sbr.rel (%p118) target = $region16
      $region15: #{triplet_vgfm_forward.13} parent=11 // pred_region
        _
      $region16: #{triplet_vgfm_forward.13} parent=11 // pred_fallthru
        _
      // Predicated region
      $region17: #{triplet_vgfm_forward.13} parent=11 // pred_check
        %p121 = pneg %p77
      $region18: #{triplet_vgfm_forward.13} parent=11 // pred_check_branch
        %123 = sbr.rel (%p121) target = $region20
      $region19: #{triplet_vgfm_forward.13} parent=11 // pred_region
        _
      $region20: #{triplet_vgfm_forward.13} parent=11 // pred_fallthru
        _
    $region12: #{triplet_vgfm_forward.13} parent=5 // pred_fallthru
      _
    %p124 = scmp.lt.s32.totalorder %s9, 2
    // Predicated region
    $region21: #{triplet_vgfm_forward.13} parent=5 // pred_check
      %p125 = pneg %p124
    $region22: #{triplet_vgfm_forward.13} parent=5 // pred_check_branch
      %127 = sbr.rel (%p125) target = $region24
    $region23: #{triplet_vgfm_forward.13} parent=5 // pred_region
      // Predicated region
      $region25: #{triplet_vgfm_forward.13} parent=23 // pred_check
        %p128 = pneg %p29
      $region26: #{triplet_vgfm_forward.13} parent=23 // pred_check_branch
        %130 = sbr.rel (%p128) target = $region28
      $region27: #{triplet_vgfm_forward.13} parent=23 // pred_region
        %p131 = scmp.lt.s32.totalorder %s9, 1
        %s132 = scalar_select %p131, %s9, 1
        %s133 = smul.addr %s132, 4
        %s134 = scalar_lea.vmem %s0, %s133
      $region28: #{triplet_vgfm_forward.13} parent=23 // pred_fallthru
        _
    $region24: #{triplet_vgfm_forward.13} parent=5 // pred_fallthru
      _
    %p135 = scmp.le.s32.totalorder 1, %s9
    %p136 = scmp.lt.s32.totalorder %s9, 3
    %p137 = pnand %p135, %p136
    %p138 = pneg %p137
    // Predicated region
    $region29: #{triplet_vgfm_forward.13} parent=5 // pred_check
      _
    $region30: #{triplet_vgfm_forward.13} parent=5 // pred_check_branch
      %140 = sbr.rel (%p137) target = $region32
    $region31: #{triplet_vgfm_forward.13} parent=5 // pred_region
      %s141 = ssub.s32 %s9, 1
      %p142 = scmp.lt.s32.totalorder %s14, 1
      %s143 = scalar_select %p142, %s14, 1
      %s144 = smul.addr %s143, 4
      %s145 = scalar_lea.vmem %s0, %s144
      %p146 = pneg %p35
      %p147 = pneg %p32
      %p148 = pneg %p56
      %p149 = pneg %p53
      %p150 = pneg %p77
      %p151 = pneg %p74
      %p152 = pneg %p103
      %p153 = pneg %p100
      %p154 = scmp.lt.s32.totalorder %s14, 1
      %s155 = scalar_select %p154, %s14, 1
      %s156 = smul.addr %s155, 4
      %s157 = scalar_lea.vmem %s3, %s156
      %p158 = scmp.lt.s32.totalorder %s14, 1
      %s159 = scalar_select %p158, %s14, 1
      %s160 = smul.addr %s159, 4
      %s161 = scalar_lea.vmem %s0, %s160
      %p162 = scmp.lt.s32.totalorder %s14, 1
      %s163 = scalar_select %p162, %s14, 1
      %s164 = smul.addr %s163, 4
      %s165 = scalar_lea.vmem %s3, %s164
      %v167 = vld [vmem:[%s161] sm:$0xf]
      %v168 = vld [vmem:[%s1] sm:$0xf]
      %v169 = vld [vmem:[%s1 + $0x4] sm:$0xf]
      %v170 = vld [vmem:[%s1 + $0x8] sm:$0xf]
      %v171 = vld [vmem:[%s1 + $0xc] sm:$0xf]
      %v172 = vld [vmem:[%s1 + $0x10] sm:$0xf]
      %v173 = vld [vmem:[%s1 + $0x14] sm:$0xf]
      %v174 = vld [vmem:[%s1 + $0x18] sm:$0xf]
      %v175 = vld [vmem:[%s1 + $0x1c] sm:$0xf]
      %v176 = vld [vmem:[%s1 + $0x20] sm:$0xf]
      %v177 = vld [vmem:[%s1 + $0x24] sm:$0xf]
      %v178 = vld [vmem:[%s1 + $0x28] sm:$0xf]
      %v179 = vld [vmem:[%s1 + $0x2c] sm:$0xf]
      %v180 = vld [vmem:[%s1 + $0x30] sm:$0xf]
      %v181 = vld [vmem:[%s1 + $0x34] sm:$0xf]
      %v182 = vld [vmem:[%s1 + $0x38] sm:$0xf]
      %v183 = vld [vmem:[%s1 + $0x3c] sm:$0xf]
      %v184 = vld [vmem:[%s2] sm:$0x1]
      %v186 = vlaneseq
      %v187 = vshrl.u32 %v186, 7
      %v188 = vsub.s32 0, %v187
      %v189 = vrot.slane %v184, %v188
      %v207 = vunpack.c.l.b16 %v168
      %v208 = vunpack.c.l.b16 %v169
      %v209 = vunpack.c.l.b16 %v170
      %v210 = vunpack.c.l.b16 %v171
      %v211 = vunpack.c.l.b16 %v172
      %v212 = vunpack.c.l.b16 %v173
      %v213 = vunpack.c.l.b16 %v174
      %v214 = vunpack.c.l.b16 %v175
      %v215 = vunpack.c.l.b16 %v176
      %v216 = vunpack.c.l.b16 %v177
      %v217 = vunpack.c.l.b16 %v178
      %v218 = vunpack.c.l.b16 %v179
      %v219 = vunpack.c.l.b16 %v180
      %v220 = vunpack.c.l.b16 %v181
      %v221 = vunpack.c.l.b16 %v182
      %v222 = vunpack.c.l.b16 %v183
      %v223 = vpack.c.b16 %v208, %v207
      %v224 = vpack.c.b16 %v210, %v209
      %v225 = vpack.c.b16 %v212, %v211
      %v226 = vpack.c.b16 %v214, %v213
      %v227 = vpack.c.b16 %v216, %v215
      %v228 = vpack.c.b16 %v218, %v217
      %v229 = vpack.c.b16 %v220, %v219
      %v230 = vpack.c.b16 %v222, %v221
      %239 = vmatprep.subr.bf16.mxu0 0
      %240 = vmatpush1.bf16.msra.mxu0 %v223
      %241 = vmatprep.subr.bf16.mxu0 0
      %242 = vmatpush1.bf16.msra.mxu0 %v224
      %243 = vmatprep.subr.bf16.mxu0 0
      %244 = vmatpush1.bf16.msra.mxu0 %v225
      %245 = vmatprep.subr.bf16.mxu0 0
      %246 = vmatpush1.bf16.msra.mxu0 %v226
      %247 = vmatprep.subr.bf16.mxu0 0
      %248 = vmatpush1.bf16.msra.mxu0 %v227
      %249 = vmatprep.subr.bf16.mxu0 0
      %250 = vmatpush1.bf16.msra.mxu0 %v228
      %251 = vmatprep.subr.bf16.mxu0 0
      %252 = vmatpush1.bf16.msra.mxu0 %v229
      %253 = vmatprep.subr.bf16.mxu0 0
      %254 = vmatpush1.bf16.msra.mxu0 %v230
      %255 = vmatprep.subr.bf16.mxu0 0
      %256 = vmatpush1.bf16.msra.mxu0 0
      %257 = vmatprep.subr.bf16.mxu0 0
      %258 = vmatpush1.bf16.msra.mxu0 0
      %259 = vmatprep.subr.bf16.mxu0 0
      %260 = vmatpush1.bf16.msra.mxu0 0
      %261 = vmatprep.subr.bf16.mxu0 0
      %262 = vmatpush1.bf16.msra.mxu0 0
      %263 = vmatprep.subr.bf16.mxu0 0
      %264 = vmatpush1.bf16.msra.mxu0 0
      %265 = vmatprep.subr.bf16.mxu0 0
      %266 = vmatpush1.bf16.msra.mxu0 0
      %267 = vmatprep.subr.bf16.mxu0 0
      %268 = vmatpush1.bf16.msra.mxu0 0
      %269 = vmatprep.subr.bf16.mxu0 0
      %270 = vmatpush1.bf16.msra.mxu0 0
      %271 = vmatprep.mubr.bf16.mxu0 0
      %272 = vmatmul.mubr.bf16.gmra.mrb[0].mxu0 %v167
      %v273 = vpop.f32.mrb[0].mxu0
      %v274 = vadd.f32 %v189, %v273
      %v275 = vpop.f32.mrb[0].mxu0
      %v276 = vpop.f32.mrb[0].mxu0
      %v277 = vpop.f32.mrb[0].mxu0
      %278 = vdwg.mxu0
      %v279 = vpack.c.bf16 %v274, %v274
      %280 = vst [vmem:[%s165] sm:$0xf] %v279
      %p281 = scmp.lt.s32.totalorder %s14, 1
      %s282 = scalar_select %p281, %s14, 1
      %s283 = smul.addr %s282, 4
      %s284 = scalar_lea.vmem %s3, %s283
      // Predicated region
      $region33: #{triplet_vgfm_forward.13} parent=31 // pred_check
        %p285 = pneg %p100
      $region34: #{triplet_vgfm_forward.13} parent=31 // pred_check_branch
        %287 = sbr.rel (%p285) target = $region36
      $region35: #{triplet_vgfm_forward.13} parent=31 // pred_region
        _
      $region36: #{triplet_vgfm_forward.13} parent=31 // pred_fallthru
        _
    $region32: #{triplet_vgfm_forward.13} parent=5 // pred_fallthru
      _
    %p288 = scmp.le.s32.totalorder 2, %s9
    // Predicated region
    $region37: #{triplet_vgfm_forward.13} parent=5 // pred_check
      %p289 = pneg %p288
    $region38: #{triplet_vgfm_forward.13} parent=5 // pred_check_branch
      %291 = sbr.rel (%p289) target = $region40
    $region39: #{triplet_vgfm_forward.13} parent=5 // pred_region
      %s292 = ssub.s32 %s9, 2
      // Predicated region
      $region41: #{triplet_vgfm_forward.13} parent=39 // pred_check
        %p293 = pneg %p106
      $region42: #{triplet_vgfm_forward.13} parent=39 // pred_check_branch
        %295 = sbr.rel (%p293) target = $region44
      $region43: #{triplet_vgfm_forward.13} parent=39 // pred_region
        %p296 = scmp.lt.s32.totalorder %s15, 1
        %s297 = scalar_select %p296, %s15, 1
        %s298 = smul.addr %s297, 4
        %s299 = scalar_lea.vmem %s3, %s298
      $region44: #{triplet_vgfm_forward.13} parent=39 // pred_fallthru
        _
    $region40: #{triplet_vgfm_forward.13} parent=5 // pred_fallthru
      _
  $region6: #{triplet_vgfm_forward.13} parent=0 // loop_footer
    %s13 = sadd.s32 1, %s9
  $region7: #{triplet_vgfm_forward.13} parent=0 // loop_footer_branch
    %8 = sbr.rel target = $region3
  $region8: #{triplet_vgfm_forward.13} parent=0 // loop_exit
    _

// kernel: triplet_vgfm_forward.11
$region0: #{triplet_vgfm_forward.11}
  #allocation0 [shape = 'u32[]', space=smem, size = 0x4, offset = 0x4, fixed_abs, tag = 'smem constant byte address 0x4 - core index']
  #allocation1 [shape = 'u32[144,128]{1,0:T(1,128)}', space=vmem, size = 0x12000, scoped, tag = 'internal scratch']
  %s0 = inlined_call_operand.vmem [shape: bf16[8,128], index: 0, kind: input, shape index: {}]
  %s1 = inlined_call_operand.vmem [shape: bf16[8,128], index: 1, kind: input, shape index: {}, may-alias: {1,8}]
  %s2 = inlined_call_operand.vmem [shape: bf16[256,256], index: 2, kind: input, shape index: {}]
  %s3 = inlined_call_operand.hbm [shape: bf16[128,128], index: 3, kind: input, shape index: {}]
  %s4 = inlined_call_operand.hbm [shape: bf16[128,128], index: 4, kind: input, shape index: {}]
  %s5 = inlined_call_operand.vmem [shape: f32[1,256], index: 5, kind: input, shape index: {}]
  %s6 = inlined_call_operand.vmem [shape: f32[1,128], index: 6, kind: input, shape index: {}]
  %s7 = inlined_call_operand.vmem [shape: f32[1,128], index: 7, kind: input, shape index: {}]
  %s8 = inlined_call_operand.vmem [shape: bf16[8,128], index: 8, kind: output, shape index: {}, may-alias: {1,8}]
  %s9 = sld [smem:[#allocation0]]
  $region50: #{triplet_vgfm_forward.11} parent=0
    _
  %s11 = ssub.s32 1, %s9
  %s12 = scalar_select 0, %s11, %s9
  $region1: #{triplet_vgfm_forward.11} parent=0
    #allocation2 [shape = 'u8[32768]{0}', space=vmem, size = 0x8000, scoped, tag = 'input window, operand 3, single buffered']
    #allocation3 [shape = 's32[1]{0}', space=sflag, size = 0x4, scoped, tag = 'scoped memory for triplet_vgfm_forward.11']
    #allocation4 [shape = 'u8[32768]{0}', space=vmem, size = 0x8000, scoped, tag = 'input window, operand 4, single buffered']
    #allocation5 [shape = 's32[1]{0}', space=sflag, size = 0x4, scoped, tag = 'scoped memory for triplet_vgfm_forward.11']
    %13 = vsyncpa [#allocation3], 0
    %14 = vsyncpa [#allocation5], 0
    // Predicated region
    $region2: #{triplet_vgfm_forward.11} parent=1 // pred_check
      _
    $region3: #{triplet_vgfm_forward.11} parent=1 // pred_check_branch
      %16 = sbr.rel (0) target = $region5
    $region4: #{triplet_vgfm_forward.11} parent=1 // pred_region
      _
    $region5: #{triplet_vgfm_forward.11} parent=1 // pred_fallthru
      _
    // Predicated region
    $region6: #{triplet_vgfm_forward.11} parent=1 // pred_check
      _
    $region7: #{triplet_vgfm_forward.11} parent=1 // pred_check_branch
      %18 = sbr.rel (0) target = $region9
    $region8: #{triplet_vgfm_forward.11} parent=1 // pred_region
      _
    $region9: #{triplet_vgfm_forward.11} parent=1 // pred_fallthru
      _
    // Predicated region
    $region10: #{triplet_vgfm_forward.11} parent=1 // pred_check
      _
    $region11: #{triplet_vgfm_forward.11} parent=1 // pred_check_branch
      %20 = sbr.rel (0) target = $region13
    $region12: #{triplet_vgfm_forward.11} parent=1 // pred_region
      _
    $region13: #{triplet_vgfm_forward.11} parent=1 // pred_fallthru
      _
    // Predicated region
    $region14: #{triplet_vgfm_forward.11} parent=1 // pred_check
      _
    $region15: #{triplet_vgfm_forward.11} parent=1 // pred_check_branch
      %22 = sbr.rel (0) target = $region17
    $region16: #{triplet_vgfm_forward.11} parent=1 // pred_region
      %s24 = ssub.s32 1024, 1024
      %25 = vsyncadd [#allocation3], %s24
      %s26 = sshll.u32 [#allocation2], 4
      %s27 = int_to_ptr.vmem [resolvable:$true] %s26
      %32 = dma.hbm_to_vmem [thread:$0]  %s3, 1024, %s27, [#allocation3], 64, 64, 4
    $region17: #{triplet_vgfm_forward.11} parent=1 // pred_fallthru
      _
    // Predicated region
    $region18: #{triplet_vgfm_forward.11} parent=1 // pred_check
      _
    $region19: #{triplet_vgfm_forward.11} parent=1 // pred_check_branch
      %34 = sbr.rel (0) target = $region21
    $region20: #{triplet_vgfm_forward.11} parent=1 // pred_region
      %s36 = ssub.s32 1024, 1024
      %37 = vsyncadd [#allocation5], %s36
      %s38 = sshll.u32 [#allocation4], 4
      %s39 = int_to_ptr.vmem [resolvable:$true] %s38
      %44 = dma.hbm_to_vmem [thread:$0]  %s4, 1024, %s39, [#allocation5], 64, 64, 4
    $region21: #{triplet_vgfm_forward.11} parent=1 // pred_fallthru
      _
    // Predicated region
    $region22: #{triplet_vgfm_forward.11} parent=1 // pred_check
      _
    $region23: #{triplet_vgfm_forward.11} parent=1 // pred_check_branch
      %46 = sbr.rel (0) target = $region25
    $region24: #{triplet_vgfm_forward.11} parent=1 // pred_region
      _
    $region25: #{triplet_vgfm_forward.11} parent=1 // pred_fallthru
      _
    // Predicated region
    $region26: #{triplet_vgfm_forward.11} parent=1 // pred_check
      _
    $region27: #{triplet_vgfm_forward.11} parent=1 // pred_check_branch
      %48 = sbr.rel (0) target = $region29
    $region28: #{triplet_vgfm_forward.11} parent=1 // pred_region
      _
    $region29: #{triplet_vgfm_forward.11} parent=1 // pred_fallthru
      _
    // Predicated region
    $region30: #{triplet_vgfm_forward.11} parent=1 // pred_check
      _
    $region31: #{triplet_vgfm_forward.11} parent=1 // pred_check_branch
      %50 = sbr.rel (0) target = $region33
    $region32: #{triplet_vgfm_forward.11} parent=1 // pred_region
      _
    $region33: #{triplet_vgfm_forward.11} parent=1 // pred_fallthru
      _
    // Predicated region
    $region34: #{triplet_vgfm_forward.11} parent=1 // pred_check
      _
    $region35: #{triplet_vgfm_forward.11} parent=1 // pred_check_branch
      %52 = sbr.rel (0) target = $region37
    $region36: #{triplet_vgfm_forward.11} parent=1 // pred_region
      %53 = dma.done [#allocation3], 1024
    $region37: #{triplet_vgfm_forward.11} parent=1 // pred_fallthru
      _
    // Predicated region
    $region38: #{triplet_vgfm_forward.11} parent=1 // pred_check
      _
    $region39: #{triplet_vgfm_forward.11} parent=1 // pred_check_branch
      %55 = sbr.rel (0) target = $region41
    $region40: #{triplet_vgfm_forward.11} parent=1 // pred_region
      %56 = dma.done [#allocation5], 1024
    $region41: #{triplet_vgfm_forward.11} parent=1 // pred_fallthru
      _
    %v58 = vld [vmem:[%s0] sm:$0xf]
    %v59 = vld [vmem:[%s1] sm:$0xf]
    %v60 = vld [vmem:[%s2] sm:$0xff]
    %v61 = vld [vmem:[%s2 + $0x8] sm:$0xff]
    %v62 = vld [vmem:[%s2 + $0x10] sm:$0xff]
    %v63 = vld [vmem:[%s2 + $0x18] sm:$0xff]
    %v64 = vld [vmem:[%s2 + $0x20] sm:$0xff]
    %v65 = vld [vmem:[%s2 + $0x28] sm:$0xff]
    %v66 = vld [vmem:[%s2 + $0x30] sm:$0xff]
    %v67 = vld [vmem:[%s2 + $0x38] sm:$0xff]
    %v68 = vld [vmem:[%s2 + $0x40] sm:$0xff]
    %v69 = vld [vmem:[%s2 + $0x48] sm:$0xff]
    %v70 = vld [vmem:[%s2 + $0x50] sm:$0xff]
    %v71 = vld [vmem:[%s2 + $0x58] sm:$0xff]
    %v72 = vld [vmem:[%s2 + $0x60] sm:$0xff]
    %v73 = vld [vmem:[%s2 + $0x68] sm:$0xff]
    %v74 = vld [vmem:[%s2 + $0x70] sm:$0xff]
    %v75 = vld [vmem:[%s2 + $0x78] sm:$0xff]
    %v76 = vld [vmem:[%s2 + $0x80] sm:$0xff]
    %v77 = vld [vmem:[%s2 + $0x88] sm:$0xff]
    %v78 = vld [vmem:[%s2 + $0x90] sm:$0xff]
    %v79 = vld [vmem:[%s2 + $0x98] sm:$0xff]
    %v80 = vld [vmem:[%s2 + $0xa0] sm:$0xff]
    %v81 = vld [vmem:[%s2 + $0xa8] sm:$0xff]
    %v82 = vld [vmem:[%s2 + $0xb0] sm:$0xff]
    %v83 = vld [vmem:[%s2 + $0xb8] sm:$0xff]
    %v84 = vld [vmem:[%s2 + $0xc0] sm:$0xff]
    %v85 = vld [vmem:[%s2 + $0xc8] sm:$0xff]
    %v86 = vld [vmem:[%s2 + $0xd0] sm:$0xff]
    %v87 = vld [vmem:[%s2 + $0xd8] sm:$0xff]
    %v88 = vld [vmem:[%s2 + $0xe0] sm:$0xff]
    %v89 = vld [vmem:[%s2 + $0xe8] sm:$0xff]
    %v90 = vld [vmem:[%s2 + $0xf0] sm:$0xff]
    %v91 = vld [vmem:[%s2 + $0xf8] sm:$0xff]
    %v92 = vld [vmem:[#allocation2] sm:$0xf]
    %v93 = vld [vmem:[#allocation2 + $0x4] sm:$0xf]
    %v94 = vld [vmem:[#allocation2 + $0x8] sm:$0xf]
    %v95 = vld [vmem:[#allocation2 + $0xc] sm:$0xf]
    %v96 = vld [vmem:[#allocation2 + $0x10] sm:$0xf]
    %v97 = vld [vmem:[#allocation2 + $0x14] sm:$0xf]
    %v98 = vld [vmem:[#allocation2 + $0x18] sm:$0xf]
    %v99 = vld [vmem:[#allocation2 + $0x1c] sm:$0xf]
    %v100 = vld [vmem:[#allocation2 + $0x20] sm:$0xf]
    %v101 = vld [vmem:[#allocation2 + $0x24] sm:$0xf]
    %v102 = vld [vmem:[#allocation2 + $0x28] sm:$0xf]
    %v103 = vld [vmem:[#allocation2 + $0x2c] sm:$0xf]
    %v104 = vld [vmem:[#allocation2 + $0x30] sm:$0xf]
    %v105 = vld [vmem:[#allocation2 + $0x34] sm:$0xf]
    %v106 = vld [vmem:[#allocation2 + $0x38] sm:$0xf]
    %v107 = vld [vmem:[#allocation2 + $0x3c] sm:$0xf]
    %v108 = vld [vmem:[#allocation4] sm:$0xf]
    %v109 = vld [vmem:[#allocation4 + $0x4] sm:$0xf]
    %v110 = vld [vmem:[#allocation4 + $0x8] sm:$0xf]
    %v111 = vld [vmem:[#allocation4 + $0xc] sm:$0xf]
    %v112 = vld [vmem:[#allocation4 + $0x10] sm:$0xf]
    %v113 = vld [vmem:[#allocation4 + $0x14] sm:$0xf]
    %v114 = vld [vmem:[#allocation4 + $0x18] sm:$0xf]
    %v115 = vld [vmem:[#allocation4 + $0x1c] sm:$0xf]
    %v116 = vld [vmem:[#allocation4 + $0x20] sm:$0xf]
    %v117 = vld [vmem:[#allocation4 + $0x24] sm:$0xf]
    %v118 = vld [vmem:[#allocation4 + $0x28] sm:$0xf]
    %v119 = vld [vmem:[#allocation4 + $0x2c] sm:$0xf]
    %v120 = vld [vmem:[#allocation4 + $0x30] sm:$0xf]
    %v121 = vld [vmem:[#allocation4 + $0x34] sm:$0xf]
    %v122 = vld [vmem:[#allocation4 + $0x38] sm:$0xf]
    %v123 = vld [vmem:[#allocation4 + $0x3c] sm:$0xf]
    %v124 = vld [vmem:[%s5] sm:$0x3]
    %v125 = vld [vmem:[%s6] sm:$0x1]
    %v126 = vld [vmem:[%s7] sm:$0x1]
    %v128 = vlaneseq
    %v129 = vshrl.u32 %v128, 7
    %v130 = vsub.s32 0, %v129
    %v131 = vrot.slane %v124, %v130
    %v132 = vlaneseq
    %v133 = vshrl.u32 %v132, 7
    %v134 = vsub.s32 1, %v133
    %v135 = vrot.slane %v124, %v134
    %v170 = vunpack.c.l.b16 %v60
    %v171 = vunpack.c.h.b16 %v60
    %v172 = vunpack.c.l.b16 %v61
    %v173 = vunpack.c.h.b16 %v61
    %v174 = vunpack.c.l.b16 %v62
    %v175 = vunpack.c.h.b16 %v62
    %v176 = vunpack.c.l.b16 %v63
    %v177 = vunpack.c.h.b16 %v63
    %v178 = vunpack.c.l.b16 %v64
    %v179 = vunpack.c.h.b16 %v64
    %v180 = vunpack.c.l.b16 %v65
    %v181 = vunpack.c.h.b16 %v65
    %v182 = vunpack.c.l.b16 %v66
    %v183 = vunpack.c.h.b16 %v66
    %v184 = vunpack.c.l.b16 %v67
    %v185 = vunpack.c.h.b16 %v67
    %v186 = vunpack.c.l.b16 %v68
    %v187 = vunpack.c.h.b16 %v68
    %v188 = vunpack.c.l.b16 %v69
    %v189 = vunpack.c.h.b16 %v69
    %v190 = vunpack.c.l.b16 %v70
    %v191 = vunpack.c.h.b16 %v70
    %v192 = vunpack.c.l.b16 %v71
    %v193 = vunpack.c.h.b16 %v71
    %v194 = vunpack.c.l.b16 %v72
    %v195 = vunpack.c.h.b16 %v72
    %v196 = vunpack.c.l.b16 %v73
    %v197 = vunpack.c.h.b16 %v73
    %v198 = vunpack.c.l.b16 %v74
    %v199 = vunpack.c.h.b16 %v74
    %v200 = vunpack.c.l.b16 %v75
    %v201 = vunpack.c.h.b16 %v75
    %v202 = vunpack.c.l.b16 %v76
    %v203 = vunpack.c.h.b16 %v76
    %v204 = vunpack.c.l.b16 %v77
    %v205 = vunpack.c.h.b16 %v77
    %v206 = vunpack.c.l.b16 %v78
    %v207 = vunpack.c.h.b16 %v78
    %v208 = vunpack.c.l.b16 %v79
    %v209 = vunpack.c.h.b16 %v79
    %v210 = vunpack.c.l.b16 %v80
    %v211 = vunpack.c.h.b16 %v80
    %v212 = vunpack.c.l.b16 %v81
    %v213 = vunpack.c.h.b16 %v81
    %v214 = vunpack.c.l.b16 %v82
    %v215 = vunpack.c.h.b16 %v82
    %v216 = vunpack.c.l.b16 %v83
    %v217 = vunpack.c.h.b16 %v83
    %v218 = vunpack.c.l.b16 %v84
    %v219 = vunpack.c.h.b16 %v84
    %v220 = vunpack.c.l.b16 %v85
    %v221 = vunpack.c.h.b16 %v85
    %v222 = vunpack.c.l.b16 %v86
    %v223 = vunpack.c.h.b16 %v86
    %v224 = vunpack.c.l.b16 %v87
    %v225 = vunpack.c.h.b16 %v87
    %v226 = vunpack.c.l.b16 %v88
    %v227 = vunpack.c.h.b16 %v88
    %v228 = vunpack.c.l.b16 %v89
    %v229 = vunpack.c.h.b16 %v89
    %v230 = vunpack.c.l.b16 %v90
    %v231 = vunpack.c.h.b16 %v90
    %v232 = vunpack.c.l.b16 %v91
    %v233 = vunpack.c.h.b16 %v91
    %v234 = vpack.c.b16 %v172, %v170
    %v235 = vpack.c.b16 %v173, %v171
    %v236 = vpack.c.b16 %v176, %v174
    %v237 = vpack.c.b16 %v177, %v175
    %v238 = vpack.c.b16 %v180, %v178
    %v239 = vpack.c.b16 %v181, %v179
    %v240 = vpack.c.b16 %v184, %v182
    %v241 = vpack.c.b16 %v185, %v183
    %v242 = vpack.c.b16 %v188, %v186
    %v243 = vpack.c.b16 %v189, %v187
    %v244 = vpack.c.b16 %v192, %v190
    %v245 = vpack.c.b16 %v193, %v191
    %v246 = vpack.c.b16 %v196, %v194
    %v247 = vpack.c.b16 %v197, %v195
    %v248 = vpack.c.b16 %v200, %v198
    %v249 = vpack.c.b16 %v201, %v199
    %v250 = vpack.c.b16 %v204, %v202
    %v251 = vpack.c.b16 %v205, %v203
    %v252 = vpack.c.b16 %v208, %v206
    %v253 = vpack.c.b16 %v209, %v207
    %v254 = vpack.c.b16 %v212, %v210
    %v255 = vpack.c.b16 %v213, %v211
    %v256 = vpack.c.b16 %v216, %v214
    %v257 = vpack.c.b16 %v217, %v215
    %v258 = vpack.c.b16 %v220, %v218
    %v259 = vpack.c.b16 %v221, %v219
    %v260 = vpack.c.b16 %v224, %v222
    %v261 = vpack.c.b16 %v225, %v223
    %v262 = vpack.c.b16 %v228, %v226
    %v263 = vpack.c.b16 %v229, %v227
    %v264 = vpack.c.b16 %v232, %v230
    %v265 = vpack.c.b16 %v233, %v231
    %298 = vmatprep.subr.bf16.mxu0 %v235
    %299 = vmatpush1.bf16.msra.mxu0 %v234
    %300 = vmatprep.subr.bf16.mxu0 %v237
    %301 = vmatpush1.bf16.msra.mxu0 %v236
    %302 = vmatprep.subr.bf16.mxu0 %v239
    %303 = vmatpush1.bf16.msra.mxu0 %v238
    %304 = vmatprep.subr.bf16.mxu0 %v241
    %305 = vmatpush1.bf16.msra.mxu0 %v240
    %306 = vmatprep.subr.bf16.mxu0 %v243
    %307 = vmatpush1.bf16.msra.mxu0 %v242
    %308 = vmatprep.subr.bf16.mxu0 %v245
    %309 = vmatpush1.bf16.msra.mxu0 %v244
    %310 = vmatprep.subr.bf16.mxu0 %v247
    %311 = vmatpush1.bf16.msra.mxu0 %v246
    %312 = vmatprep.subr.bf16.mxu0 %v249
    %313 = vmatpush1.bf16.msra.mxu0 %v248
    %314 = vmatprep.subr.bf16.mxu0 %v251
    %315 = vmatpush1.bf16.msra.mxu0 %v250
    %316 = vmatprep.subr.bf16.mxu0 %v253
    %317 = vmatpush1.bf16.msra.mxu0 %v252
    %318 = vmatprep.subr.bf16.mxu0 %v255
    %319 = vmatpush1.bf16.msra.mxu0 %v254
    %320 = vmatprep.subr.bf16.mxu0 %v257
    %321 = vmatpush1.bf16.msra.mxu0 %v256
    %322 = vmatprep.subr.bf16.mxu0 %v259
    %323 = vmatpush1.bf16.msra.mxu0 %v258
    %324 = vmatprep.subr.bf16.mxu0 %v261
    %325 = vmatpush1.bf16.msra.mxu0 %v260
    %326 = vmatprep.subr.bf16.mxu0 %v263
    %327 = vmatpush1.bf16.msra.mxu0 %v262
    %328 = vmatprep.subr.bf16.mxu0 %v265
    %329 = vmatpush1.bf16.msra.mxu0 %v264
    %330 = vmatprep.mubr.bf16.mxu0 %v59
    %331 = vmatmul.mubr.bf16.gmra.mrb[0].mxu0 %v58
    %v332 = vpop.f32.mrb[0].mxu0
    %v333 = vadd.f32 %v131, %v332
    %v334 = vpop.f32.mrb[0].mxu0
    %v335 = vadd.f32 %v135, %v334
    %v336 = vpop.f32.mrb[0].mxu0
    %v337 = vpop.f32.mrb[0].mxu0
    %338 = vdwg.mxu0
    %v340 = vlaneseq
    %v341 = vshrl.u32 %v340, 7
    %v342 = vsub.s32 0, %v341
    %v343 = vrot.slane %v125, %v342
    %v361 = vunpack.c.l.b16 %v92
    %v362 = vunpack.c.l.b16 %v93
    %v363 = vunpack.c.l.b16 %v94
    %v364 = vunpack.c.l.b16 %v95
    %v365 = vunpack.c.l.b16 %v96
    %v366 = vunpack.c.l.b16 %v97
    %v367 = vunpack.c.l.b16 %v98
    %v368 = vunpack.c.l.b16 %v99
    %v369 = vunpack.c.l.b16 %v100
    %v370 = vunpack.c.l.b16 %v101
    %v371 = vunpack.c.l.b16 %v102
    %v372 = vunpack.c.l.b16 %v103
    %v373 = vunpack.c.l.b16 %v104
    %v374 = vunpack.c.l.b16 %v105
    %v375 = vunpack.c.l.b16 %v106
    %v376 = vunpack.c.l.b16 %v107
    %v377 = vpack.c.b16 %v362, %v361
    %v378 = vpack.c.b16 %v364, %v363
    %v379 = vpack.c.b16 %v366, %v365
    %v380 = vpack.c.b16 %v368, %v367
    %v381 = vpack.c.b16 %v370, %v369
    %v382 = vpack.c.b16 %v372, %v371
    %v383 = vpack.c.b16 %v374, %v373
    %v384 = vpack.c.b16 %v376, %v375
    %393 = vmatprep.subr.bf16.mxu0 0
    %394 = vmatpush1.bf16.msra.mxu0 %v377
    %395 = vmatprep.subr.bf16.mxu0 0
    %396 = vmatpush1.bf16.msra.mxu0 %v378
    %397 = vmatprep.subr.bf16.mxu0 0
    %398 = vmatpush1.bf16.msra.mxu0 %v379
    %399 = vmatprep.subr.bf16.mxu0 0
    %400 = vmatpush1.bf16.msra.mxu0 %v380
    %401 = vmatprep.subr.bf16.mxu0 0
    %402 = vmatpush1.bf16.msra.mxu0 %v381
    %403 = vmatprep.subr.bf16.mxu0 0
    %404 = vmatpush1.bf16.msra.mxu0 %v382
    %405 = vmatprep.subr.bf16.mxu0 0
    %406 = vmatpush1.bf16.msra.mxu0 %v383
    %407 = vmatprep.subr.bf16.mxu0 0
    %408 = vmatpush1.bf16.msra.mxu0 %v384
    %409 = vmatprep.subr.bf16.mxu0 0
    %410 = vmatpush1.bf16.msra.mxu0 0
    %411 = vmatprep.subr.bf16.mxu0 0
    %412 = vmatpush1.bf16.msra.mxu0 0
    %413 = vmatprep.subr.bf16.mxu0 0
    %414 = vmatpush1.bf16.msra.mxu0 0
    %415 = vmatprep.subr.bf16.mxu0 0
    %416 = vmatpush1.bf16.msra.mxu0 0
    %417 = vmatprep.subr.bf16.mxu0 0
    %418 = vmatpush1.bf16.msra.mxu0 0
    %419 = vmatprep.subr.bf16.mxu0 0
    %420 = vmatpush1.bf16.msra.mxu0 0
    %421 = vmatprep.subr.bf16.mxu0 0
    %422 = vmatpush1.bf16.msra.mxu0 0
    %423 = vmatprep.subr.bf16.mxu0 0
    %424 = vmatpush1.bf16.msra.mxu0 0
    %425 = vmatprep.mubr.bf16.mxu0 0
    %426 = vmatmul.mubr.bf16.gmra.mrb[0].mxu0 %v58
    %v427 = vpop.f32.mrb[0].mxu0
    %v428 = vadd.f32 %v343, %v427
    %v429 = vpop.f32.mrb[0].mxu0
    %v430 = vpop.f32.mrb[0].mxu0
    %v431 = vpop.f32.mrb[0].mxu0
    %432 = vdwg.mxu0
    %v434 = vlaneseq
    %v435 = vshrl.u32 %v434, 7
    %v436 = vsub.s32 0, %v435
    %v437 = vrot.slane %v126, %v436
    %v455 = vunpack.c.l.b16 %v108
    %v456 = vunpack.c.l.b16 %v109
    %v457 = vunpack.c.l.b16 %v110
    %v458 = vunpack.c.l.b16 %v111
    %v459 = vunpack.c.l.b16 %v112
    %v460 = vunpack.c.l.b16 %v113
    %v461 = vunpack.c.l.b16 %v114
    %v462 = vunpack.c.l.b16 %v115
    %v463 = vunpack.c.l.b16 %v116
    %v464 = vunpack.c.l.b16 %v117
    %v465 = vunpack.c.l.b16 %v118
    %v466 = vunpack.c.l.b16 %v119
    %v467 = vunpack.c.l.b16 %v120
    %v468 = vunpack.c.l.b16 %v121
    %v469 = vunpack.c.l.b16 %v122
    %v470 = vunpack.c.l.b16 %v123
    %v471 = vpack.c.b16 %v456, %v455
    %v472 = vpack.c.b16 %v458, %v457
    %v473 = vpack.c.b16 %v460, %v459
    %v474 = vpack.c.b16 %v462, %v461
    %v475 = vpack.c.b16 %v464, %v463
    %v476 = vpack.c.b16 %v466, %v465
    %v477 = vpack.c.b16 %v468, %v467
    %v478 = vpack.c.b16 %v470, %v469
    %487 = vmatprep.subr.bf16.mxu0 0
    %488 = vmatpush1.bf16.msra.mxu0 %v471
    %489 = vmatprep.subr.bf16.mxu0 0
    %490 = vmatpush1.bf16.msra.mxu0 %v472
    %491 = vmatprep.subr.bf16.mxu0 0
    %492 = vmatpush1.bf16.msra.mxu0 %v473
    %493 = vmatprep.subr.bf16.mxu0 0
    %494 = vmatpush1.bf16.msra.mxu0 %v474
    %495 = vmatprep.subr.bf16.mxu0 0
    %496 = vmatpush1.bf16.msra.mxu0 %v475
    %497 = vmatprep.subr.bf16.mxu0 0
    %498 = vmatpush1.bf16.msra.mxu0 %v476
    %499 = vmatprep.subr.bf16.mxu0 0
    %500 = vmatpush1.bf16.msra.mxu0 %v477
    %501 = vmatprep.subr.bf16.mxu0 0
    %502 = vmatpush1.bf16.msra.mxu0 %v478
    %503 = vmatprep.subr.bf16.mxu0 0
    %504 = vmatpush1.bf16.msra.mxu0 0
    %505 = vmatprep.subr.bf16.mxu0 0
    %506 = vmatpush1.bf16.msra.mxu0 0
    %507 = vmatprep.subr.bf16.mxu0 0
    %508 = vmatpush1.bf16.msra.mxu0 0
    %509 = vmatprep.subr.bf16.mxu0 0
    %510 = vmatpush1.bf16.msra.mxu0 0
    %511 = vmatprep.subr.bf16.mxu0 0
    %512 = vmatpush1.bf16.msra.mxu0 0
    %513 = vmatprep.subr.bf16.mxu0 0
    %514 = vmatpush1.bf16.msra.mxu0 0
    %515 = vmatprep.subr.bf16.mxu0 0
    %516 = vmatpush1.bf16.msra.mxu0 0
    %517 = vmatprep.subr.bf16.mxu0 0
    %518 = vmatpush1.bf16.msra.mxu0 0
    %519 = vmatprep.mubr.bf16.mxu0 0
    %520 = vmatmul.mubr.bf16.gmra.mrb[0].mxu0 %v59
    %v521 = vpop.f32.mrb[0].mxu0
    %v522 = vadd.f32 %v437, %v521
    %v523 = vpop.f32.mrb[0].mxu0
    %v524 = vpop.f32.mrb[0].mxu0
    %v525 = vpop.f32.mrb[0].mxu0
    %526 = vdwg.mxu0
    %v527 = vxor.u32 %v333, 2147483648
    %v528 = vmul.f32 %v527, 1.442695
    %v529 = vpow.pop %v528
    %v530 = vadd.f32 %v529, 1.0
    %v531 = vrcp.pop %v530
    %v532 = vmul.f32 1.0, %v531
    %v533 = vxor.u32 %v335, 2147483648
    %v534 = vmul.f32 %v533, 1.442695
    %v535 = vpow.pop %v534
    %v536 = vadd.f32 %v535, 1.0
    %v537 = vrcp.pop %v536
    %v538 = vmul.f32 1.0, %v537
    %v539 = vmul.f32 %v532, %v522
    %v540 = vadd.f32 %v428, %v539
    %v541 = vtanh.pop %v540
    %v542 = vsub.f32 1.0, %v538
    %v543 = vmul.f32 %v542, %v541
    %v544 = vunpack.c.l.bf16 %v59
    %v545 = vmul.f32 %v538, %v544
    %v546 = vadd.f32 %v543, %v545
    %v547 = vpack.c.bf16 %v546, %v546
    %548 = vst [vmem:[%s8] sm:$0xf] %v547
    // Predicated region
    $region42: #{triplet_vgfm_forward.11} parent=1 // pred_check
      _
    $region43: #{triplet_vgfm_forward.11} parent=1 // pred_check_branch
      %550 = sbr.rel (0) target = $region45
    $region44: #{triplet_vgfm_forward.11} parent=1 // pred_region
      _
    $region45: #{triplet_vgfm_forward.11} parent=1 // pred_fallthru
      _
    // Predicated region
    $region46: #{triplet_vgfm_forward.11} parent=1 // pred_check
      _
    $region47: #{triplet_vgfm_forward.11} parent=1 // pred_check_branch
      %552 = sbr.rel (0) target = $region49
    $region48: #{triplet_vgfm_forward.11} parent=1 // pred_region
      _
    $region49: #{triplet_vgfm_forward.11} parent=1 // pred_fallthru
      _
    %553 = vsyncpa [#allocation3], 1
    %554 = vsyncpa [#allocation5], 1

// kernel: triplet_vgfm_forward.12
$region0: #{triplet_vgfm_forward.12}
  #allocation0 [shape = 'u32[]', space=smem, size = 0x4, offset = 0x4, fixed_abs, tag = 'smem constant byte address 0x4 - core index']
  #allocation1 [shape = 'u32[144,128]{1,0:T(1,128)}', space=vmem, size = 0x12000, scoped, tag = 'internal scratch']
  %s0 = inlined_call_operand.vmem [shape: bf16[16,128], index: 0, kind: input, shape index: {}]
  %s1 = inlined_call_operand.vmem [shape: bf16[16,128], index: 1, kind: input, shape index: {}, may-alias: {1,8}]
  %s2 = inlined_call_operand.vmem [shape: bf16[256,256], index: 2, kind: input, shape index: {}]
  %s3 = inlined_call_operand.vmem [shape: bf16[128,128], index: 3, kind: input, shape index: {}]
  %s4 = inlined_call_operand.vmem [shape: bf16[128,128], index: 4, kind: input, shape index: {}]
  %s5 = inlined_call_operand.vmem [shape: f32[1,256], index: 5, kind: input, shape index: {}]
  %s6 = inlined_call_operand.vmem [shape: f32[1,128], index: 6, kind: input, shape index: {}]
  %s7 = inlined_call_operand.vmem [shape: f32[1,128], index: 7, kind: input, shape index: {}]
  %s8 = inlined_call_operand.vmem [shape: bf16[16,128], index: 8, kind: output, shape index: {}, may-alias: {1,8}]
  %s9 = sld [smem:[#allocation0]]
  $region65: #{triplet_vgfm_forward.12} parent=0
    _
  %s11 = ssub.s32 1, %s9
  %s12 = scalar_select 0, %s11, %s9
  loop: start=0, step=1, limit=4
  $region2: #{triplet_vgfm_forward.12} parent=0 // loop_pre_header
    _
  $region3: #{triplet_vgfm_forward.12} parent=0 // loop_header
    %s14 = sphi 0, %s18
    %p15 = scmp.ge.s32.totalorder %s14, 4
    %s24 = sphi 0, %s26
    %s27 = sphi 0, %s24
    %s28 = sphi 0, %s27
    %s44 = sphi 0, %s28
    %s50 = sphi 0, %s52
    %s53 = sphi 0, %s50
    %s54 = sphi 0, %s53
    %s70 = sphi 0, %s54
    %s74 = sphi 0, %s74
    %s76 = sphi 0, %s74
    %s77 = sphi 0, %s76
    %s91 = sphi 0, %s77
    %s95 = sphi 0, %s95
    %s97 = sphi 0, %s95
    %s98 = sphi 0, %s97
    %s112 = sphi 0, %s98
    %s116 = sphi 0, %s116
    %s118 = sphi 0, %s116
    %s119 = sphi 0, %s118
    %s133 = sphi 0, %s119
    %s137 = sphi 0, %s137
    %s139 = sphi 0, %s137
    %s140 = sphi 0, %s139
    %s154 = sphi 0, %s140
    %s158 = sphi 0, %s158
    %s160 = sphi 0, %s158
    %s161 = sphi 0, %s160
    %s175 = sphi 0, %s161
    %s179 = sphi 0, %s179
    %s181 = sphi 0, %s179
    %s182 = sphi 0, %s181
    %s196 = sphi 0, %s182
    %s202 = sphi 0, %s204
    %s205 = sphi 0, %s202
    %s206 = sphi 0, %s205
    %s222 = sphi 0, %s206
  $region4: #{triplet_vgfm_forward.12} parent=0 // loop_header_branch
    %17 = sbr.rel (%p15) target = $region8
  $region5: #{triplet_vgfm_forward.12} parent=0 // loop_body
    %s19 = ssub.s32 %s14, 1
    %s20 = ssub.s32 %s14, 2
    %s21 = sadd.s32 %s14, 1
    %s22 = ssub.s32 %s14, %s21
    %p23 = scmp.eq.s32.totalorder %s22, 0
    %s25 = sadd.s32 %s24, 1
    %s26 = scalar_select %p23, %s24, %s25
    %p29 = pneg %p23
    %p30 = scmp.eq.s32.totalorder %s14, 1
    %p31 = por %p29, %p30
    %p32 = scmp.ne.s32.totalorder %s24, %s27
    %p33 = scmp.eq.s32.totalorder %s14, 0
    %p34 = por %p32, %p33
    %p35 = scmp.ne.s32.totalorder %s24, %s27
    %p36 = scmp.eq.s32.totalorder %s19, 1
    %p37 = por %p35, %p36
    %p38 = scmp.ne.s32.totalorder %s27, %s28
    %p39 = scmp.eq.s32.totalorder %s19, 0
    %p40 = por %p38, %p39
    %p41 = scmp.ne.s32.totalorder %s27, %s28
    %p42 = scmp.eq.s32.totalorder %s20, 1
    %p43 = por %p41, %p42
    %p45 = scmp.ne.s32.totalorder %s28, %s44
    %p46 = scmp.eq.s32.totalorder %s20, 0
    %p47 = por %p45, %p46
    %s48 = ssub.s32 %s14, %s21
    %p49 = scmp.eq.s32.totalorder %s48, 0
    %s51 = sadd.s32 %s50, 1
    %s52 = scalar_select %p49, %s50, %s51
    %p55 = pneg %p49
    %p56 = scmp.eq.s32.totalorder %s14, 1
    %p57 = por %p55, %p56
    %p58 = scmp.ne.s32.totalorder %s50, %s53
    %p59 = scmp.eq.s32.totalorder %s14, 0
    %p60 = por %p58, %p59
    %p61 = scmp.ne.s32.totalorder %s50, %s53
    %p62 = scmp.eq.s32.totalorder %s19, 1
    %p63 = por %p61, %p62
    %p64 = scmp.ne.s32.totalorder %s53, %s54
    %p65 = scmp.eq.s32.totalorder %s19, 0
    %p66 = por %p64, %p65
    %p67 = scmp.ne.s32.totalorder %s53, %s54
    %p68 = scmp.eq.s32.totalorder %s20, 1
    %p69 = por %p67, %p68
    %p71 = scmp.ne.s32.totalorder %s54, %s70
    %p72 = scmp.eq.s32.totalorder %s20, 0
    %p73 = por %p71, %p72
    %s75 = sadd.s32 %s74, 1
    %p78 = scmp.eq.s32.totalorder %s14, 1
    %p79 = scmp.ne.s32.totalorder %s74, %s76
    %p80 = scmp.eq.s32.totalorder %s14, 0
    %p81 = por %p79, %p80
    %p82 = scmp.ne.s32.totalorder %s74, %s76
    %p83 = scmp.eq.s32.totalorder %s19, 1
    %p84 = por %p82, %p83
    %p85 = scmp.ne.s32.totalorder %s76, %s77
    %p86 = scmp.eq.s32.totalorder %s19, 0
    %p87 = por %p85, %p86
    %p88 = scmp.ne.s32.totalorder %s76, %s77
    %p89 = scmp.eq.s32.totalorder %s20, 1
    %p90 = por %p88, %p89
    %p92 = scmp.ne.s32.totalorder %s77, %s91
    %p93 = scmp.eq.s32.totalorder %s20, 0
    %p94 = por %p92, %p93
    %s96 = sadd.s32 %s95, 1
    %p99 = scmp.eq.s32.totalorder %s14, 1
    %p100 = scmp.ne.s32.totalorder %s95, %s97
    %p101 = scmp.eq.s32.totalorder %s14, 0
    %p102 = por %p100, %p101
    %p103 = scmp.ne.s32.totalorder %s95, %s97
    %p104 = scmp.eq.s32.totalorder %s19, 1
    %p105 = por %p103, %p104
    %p106 = scmp.ne.s32.totalorder %s97, %s98
    %p107 = scmp.eq.s32.totalorder %s19, 0
    %p108 = por %p106, %p107
    %p109 = scmp.ne.s32.totalorder %s97, %s98
    %p110 = scmp.eq.s32.totalorder %s20, 1
    %p111 = por %p109, %p110
    %p113 = scmp.ne.s32.totalorder %s98, %s112
    %p114 = scmp.eq.s32.totalorder %s20, 0
    %p115 = por %p113, %p114
    %s117 = sadd.s32 %s116, 1
    %p120 = scmp.eq.s32.totalorder %s14, 1
    %p121 = scmp.ne.s32.totalorder %s116, %s118
    %p122 = scmp.eq.s32.totalorder %s14, 0
    %p123 = por %p121, %p122
    %p124 = scmp.ne.s32.totalorder %s116, %s118
    %p125 = scmp.eq.s32.totalorder %s19, 1
    %p126 = por %p124, %p125
    %p127 = scmp.ne.s32.totalorder %s118, %s119
    %p128 = scmp.eq.s32.totalorder %s19, 0
    %p129 = por %p127, %p128
    %p130 = scmp.ne.s32.totalorder %s118, %s119
    %p131 = scmp.eq.s32.totalorder %s20, 1
    %p132 = por %p130, %p131
    %p134 = scmp.ne.s32.totalorder %s119, %s133
    %p135 = scmp.eq.s32.totalorder %s20, 0
    %p136 = por %p134, %p135
    %s138 = sadd.s32 %s137, 1
    %p141 = scmp.eq.s32.totalorder %s14, 1
    %p142 = scmp.ne.s32.totalorder %s137, %s139
    %p143 = scmp.eq.s32.totalorder %s14, 0
    %p144 = por %p142, %p143
    %p145 = scmp.ne.s32.totalorder %s137, %s139
    %p146 = scmp.eq.s32.totalorder %s19, 1
    %p147 = por %p145, %p146
    %p148 = scmp.ne.s32.totalorder %s139, %s140
    %p149 = scmp.eq.s32.totalorder %s19, 0
    %p150 = por %p148, %p149
    %p151 = scmp.ne.s32.totalorder %s139, %s140
    %p152 = scmp.eq.s32.totalorder %s20, 1
    %p153 = por %p151, %p152
    %p155 = scmp.ne.s32.totalorder %s140, %s154
    %p156 = scmp.eq.s32.totalorder %s20, 0
    %p157 = por %p155, %p156
    %s159 = sadd.s32 %s158, 1
    %p162 = scmp.eq.s32.totalorder %s14, 1
    %p163 = scmp.ne.s32.totalorder %s158, %s160
    %p164 = scmp.eq.s32.totalorder %s14, 0
    %p165 = por %p163, %p164
    %p166 = scmp.ne.s32.totalorder %s158, %s160
    %p167 = scmp.eq.s32.totalorder %s19, 1
    %p168 = por %p166, %p167
    %p169 = scmp.ne.s32.totalorder %s160, %s161
    %p170 = scmp.eq.s32.totalorder %s19, 0
    %p171 = por %p169, %p170
    %p172 = scmp.ne.s32.totalorder %s160, %s161
    %p173 = scmp.eq.s32.totalorder %s20, 1
    %p174 = por %p172, %p173
    %p176 = scmp.ne.s32.totalorder %s161, %s175
    %p177 = scmp.eq.s32.totalorder %s20, 0
    %p178 = por %p176, %p177
    %s180 = sadd.s32 %s179, 1
    %p183 = scmp.eq.s32.totalorder %s14, 1
    %p184 = scmp.ne.s32.totalorder %s179, %s181
    %p185 = scmp.eq.s32.totalorder %s14, 0
    %p186 = por %p184, %p185
    %p187 = scmp.ne.s32.totalorder %s179, %s181
    %p188 = scmp.eq.s32.totalorder %s19, 1
    %p189 = por %p187, %p188
    %p190 = scmp.ne.s32.totalorder %s181, %s182
    %p191 = scmp.eq.s32.totalorder %s19, 0
    %p192 = por %p190, %p191
    %p193 = scmp.ne.s32.totalorder %s181, %s182
    %p194 = scmp.eq.s32.totalorder %s20, 1
    %p195 = por %p193, %p194
    %p197 = scmp.ne.s32.totalorder %s182, %s196
    %p198 = scmp.eq.s32.totalorder %s20, 0
    %p199 = por %p197, %p198
    %s200 = ssub.s32 %s14, %s21
    %p201 = scmp.eq.s32.totalorder %s200, 0
    %s203 = sadd.s32 %s202, 1
    %s204 = scalar_select %p201, %s202, %s203
    %p207 = pneg %p201
    %p208 = scmp.eq.s32.totalorder %s14, 1
    %p209 = por %p207, %p208
    %p210 = scmp.ne.s32.totalorder %s202, %s205
    %p211 = scmp.eq.s32.totalorder %s14, 0
    %p212 = por %p210, %p211
    %p213 = scmp.ne.s32.totalorder %s202, %s205
    %p214 = scmp.eq.s32.totalorder %s19, 1
    %p215 = por %p213, %p214
    %p216 = scmp.ne.s32.totalorder %s205, %s206
    %p217 = scmp.eq.s32.totalorder %s19, 0
    %p218 = por %p216, %p217
    %p219 = scmp.ne.s32.totalorder %s205, %s206
    %p220 = scmp.eq.s32.totalorder %s20, 1
    %p221 = por %p219, %p220
    %p223 = scmp.ne.s32.totalorder %s206, %s222
    %p224 = scmp.eq.s32.totalorder %s20, 0
    %p225 = por %p223, %p224
    %p226 = scmp.le.s32.totalorder 1, %s14
    %p227 = scmp.lt.s32.totalorder %s14, 3
    %p228 = pnand %p226, %p227
    %p229 = pneg %p228
    // Predicated region
    $region9: #{triplet_vgfm_forward.12} parent=5 // pred_check
      _
    $region10: #{triplet_vgfm_forward.12} parent=5 // pred_check_branch
      %231 = sbr.rel (%p228) target = $region12
    $region11: #{triplet_vgfm_forward.12} parent=5 // pred_region
      %s232 = ssub.s32 %s14, 1
      // Predicated region
      $region13: #{triplet_vgfm_forward.12} parent=11 // pred_check
        %p233 = pneg %p87
      $region14: #{triplet_vgfm_forward.12} parent=11 // pred_check_branch
        %235 = sbr.rel (%p233) target = $region16
      $region15: #{triplet_vgfm_forward.12} parent=11 // pred_region
        _
      $region16: #{triplet_vgfm_forward.12} parent=11 // pred_fallthru
        _
      // Predicated region
      $region17: #{triplet_vgfm_forward.12} parent=11 // pred_check
        %p236 = pneg %p108
      $region18: #{triplet_vgfm_forward.12} parent=11 // pred_check_branch
        %238 = sbr.rel (%p236) target = $region20
      $region19: #{triplet_vgfm_forward.12} parent=11 // pred_region
        _
      $region20: #{triplet_vgfm_forward.12} parent=11 // pred_fallthru
        _
      // Predicated region
      $region21: #{triplet_vgfm_forward.12} parent=11 // pred_check
        %p239 = pneg %p129
      $region22: #{triplet_vgfm_forward.12} parent=11 // pred_check_branch
        %241 = sbr.rel (%p239) target = $region24
      $region23: #{triplet_vgfm_forward.12} parent=11 // pred_region
        _
      $region24: #{triplet_vgfm_forward.12} parent=11 // pred_fallthru
        _
      // Predicated region
      $region25: #{triplet_vgfm_forward.12} parent=11 // pred_check
        %p242 = pneg %p150
      $region26: #{triplet_vgfm_forward.12} parent=11 // pred_check_branch
        %244 = sbr.rel (%p242) target = $region28
      $region27: #{triplet_vgfm_forward.12} parent=11 // pred_region
        _
      $region28: #{triplet_vgfm_forward.12} parent=11 // pred_fallthru
        _
      // Predicated region
      $region29: #{triplet_vgfm_forward.12} parent=11 // pred_check
        %p245 = pneg %p171
      $region30: #{triplet_vgfm_forward.12} parent=11 // pred_check_branch
        %247 = sbr.rel (%p245) target = $region32
      $region31: #{triplet_vgfm_forward.12} parent=11 // pred_region
        _
      $region32: #{triplet_vgfm_forward.12} parent=11 // pred_fallthru
        _
      // Predicated region
      $region33: #{triplet_vgfm_forward.12} parent=11 // pred_check
        %p248 = pneg %p192
      $region34: #{triplet_vgfm_forward.12} parent=11 // pred_check_branch
        %250 = sbr.rel (%p248) target = $region36
      $region35: #{triplet_vgfm_forward.12} parent=11 // pred_region
        _
      $region36: #{triplet_vgfm_forward.12} parent=11 // pred_fallthru
        _
    $region12: #{triplet_vgfm_forward.12} parent=5 // pred_fallthru
      _
    %p251 = scmp.lt.s32.totalorder %s14, 2
    // Predicated region
    $region37: #{triplet_vgfm_forward.12} parent=5 // pred_check
      %p252 = pneg %p251
    $region38: #{triplet_vgfm_forward.12} parent=5 // pred_check_branch
      %254 = sbr.rel (%p252) target = $region40
    $region39: #{triplet_vgfm_forward.12} parent=5 // pred_region
      // Predicated region
      $region41: #{triplet_vgfm_forward.12} parent=39 // pred_check
        %p255 = pneg %p34
      $region42: #{triplet_vgfm_forward.12} parent=39 // pred_check_branch
        %257 = sbr.rel (%p255) target = $region44
      $region43: #{triplet_vgfm_forward.12} parent=39 // pred_region
        %p258 = scmp.lt.s32.totalorder %s14, 1
        %s259 = scalar_select %p258, %s14, 1
        %s260 = smul.addr %s259, 4
        %s261 = scalar_lea.vmem %s0, %s260
      $region44: #{triplet_vgfm_forward.12} parent=39 // pred_fallthru
        _
      // Predicated region
      $region45: #{triplet_vgfm_forward.12} parent=39 // pred_check
        %p262 = pneg %p60
      $region46: #{triplet_vgfm_forward.12} parent=39 // pred_check_branch
        %264 = sbr.rel (%p262) target = $region48
      $region47: #{triplet_vgfm_forward.12} parent=39 // pred_region
        %p265 = scmp.lt.s32.totalorder %s14, 1
        %s266 = scalar_select %p265, %s14, 1
        %s267 = smul.addr %s266, 4
        %s268 = scalar_lea.vmem %s1, %s267
      $region48: #{triplet_vgfm_forward.12} parent=39 // pred_fallthru
        _
    $region40: #{triplet_vgfm_forward.12} parent=5 // pred_fallthru
      _
    %p269 = scmp.le.s32.totalorder 1, %s14
    %p270 = scmp.lt.s32.totalorder %s14, 3
    %p271 = pnand %p269, %p270
    %p272 = pneg %p271
    // Predicated region
    $region49: #{triplet_vgfm_forward.12} parent=5 // pred_check
      _
    $region50: #{triplet_vgfm_forward.12} parent=5 // pred_check_branch
      %274 = sbr.rel (%p271) target = $region52
    $region51: #{triplet_vgfm_forward.12} parent=5 // pred_region
      %s275 = ssub.s32 %s14, 1
      %p276 = scmp.lt.s32.totalorder %s19, 1
      %s277 = scalar_select %p276, %s19, 1
      %s278 = smul.addr %s277, 4
      %s279 = scalar_lea.vmem %s0, %s278
      %p280 = pneg %p40
      %p281 = pneg %p37
      %p282 = scmp.lt.s32.totalorder %s19, 1
      %s283 = scalar_select %p282, %s19, 1
      %s284 = smul.addr %s283, 4
      %s285 = scalar_lea.vmem %s1, %s284
      %p286 = pneg %p66
      %p287 = pneg %p63
      %p288 = pneg %p87
      %p289 = pneg %p84
      %p290 = pneg %p108
      %p291 = pneg %p105
      %p292 = pneg %p129
      %p293 = pneg %p126
      %p294 = pneg %p150
      %p295 = pneg %p147
      %p296 = pneg %p171
      %p297 = pneg %p168
      %p298 = pneg %p192
      %p299 = pneg %p189
      %p300 = pneg %p218
      %p301 = pneg %p215
      %p302 = scmp.lt.s32.totalorder %s19, 1
      %s303 = scalar_select %p302, %s19, 1
      %s304 = smul.addr %s303, 4
      %s305 = scalar_lea.vmem %s8, %s304
      %p306 = scmp.lt.s32.totalorder %s19, 1
      %s307 = scalar_select %p306, %s19, 1
      %s308 = smul.addr %s307, 4
      %s309 = scalar_lea.vmem %s0, %s308
      %p310 = scmp.lt.s32.totalorder %s19, 1
      %s311 = scalar_select %p310, %s19, 1
      %s312 = smul.addr %s311, 4
      %s313 = scalar_lea.vmem %s1, %s312
      %p314 = scmp.lt.s32.totalorder %s19, 1
      %s315 = scalar_select %p314, %s19, 1
      %s316 = smul.addr %s315, 4
      %s317 = scalar_lea.vmem %s8, %s316
      %v319 = vld [vmem:[%s309] sm:$0xf]
      %v320 = vld [vmem:[%s313] sm:$0xf]
      %v321 = vld [vmem:[%s2] sm:$0xff]
      %v322 = vld [vmem:[%s2 + $0x8] sm:$0xff]
      %v323 = vld [vmem:[%s2 + $0x10] sm:$0xff]
      %v324 = vld [vmem:[%s2 + $0x18] sm:$0xff]
      %v325 = vld [vmem:[%s2 + $0x20] sm:$0xff]
      %v326 = vld [vmem:[%s2 + $0x28] sm:$0xff]
      %v327 = vld [vmem:[%s2 + $0x30] sm:$0xff]
      %v328 = vld [vmem:[%s2 + $0x38] sm:$0xff]
      %v329 = vld [vmem:[%s2 + $0x40] sm:$0xff]
      %v330 = vld [vmem:[%s2 + $0x48] sm:$0xff]
      %v331 = vld [vmem:[%s2 + $0x50] sm:$0xff]
      %v332 = vld [vmem:[%s2 + $0x58] sm:$0xff]
      %v333 = vld [vmem:[%s2 + $0x60] sm:$0xff]
      %v334 = vld [vmem:[%s2 + $0x68] sm:$0xff]
      %v335 = vld [vmem:[%s2 + $0x70] sm:$0xff]
      %v336 = vld [vmem:[%s2 + $0x78] sm:$0xff]
      %v337 = vld [vmem:[%s2 + $0x80] sm:$0xff]
      %v338 = vld [vmem:[%s2 + $0x88] sm:$0xff]
      %v339 = vld [vmem:[%s2 + $0x90] sm:$0xff]
      %v340 = vld [vmem:[%s2 + $0x98] sm:$0xff]
      %v341 = vld [vmem:[%s2 + $0xa0] sm:$0xff]
      %v342 = vld [vmem:[%s2 + $0xa8] sm:$0xff]
      %v343 = vld [vmem:[%s2 + $0xb0] sm:$0xff]
      %v344 = vld [vmem:[%s2 + $0xb8] sm:$0xff]
      %v345 = vld [vmem:[%s2 + $0xc0] sm:$0xff]
      %v346 = vld [vmem:[%s2 + $0xc8] sm:$0xff]
      %v347 = vld [vmem:[%s2 + $0xd0] sm:$0xff]
      %v348 = vld [vmem:[%s2 + $0xd8] sm:$0xff]
      %v349 = vld [vmem:[%s2 + $0xe0] sm:$0xff]
      %v350 = vld [vmem:[%s2 + $0xe8] sm:$0xff]
      %v351 = vld [vmem:[%s2 + $0xf0] sm:$0xff]
      %v352 = vld [vmem:[%s2 + $0xf8] sm:$0xff]
      %v353 = vld [vmem:[%s3] sm:$0xf]
      %v354 = vld [vmem:[%s3 + $0x4] sm:$0xf]
      %v355 = vld [vmem:[%s3 + $0x8] sm:$0xf]
      %v356 = vld [vmem:[%s3 + $0xc] sm:$0xf]
      %v357 = vld [vmem:[%s3 + $0x10] sm:$0xf]
      %v358 = vld [vmem:[%s3 + $0x14] sm:$0xf]
      %v359 = vld [vmem:[%s3 + $0x18] sm:$0xf]
      %v360 = vld [vmem:[%s3 + $0x1c] sm:$0xf]
      %v361 = vld [vmem:[%s3 + $0x20] sm:$0xf]
      %v362 = vld [vmem:[%s3 + $0x24] sm:$0xf]
      %v363 = vld [vmem:[%s3 + $0x28] sm:$0xf]
      %v364 = vld [vmem:[%s3 + $0x2c] sm:$0xf]
      %v365 = vld [vmem:[%s3 + $0x30] sm:$0xf]
      %v366 = vld [vmem:[%s3 + $0x34] sm:$0xf]
      %v367 = vld [vmem:[%s3 + $0x38] sm:$0xf]
      %v368 = vld [vmem:[%s3 + $0x3c] sm:$0xf]
      %v369 = vld [vmem:[%s4] sm:$0xf]
      %v370 = vld [vmem:[%s4 + $0x4] sm:$0xf]
      %v371 = vld [vmem:[%s4 + $0x8] sm:$0xf]
      %v372 = vld [vmem:[%s4 + $0xc] sm:$0xf]
      %v373 = vld [vmem:[%s4 + $0x10] sm:$0xf]
      %v374 = vld [vmem:[%s4 + $0x14] sm:$0xf]
      %v375 = vld [vmem:[%s4 + $0x18] sm:$0xf]
      %v376 = vld [vmem:[%s4 + $0x1c] sm:$0xf]
      %v377 = vld [vmem:[%s4 + $0x20] sm:$0xf]
      %v378 = vld [vmem:[%s4 + $0x24] sm:$0xf]
      %v379 = vld [vmem:[%s4 + $0x28] sm:$0xf]
      %v380 = vld [vmem:[%s4 + $0x2c] sm:$0xf]
      %v381 = vld [vmem:[%s4 + $0x30] sm:$0xf]
      %v382 = vld [vmem:[%s4 + $0x34] sm:$0xf]
      %v383 = vld [vmem:[%s4 + $0x38] sm:$0xf]
      %v384 = vld [vmem:[%s4 + $0x3c] sm:$0xf]
      %v385 = vld [vmem:[%s5] sm:$0x3]
      %v386 = vld [vmem:[%s6] sm:$0x1]
      %v387 = vld [vmem:[%s7] sm:$0x1]
      %v389 = vlaneseq
      %v390 = vshrl.u32 %v389, 7
      %v391 = vsub.s32 0, %v390
      %v392 = vrot.slane %v385, %v391
      %v393 = vlaneseq
      %v394 = vshrl.u32 %v393, 7
      %v395 = vsub.s32 1, %v394
      %v396 = vrot.slane %v385, %v395
      %v431 = vunpack.c.l.b16 %v321
      %v432 = vunpack.c.h.b16 %v321
      %v433 = vunpack.c.l.b16 %v322
      %v434 = vunpack.c.h.b16 %v322
      %v435 = vunpack.c.l.b16 %v323
      %v436 = vunpack.c.h.b16 %v323
      %v437 = vunpack.c.l.b16 %v324
      %v438 = vunpack.c.h.b16 %v324
      %v439 = vunpack.c.l.b16 %v325
      %v440 = vunpack.c.h.b16 %v325
      %v441 = vunpack.c.l.b16 %v326
      %v442 = vunpack.c.h.b16 %v326
      %v443 = vunpack.c.l.b16 %v327
      %v444 = vunpack.c.h.b16 %v327
      %v445 = vunpack.c.l.b16 %v328
      %v446 = vunpack.c.h.b16 %v328
      %v447 = vunpack.c.l.b16 %v329
      %v448 = vunpack.c.h.b16 %v329
      %v449 = vunpack.c.l.b16 %v330
      %v450 = vunpack.c.h.b16 %v330
      %v451 = vunpack.c.l.b16 %v331
      %v452 = vunpack.c.h.b16 %v331
      %v453 = vunpack.c.l.b16 %v332
      %v454 = vunpack.c.h.b16 %v332
      %v455 = vunpack.c.l.b16 %v333
      %v456 = vunpack.c.h.b16 %v333
      %v457 = vunpack.c.l.b16 %v334
      %v458 = vunpack.c.h.b16 %v334
      %v459 = vunpack.c.l.b16 %v335
      %v460 = vunpack.c.h.b16 %v335
      %v461 = vunpack.c.l.b16 %v336
      %v462 = vunpack.c.h.b16 %v336
      %v463 = vunpack.c.l.b16 %v337
      %v464 = vunpack.c.h.b16 %v337
      %v465 = vunpack.c.l.b16 %v338
      %v466 = vunpack.c.h.b16 %v338
      %v467 = vunpack.c.l.b16 %v339
      %v468 = vunpack.c.h.b16 %v339
      %v469 = vunpack.c.l.b16 %v340
      %v470 = vunpack.c.h.b16 %v340
      %v471 = vunpack.c.l.b16 %v341
      %v472 = vunpack.c.h.b16 %v341
      %v473 = vunpack.c.l.b16 %v342
      %v474 = vunpack.c.h.b16 %v342
      %v475 = vunpack.c.l.b16 %v343
      %v476 = vunpack.c.h.b16 %v343
      %v477 = vunpack.c.l.b16 %v344
      %v478 = vunpack.c.h.b16 %v344
      %v479 = vunpack.c.l.b16 %v345
      %v480 = vunpack.c.h.b16 %v345
      %v481 = vunpack.c.l.b16 %v346
      %v482 = vunpack.c.h.b16 %v346
      %v483 = vunpack.c.l.b16 %v347
      %v484 = vunpack.c.h.b16 %v347
      %v485 = vunpack.c.l.b16 %v348
      %v486 = vunpack.c.h.b16 %v348
      %v487 = vunpack.c.l.b16 %v349
      %v488 = vunpack.c.h.b16 %v349
      %v489 = vunpack.c.l.b16 %v350
      %v490 = vunpack.c.h.b16 %v350
      %v491 = vunpack.c.l.b16 %v351
      %v492 = vunpack.c.h.b16 %v351
      %v493 = vunpack.c.l.b16 %v352
      %v494 = vunpack.c.h.b16 %v352
      %v495 = vpack.c.b16 %v433, %v431
      %v496 = vpack.c.b16 %v434, %v432
      %v497 = vpack.c.b16 %v437, %v435
      %v498 = vpack.c.b16 %v438, %v436
      %v499 = vpack.c.b16 %v441, %v439
      %v500 = vpack.c.b16 %v442, %v440
      %v501 = vpack.c.b16 %v445, %v443
      %v502 = vpack.c.b16 %v446, %v444
      %v503 = vpack.c.b16 %v449, %v447
      %v504 = vpack.c.b16 %v450, %v448
      %v505 = vpack.c.b16 %v453, %v451
      %v506 = vpack.c.b16 %v454, %v452
      %v507 = vpack.c.b16 %v457, %v455
      %v508 = vpack.c.b16 %v458, %v456
      %v509 = vpack.c.b16 %v461, %v459
      %v510 = vpack.c.b16 %v462, %v460
      %v511 = vpack.c.b16 %v465, %v463
      %v512 = vpack.c.b16 %v466, %v464
      %v513 = vpack.c.b16 %v469, %v467
      %v514 = vpack.c.b16 %v470, %v468
      %v515 = vpack.c.b16 %v473, %v471
      %v516 = vpack.c.b16 %v474, %v472
      %v517 = vpack.c.b16 %v477, %v475
      %v518 = vpack.c.b16 %v478, %v476
      %v519 = vpack.c.b16 %v481, %v479
      %v520 = vpack.c.b16 %v482, %v480
      %v521 = vpack.c.b16 %v485, %v483
      %v522 = vpack.c.b16 %v486, %v484
      %v523 = vpack.c.b16 %v489, %v487
      %v524 = vpack.c.b16 %v490, %v488
      %v525 = vpack.c.b16 %v493, %v491
      %v526 = vpack.c.b16 %v494, %v492
      %559 = vmatprep.subr.bf16.mxu0 %v496
      %560 = vmatpush1.bf16.msra.mxu0 %v495
      %561 = vmatprep.subr.bf16.mxu0 %v498
      %562 = vmatpush1.bf16.msra.mxu0 %v497
      %563 = vmatprep.subr.bf16.mxu0 %v500
      %564 = vmatpush1.bf16.msra.mxu0 %v499
      %565 = vmatprep.subr.bf16.mxu0 %v502
      %566 = vmatpush1.bf16.msra.mxu0 %v501
      %567 = vmatprep.subr.bf16.mxu0 %v504
      %568 = vmatpush1.bf16.msra.mxu0 %v503
      %569 = vmatprep.subr.bf16.mxu0 %v506
      %570 = vmatpush1.bf16.msra.mxu0 %v505
      %571 = vmatprep.subr.bf16.mxu0 %v508
      %572 = vmatpush1.bf16.msra.mxu0 %v507
      %573 = vmatprep.subr.bf16.mxu0 %v510
      %574 = vmatpush1.bf16.msra.mxu0 %v509
      %575 = vmatprep.subr.bf16.mxu0 %v512
      %576 = vmatpush1.bf16.msra.mxu0 %v511
      %577 = vmatprep.subr.bf16.mxu0 %v514
      %578 = vmatpush1.bf16.msra.mxu0 %v513
      %579 = vmatprep.subr.bf16.mxu0 %v516
      %580 = vmatpush1.bf16.msra.mxu0 %v515
      %581 = vmatprep.subr.bf16.mxu0 %v518
      %582 = vmatpush1.bf16.msra.mxu0 %v517
      %583 = vmatprep.subr.bf16.mxu0 %v520
      %584 = vmatpush1.bf16.msra.mxu0 %v519
      %585 = vmatprep.subr.bf16.mxu0 %v522
      %586 = vmatpush1.bf16.msra.mxu0 %v521
      %587 = vmatprep.subr.bf16.mxu0 %v524
      %588 = vmatpush1.bf16.msra.mxu0 %v523
      %589 = vmatprep.subr.bf16.mxu0 %v526
      %590 = vmatpush1.bf16.msra.mxu0 %v525
      %591 = vmatprep.mubr.bf16.mxu0 %v320
      %592 = vmatmul.mubr.bf16.gmra.mrb[0].mxu0 %v319
      %v593 = vpop.f32.mrb[0].mxu0
      %v594 = vadd.f32 %v392, %v593
      %v595 = vpop.f32.mrb[0].mxu0
      %v596 = vadd.f32 %v396, %v595
      %v597 = vpop.f32.mrb[0].mxu0
      %v598 = vpop.f32.mrb[0].mxu0
      %599 = vdwg.mxu0
      %v601 = vlaneseq
      %v602 = vshrl.u32 %v601, 7
      %v603 = vsub.s32 0, %v602
      %v604 = vrot.slane %v386, %v603
      %v622 = vunpack.c.l.b16 %v353
      %v623 = vunpack.c.l.b16 %v354
      %v624 = vunpack.c.l.b16 %v355
      %v625 = vunpack.c.l.b16 %v356
      %v626 = vunpack.c.l.b16 %v357
      %v627 = vunpack.c.l.b16 %v358
      %v628 = vunpack.c.l.b16 %v359
      %v629 = vunpack.c.l.b16 %v360
      %v630 = vunpack.c.l.b16 %v361
      %v631 = vunpack.c.l.b16 %v362
      %v632 = vunpack.c.l.b16 %v363
      %v633 = vunpack.c.l.b16 %v364
      %v634 = vunpack.c.l.b16 %v365
      %v635 = vunpack.c.l.b16 %v366
      %v636 = vunpack.c.l.b16 %v367
      %v637 = vunpack.c.l.b16 %v368
      %v638 = vpack.c.b16 %v623, %v622
      %v639 = vpack.c.b16 %v625, %v624
      %v640 = vpack.c.b16 %v627, %v626
      %v641 = vpack.c.b16 %v629, %v628
      %v642 = vpack.c.b16 %v631, %v630
      %v643 = vpack.c.b16 %v633, %v632
      %v644 = vpack.c.b16 %v635, %v634
      %v645 = vpack.c.b16 %v637, %v636
      %654 = vmatprep.subr.bf16.mxu0 0
      %655 = vmatpush1.bf16.msra.mxu0 %v638
      %656 = vmatprep.subr.bf16.mxu0 0
      %657 = vmatpush1.bf16.msra.mxu0 %v639
      %658 = vmatprep.subr.bf16.mxu0 0
      %659 = vmatpush1.bf16.msra.mxu0 %v640
      %660 = vmatprep.subr.bf16.mxu0 0
      %661 = vmatpush1.bf16.msra.mxu0 %v641
      %662 = vmatprep.subr.bf16.mxu0 0
      %663 = vmatpush1.bf16.msra.mxu0 %v642
      %664 = vmatprep.subr.bf16.mxu0 0
      %665 = vmatpush1.bf16.msra.mxu0 %v643
      %666 = vmatprep.subr.bf16.mxu0 0
      %667 = vmatpush1.bf16.msra.mxu0 %v644
      %668 = vmatprep.subr.bf16.mxu0 0
      %669 = vmatpush1.bf16.msra.mxu0 %v645
      %670 = vmatprep.subr.bf16.mxu0 0
      %671 = vmatpush1.bf16.msra.mxu0 0
      %672 = vmatprep.subr.bf16.mxu0 0
      %673 = vmatpush1.bf16.msra.mxu0 0
      %674 = vmatprep.subr.bf16.mxu0 0
      %675 = vmatpush1.bf16.msra.mxu0 0
      %676 = vmatprep.subr.bf16.mxu0 0
      %677 = vmatpush1.bf16.msra.mxu0 0
      %678 = vmatprep.subr.bf16.mxu0 0
      %679 = vmatpush1.bf16.msra.mxu0 0
      %680 = vmatprep.subr.bf16.mxu0 0
      %681 = vmatpush1.bf16.msra.mxu0 0
      %682 = vmatprep.subr.bf16.mxu0 0
      %683 = vmatpush1.bf16.msra.mxu0 0
      %684 = vmatprep.subr.bf16.mxu0 0
      %685 = vmatpush1.bf16.msra.mxu0 0
      %686 = vmatprep.mubr.bf16.mxu0 0
      %687 = vmatmul.mubr.bf16.gmra.mrb[0].mxu0 %v319
      %v688 = vpop.f32.mrb[0].mxu0
      %v689 = vadd.f32 %v604, %v688
      %v690 = vpop.f32.mrb[0].mxu0
      %v691 = vpop.f32.mrb[0].mxu0
      %v692 = vpop.f32.mrb[0].mxu0
      %693 = vdwg.mxu0
      %v695 = vlaneseq
      %v696 = vshrl.u32 %v695, 7
      %v697 = vsub.s32 0, %v696
      %v698 = vrot.slane %v387, %v697
      %v716 = vunpack.c.l.b16 %v369
      %v717 = vunpack.c.l.b16 %v370
      %v718 = vunpack.c.l.b16 %v371
      %v719 = vunpack.c.l.b16 %v372
      %v720 = vunpack.c.l.b16 %v373
      %v721 = vunpack.c.l.b16 %v374
      %v722 = vunpack.c.l.b16 %v375
      %v723 = vunpack.c.l.b16 %v376
      %v724 = vunpack.c.l.b16 %v377
      %v725 = vunpack.c.l.b16 %v378
      %v726 = vunpack.c.l.b16 %v379
      %v727 = vunpack.c.l.b16 %v380
      %v728 = vunpack.c.l.b16 %v381
      %v729 = vunpack.c.l.b16 %v382
      %v730 = vunpack.c.l.b16 %v383
      %v731 = vunpack.c.l.b16 %v384
      %v732 = vpack.c.b16 %v717, %v716
      %v733 = vpack.c.b16 %v719, %v718
      %v734 = vpack.c.b16 %v721, %v720
      %v735 = vpack.c.b16 %v723, %v722
      %v736 = vpack.c.b16 %v725, %v724
      %v737 = vpack.c.b16 %v727, %v726
      %v738 = vpack.c.b16 %v729, %v728
      %v739 = vpack.c.b16 %v731, %v730
      %748 = vmatprep.subr.bf16.mxu0 0
      %749 = vmatpush1.bf16.msra.mxu0 %v732
      %750 = vmatprep.subr.bf16.mxu0 0
      %751 = vmatpush1.bf16.msra.mxu0 %v733
      %752 = vmatprep.subr.bf16.mxu0 0
      %753 = vmatpush1.bf16.msra.mxu0 %v734
      %754 = vmatprep.subr.bf16.mxu0 0
      %755 = vmatpush1.bf16.msra.mxu0 %v735
      %756 = vmatprep.subr.bf16.mxu0 0
      %757 = vmatpush1.bf16.msra.mxu0 %v736
      %758 = vmatprep.subr.bf16.mxu0 0
      %759 = vmatpush1.bf16.msra.mxu0 %v737
      %760 = vmatprep.subr.bf16.mxu0 0
      %761 = vmatpush1.bf16.msra.mxu0 %v738
      %762 = vmatprep.subr.bf16.mxu0 0
      %763 = vmatpush1.bf16.msra.mxu0 %v739
      %764 = vmatprep.subr.bf16.mxu0 0
      %765 = vmatpush1.bf16.msra.mxu0 0
      %766 = vmatprep.subr.bf16.mxu0 0
      %767 = vmatpush1.bf16.msra.mxu0 0
      %768 = vmatprep.subr.bf16.mxu0 0
      %769 = vmatpush1.bf16.msra.mxu0 0
      %770 = vmatprep.subr.bf16.mxu0 0
      %771 = vmatpush1.bf16.msra.mxu0 0
      %772 = vmatprep.subr.bf16.mxu0 0
      %773 = vmatpush1.bf16.msra.mxu0 0
      %774 = vmatprep.subr.bf16.mxu0 0
      %775 = vmatpush1.bf16.msra.mxu0 0
      %776 = vmatprep.subr.bf16.mxu0 0
      %777 = vmatpush1.bf16.msra.mxu0 0
      %778 = vmatprep.subr.bf16.mxu0 0
      %779 = vmatpush1.bf16.msra.mxu0 0
      %780 = vmatprep.mubr.bf16.mxu0 0
      %781 = vmatmul.mubr.bf16.gmra.mrb[0].mxu0 %v320
      %v782 = vpop.f32.mrb[0].mxu0
      %v783 = vadd.f32 %v698, %v782
      %v784 = vpop.f32.mrb[0].mxu0
      %v785 = vpop.f32.mrb[0].mxu0
      %v786 = vpop.f32.mrb[0].mxu0
      %787 = vdwg.mxu0
      %v788 = vxor.u32 %v594, 2147483648
      %v789 = vmul.f32 %v788, 1.442695
      %v790 = vpow.pop %v789
      %v791 = vadd.f32 %v790, 1.0
      %v792 = vrcp.pop %v791
      %v793 = vmul.f32 1.0, %v792
      %v794 = vxor.u32 %v596, 2147483648
      %v795 = vmul.f32 %v794, 1.442695
      %v796 = vpow.pop %v795
      %v797 = vadd.f32 %v796, 1.0
      %v798 = vrcp.pop %v797
      %v799 = vmul.f32 1.0, %v798
      %v800 = vmul.f32 %v793, %v783
      %v801 = vadd.f32 %v689, %v800
      %v802 = vtanh.pop %v801
      %v803 = vsub.f32 1.0, %v799
      %v804 = vmul.f32 %v803, %v802
      %v805 = vunpack.c.l.bf16 %v320
      %v806 = vmul.f32 %v799, %v805
      %v807 = vadd.f32 %v804, %v806
      %v808 = vpack.c.bf16 %v807, %v807
      %809 = vst [vmem:[%s317] sm:$0xf] %v808
      %p810 = scmp.lt.s32.totalorder %s19, 1
      %s811 = scalar_select %p810, %s19, 1
      %s812 = smul.addr %s811, 4
      %s813 = scalar_lea.vmem %s8, %s812
      // Predicated region
      $region53: #{triplet_vgfm_forward.12} parent=51 // pred_check
        %p814 = pneg %p215
      $region54: #{triplet_vgfm_forward.12} parent=51 // pred_check_branch
        %816 = sbr.rel (%p814) target = $region56
      $region55: #{triplet_vgfm_forward.12} parent=51 // pred_region
        _
      $region56: #{triplet_vgfm_forward.12} parent=51 // pred_fallthru
        _
    $region52: #{triplet_vgfm_forward.12} parent=5 // pred_fallthru
      _
    %p817 = scmp.le.s32.totalorder 2, %s14
    // Predicated region
    $region57: #{triplet_vgfm_forward.12} parent=5 // pred_check
      %p818 = pneg %p817
    $region58: #{triplet_vgfm_forward.12} parent=5 // pred_check_branch
      %820 = sbr.rel (%p818) target = $region60
    $region59: #{triplet_vgfm_forward.12} parent=5 // pred_region
      %s821 = ssub.s32 %s14, 2
      // Predicated region
      $region61: #{triplet_vgfm_forward.12} parent=59 // pred_check
        %p822 = pneg %p221
      $region62: #{triplet_vgfm_forward.12} parent=59 // pred_check_branch
        %824 = sbr.rel (%p822) target = $region64
      $region63: #{triplet_vgfm_forward.12} parent=59 // pred_region
        %p825 = scmp.lt.s32.totalorder %s20, 1
        %s826 = scalar_select %p825, %s20, 1
        %s827 = smul.addr %s826, 4
        %s828 = scalar_lea.vmem %s8, %s827
      $region64: #{triplet_vgfm_forward.12} parent=59 // pred_fallthru
        _
    $region60: #{triplet_vgfm_forward.12} parent=5 // pred_fallthru
      _
  $region6: #{triplet_vgfm_forward.12} parent=0 // loop_footer
    %s18 = sadd.s32 1, %s14
  $region7: #{triplet_vgfm_forward.12} parent=0 // loop_footer_branch
    %13 = sbr.rel target = $region3
  $region8: #{triplet_vgfm_forward.12} parent=0 // loop_exit
    _

// kernel: triplet_vgfm_forward.15
$region0: #{triplet_vgfm_forward.15}
  #allocation0 [shape = 'u32[]', space=smem, size = 0x4, offset = 0x4, fixed_abs, tag = 'smem constant byte address 0x4 - core index']
  #allocation1 [shape = 'u32[144,128]{1,0:T(1,128)}', space=vmem, size = 0x12000, scoped, tag = 'internal scratch']
  %s0 = inlined_call_operand.vmem [shape: bf16[16,128], index: 0, kind: input, shape index: {}]
  %s1 = inlined_call_operand.vmem [shape: bf16[16,128], index: 1, kind: input, shape index: {}]
  %s2 = inlined_call_operand.vmem [shape: bf16[16,128], index: 2, kind: input, shape index: {}, may-alias: {2,15}]
  %s3 = inlined_call_operand.vmem [shape: bf16[16,128], index: 3, kind: input, shape index: {}]
  %s4 = inlined_call_operand.vmem [shape: bf16[16,128], index: 4, kind: input, shape index: {}]
  %s5 = inlined_call_operand.vmem [shape: f32[8,128], index: 5, kind: input, shape index: {}]
  %s6 = inlined_call_operand.vmem [shape: f32[8,128], index: 6, kind: input, shape index: {}]
  %s7 = inlined_call_operand.vmem [shape: f32[8], index: 7, kind: input, shape index: {}]
  %s8 = inlined_call_operand.vmem [shape: bf16[256,256], index: 8, kind: input, shape index: {}]
  %s9 = inlined_call_operand.vmem [shape: bf16[128,128], index: 9, kind: input, shape index: {}]
  %s10 = inlined_call_operand.vmem [shape: bf16[128,128], index: 10, kind: input, shape index: {}]
  %s11 = inlined_call_operand.vmem [shape: f32[1,256], index: 11, kind: input, shape index: {}]
  %s12 = inlined_call_operand.vmem [shape: f32[1,128], index: 12, kind: input, shape index: {}]
  %s13 = inlined_call_operand.vmem [shape: f32[1,128], index: 13, kind: input, shape index: {}]
  %s14 = inlined_call_operand.vmem [shape: bf16[16,128], index: 14, kind: output, shape index: {0}]
  %s15 = inlined_call_operand.vmem [shape: bf16[16,128], index: 15, kind: output, shape index: {1}, may-alias: {2,15}]
  %16 = xla_tuple %s14, %s15
  %s17 = sld [smem:[#allocation0]]
  $region101: #{triplet_vgfm_forward.15} parent=0
    _
  %s19 = ssub.s32 1, %s17
  %s20 = scalar_select 0, %s19, %s17
  $region1: #{triplet_vgfm_forward.15} parent=0
    #allocation2 [shape = 'u8[512]{0}', space=smem, size = 0x200, scoped, tag = 'input window, operand 7, single buffered']
    #allocation3 [shape = 's32[2]{0}', space=sflag, size = 0x8, scoped, tag = 'scoped memory for triplet_vgfm_forward.15']
    %21 = vsyncpa [#allocation3], 0
    loop: start=0, step=1, limit=4
    $region2: #{triplet_vgfm_forward.15} parent=1 // loop_pre_header
      _
    $region3: #{triplet_vgfm_forward.15} parent=1 // loop_header
      %s23 = sphi 0, %s27
      %p24 = scmp.ge.s32.totalorder %s23, 4
      %s33 = sphi 0, %s35
      %s36 = sphi 0, %s33
      %s37 = sphi 0, %s36
      %s53 = sphi 0, %s37
      %s59 = sphi 0, %s61
      %s62 = sphi 0, %s59
      %s63 = sphi 0, %s62
      %s79 = sphi 0, %s63
      %s85 = sphi 0, %s87
      %s88 = sphi 0, %s85
      %s89 = sphi 0, %s88
      %s105 = sphi 0, %s89
      %s111 = sphi 0, %s113
      %s114 = sphi 0, %s111
      %s115 = sphi 0, %s114
      %s131 = sphi 0, %s115
      %s137 = sphi 0, %s139
      %s140 = sphi 0, %s137
      %s141 = sphi 0, %s140
      %s157 = sphi 0, %s141
      %s161 = sphi 0, %s161
      %s163 = sphi 0, %s161
      %s164 = sphi 0, %s163
      %s178 = sphi 0, %s164
      %s182 = sphi 0, %s182
      %s184 = sphi 0, %s182
      %s185 = sphi 0, %s184
      %s199 = sphi 0, %s185
      %s203 = sphi 0, %s203
      %s205 = sphi 0, %s203
      %s206 = sphi 0, %s205
      %s220 = sphi 0, %s206
      %s224 = sphi 0, %s224
      %s226 = sphi 0, %s224
      %s227 = sphi 0, %s226
      %s241 = sphi 0, %s227
      %s245 = sphi 0, %s245
      %s247 = sphi 0, %s245
      %s248 = sphi 0, %s247
      %s262 = sphi 0, %s248
      %s266 = sphi 0, %s266
      %s268 = sphi 0, %s266
      %s269 = sphi 0, %s268
      %s283 = sphi 0, %s269
      %s287 = sphi 0, %s287
      %s289 = sphi 0, %s287
      %s290 = sphi 0, %s289
      %s304 = sphi 0, %s290
      %s308 = sphi 0, %s308
      %s310 = sphi 0, %s308
      %s311 = sphi 0, %s310
      %s325 = sphi 0, %s311
      %s329 = sphi 0, %s329
      %s331 = sphi 0, %s329
      %s332 = sphi 0, %s331
      %s346 = sphi 0, %s332
      %s352 = sphi 0, %s354
      %s355 = sphi 0, %s352
      %s356 = sphi 0, %s355
      %s372 = sphi 0, %s356
      %s378 = sphi 0, %s380
      %s381 = sphi 0, %s378
      %s382 = sphi 0, %s381
      %s398 = sphi 0, %s382
    $region4: #{triplet_vgfm_forward.15} parent=1 // loop_header_branch
      %26 = sbr.rel (%p24) target = $region8
    $region5: #{triplet_vgfm_forward.15} parent=1 // loop_body
      %s28 = ssub.s32 %s23, 1
      %s29 = ssub.s32 %s23, 2
      %s30 = sadd.s32 %s23, 1
      %s31 = ssub.s32 %s23, %s30
      %p32 = scmp.eq.s32.totalorder %s31, 0
      %s34 = sadd.s32 %s33, 1
      %s35 = scalar_select %p32, %s33, %s34
      %p38 = pneg %p32
      %p39 = scmp.eq.s32.totalorder %s23, 1
      %p40 = por %p38, %p39
      %p41 = scmp.ne.s32.totalorder %s33, %s36
      %p42 = scmp.eq.s32.totalorder %s23, 0
      %p43 = por %p41, %p42
      %p44 = scmp.ne.s32.totalorder %s33, %s36
      %p45 = scmp.eq.s32.totalorder %s28, 1
      %p46 = por %p44, %p45
      %p47 = scmp.ne.s32.totalorder %s36, %s37
      %p48 = scmp.eq.s32.totalorder %s28, 0
      %p49 = por %p47, %p48
      %p50 = scmp.ne.s32.totalorder %s36, %s37
      %p51 = scmp.eq.s32.totalorder %s29, 1
      %p52 = por %p50, %p51
      %p54 = scmp.ne.s32.totalorder %s37, %s53
      %p55 = scmp.eq.s32.totalorder %s29, 0
      %p56 = por %p54, %p55
      %s57 = ssub.s32 %s23, %s30
      %p58 = scmp.eq.s32.totalorder %s57, 0
      %s60 = sadd.s32 %s59, 1
      %s61 = scalar_select %p58, %s59, %s60
      %p64 = pneg %p58
      %p65 = scmp.eq.s32.totalorder %s23, 1
      %p66 = por %p64, %p65
      %p67 = scmp.ne.s32.totalorder %s59, %s62
      %p68 = scmp.eq.s32.totalorder %s23, 0
      %p69 = por %p67, %p68
      %p70 = scmp.ne.s32.totalorder %s59, %s62
      %p71 = scmp.eq.s32.totalorder %s28, 1
      %p72 = por %p70, %p71
      %p73 = scmp.ne.s32.totalorder %s62, %s63
      %p74 = scmp.eq.s32.totalorder %s28, 0
      %p75 = por %p73, %p74
      %p76 = scmp.ne.s32.totalorder %s62, %s63
      %p77 = scmp.eq.s32.totalorder %s29, 1
      %p78 = por %p76, %p77
      %p80 = scmp.ne.s32.totalorder %s63, %s79
      %p81 = scmp.eq.s32.totalorder %s29, 0
      %p82 = por %p80, %p81
      %s83 = ssub.s32 %s23, %s30
      %p84 = scmp.eq.s32.totalorder %s83, 0
      %s86 = sadd.s32 %s85, 1
      %s87 = scalar_select %p84, %s85, %s86
      %p90 = pneg %p84
      %p91 = scmp.eq.s32.totalorder %s23, 1
      %p92 = por %p90, %p91
      %p93 = scmp.ne.s32.totalorder %s85, %s88
      %p94 = scmp.eq.s32.totalorder %s23, 0
      %p95 = por %p93, %p94
      %p96 = scmp.ne.s32.totalorder %s85, %s88
      %p97 = scmp.eq.s32.totalorder %s28, 1
      %p98 = por %p96, %p97
      %p99 = scmp.ne.s32.totalorder %s88, %s89
      %p100 = scmp.eq.s32.totalorder %s28, 0
      %p101 = por %p99, %p100
      %p102 = scmp.ne.s32.totalorder %s88, %s89
      %p103 = scmp.eq.s32.totalorder %s29, 1
      %p104 = por %p102, %p103
      %p106 = scmp.ne.s32.totalorder %s89, %s105
      %p107 = scmp.eq.s32.totalorder %s29, 0
      %p108 = por %p106, %p107
      %s109 = ssub.s32 %s23, %s30
      %p110 = scmp.eq.s32.totalorder %s109, 0
      %s112 = sadd.s32 %s111, 1
      %s113 = scalar_select %p110, %s111, %s112
      %p116 = pneg %p110
      %p117 = scmp.eq.s32.totalorder %s23, 1
      %p118 = por %p116, %p117
      %p119 = scmp.ne.s32.totalorder %s111, %s114
      %p120 = scmp.eq.s32.totalorder %s23, 0
      %p121 = por %p119, %p120
      %p122 = scmp.ne.s32.totalorder %s111, %s114
      %p123 = scmp.eq.s32.totalorder %s28, 1
      %p124 = por %p122, %p123
      %p125 = scmp.ne.s32.totalorder %s114, %s115
      %p126 = scmp.eq.s32.totalorder %s28, 0
      %p127 = por %p125, %p126
      %p128 = scmp.ne.s32.totalorder %s114, %s115
      %p129 = scmp.eq.s32.totalorder %s29, 1
      %p130 = por %p128, %p129
      %p132 = scmp.ne.s32.totalorder %s115, %s131
      %p133 = scmp.eq.s32.totalorder %s29, 0
      %p134 = por %p132, %p133
      %s135 = ssub.s32 %s23, %s30
      %p136 = scmp.eq.s32.totalorder %s135, 0
      %s138 = sadd.s32 %s137, 1
      %s139 = scalar_select %p136, %s137, %s138
      %p142 = pneg %p136
      %p143 = scmp.eq.s32.totalorder %s23, 1
      %p144 = por %p142, %p143
      %p145 = scmp.ne.s32.totalorder %s137, %s140
      %p146 = scmp.eq.s32.totalorder %s23, 0
      %p147 = por %p145, %p146
      %p148 = scmp.ne.s32.totalorder %s137, %s140
      %p149 = scmp.eq.s32.totalorder %s28, 1
      %p150 = por %p148, %p149
      %p151 = scmp.ne.s32.totalorder %s140, %s141
      %p152 = scmp.eq.s32.totalorder %s28, 0
      %p153 = por %p151, %p152
      %p154 = scmp.ne.s32.totalorder %s140, %s141
      %p155 = scmp.eq.s32.totalorder %s29, 1
      %p156 = por %p154, %p155
      %p158 = scmp.ne.s32.totalorder %s141, %s157
      %p159 = scmp.eq.s32.totalorder %s29, 0
      %p160 = por %p158, %p159
      %s162 = sadd.s32 %s161, 1
      %p165 = scmp.eq.s32.totalorder %s23, 1
      %p166 = scmp.ne.s32.totalorder %s161, %s163
      %p167 = scmp.eq.s32.totalorder %s23, 0
      %p168 = por %p166, %p167
      %p169 = scmp.ne.s32.totalorder %s161, %s163
      %p170 = scmp.eq.s32.totalorder %s28, 1
      %p171 = por %p169, %p170
      %p172 = scmp.ne.s32.totalorder %s163, %s164
      %p173 = scmp.eq.s32.totalorder %s28, 0
      %p174 = por %p172, %p173
      %p175 = scmp.ne.s32.totalorder %s163, %s164
      %p176 = scmp.eq.s32.totalorder %s29, 1
      %p177 = por %p175, %p176
      %p179 = scmp.ne.s32.totalorder %s164, %s178
      %p180 = scmp.eq.s32.totalorder %s29, 0
      %p181 = por %p179, %p180
      %s183 = sadd.s32 %s182, 1
      %p186 = scmp.eq.s32.totalorder %s23, 1
      %p187 = scmp.ne.s32.totalorder %s182, %s184
      %p188 = scmp.eq.s32.totalorder %s23, 0
      %p189 = por %p187, %p188
      %p190 = scmp.ne.s32.totalorder %s182, %s184
      %p191 = scmp.eq.s32.totalorder %s28, 1
      %p192 = por %p190, %p191
      %p193 = scmp.ne.s32.totalorder %s184, %s185
      %p194 = scmp.eq.s32.totalorder %s28, 0
      %p195 = por %p193, %p194
      %p196 = scmp.ne.s32.totalorder %s184, %s185
      %p197 = scmp.eq.s32.totalorder %s29, 1
      %p198 = por %p196, %p197
      %p200 = scmp.ne.s32.totalorder %s185, %s199
      %p201 = scmp.eq.s32.totalorder %s29, 0
      %p202 = por %p200, %p201
      %s204 = sadd.s32 %s203, 1
      %p207 = scmp.eq.s32.totalorder %s23, 1
      %p208 = scmp.ne.s32.totalorder %s203, %s205
      %p209 = scmp.eq.s32.totalorder %s23, 0
      %p210 = por %p208, %p209
      %p211 = scmp.ne.s32.totalorder %s203, %s205
      %p212 = scmp.eq.s32.totalorder %s28, 1
      %p213 = por %p211, %p212
      %p214 = scmp.ne.s32.totalorder %s205, %s206
      %p215 = scmp.eq.s32.totalorder %s28, 0
      %p216 = por %p214, %p215
      %p217 = scmp.ne.s32.totalorder %s205, %s206
      %p218 = scmp.eq.s32.totalorder %s29, 1
      %p219 = por %p217, %p218
      %p221 = scmp.ne.s32.totalorder %s206, %s220
      %p222 = scmp.eq.s32.totalorder %s29, 0
      %p223 = por %p221, %p222
      %s225 = sadd.s32 %s224, 1
      %p228 = scmp.eq.s32.totalorder %s23, 1
      %p229 = scmp.ne.s32.totalorder %s224, %s226
      %p230 = scmp.eq.s32.totalorder %s23, 0
      %p231 = por %p229, %p230
      %p232 = scmp.ne.s32.totalorder %s224, %s226
      %p233 = scmp.eq.s32.totalorder %s28, 1
      %p234 = por %p232, %p233
      %p235 = scmp.ne.s32.totalorder %s226, %s227
      %p236 = scmp.eq.s32.totalorder %s28, 0
      %p237 = por %p235, %p236
      %p238 = scmp.ne.s32.totalorder %s226, %s227
      %p239 = scmp.eq.s32.totalorder %s29, 1
      %p240 = por %p238, %p239
      %p242 = scmp.ne.s32.totalorder %s227, %s241
      %p243 = scmp.eq.s32.totalorder %s29, 0
      %p244 = por %p242, %p243
      %s246 = sadd.s32 %s245, 1
      %p249 = scmp.eq.s32.totalorder %s23, 1
      %p250 = scmp.ne.s32.totalorder %s245, %s247
      %p251 = scmp.eq.s32.totalorder %s23, 0
      %p252 = por %p250, %p251
      %p253 = scmp.ne.s32.totalorder %s245, %s247
      %p254 = scmp.eq.s32.totalorder %s28, 1
      %p255 = por %p253, %p254
      %p256 = scmp.ne.s32.totalorder %s247, %s248
      %p257 = scmp.eq.s32.totalorder %s28, 0
      %p258 = por %p256, %p257
      %p259 = scmp.ne.s32.totalorder %s247, %s248
      %p260 = scmp.eq.s32.totalorder %s29, 1
      %p261 = por %p259, %p260
      %p263 = scmp.ne.s32.totalorder %s248, %s262
      %p264 = scmp.eq.s32.totalorder %s29, 0
      %p265 = por %p263, %p264
      %s267 = sadd.s32 %s266, 1
      %p270 = scmp.eq.s32.totalorder %s23, 1
      %p271 = scmp.ne.s32.totalorder %s266, %s268
      %p272 = scmp.eq.s32.totalorder %s23, 0
      %p273 = por %p271, %p272
      %p274 = scmp.ne.s32.totalorder %s266, %s268
      %p275 = scmp.eq.s32.totalorder %s28, 1
      %p276 = por %p274, %p275
      %p277 = scmp.ne.s32.totalorder %s268, %s269
      %p278 = scmp.eq.s32.totalorder %s28, 0
      %p279 = por %p277, %p278
      %p280 = scmp.ne.s32.totalorder %s268, %s269
      %p281 = scmp.eq.s32.totalorder %s29, 1
      %p282 = por %p280, %p281
      %p284 = scmp.ne.s32.totalorder %s269, %s283
      %p285 = scmp.eq.s32.totalorder %s29, 0
      %p286 = por %p284, %p285
      %s288 = sadd.s32 %s287, 1
      %p291 = scmp.eq.s32.totalorder %s23, 1
      %p292 = scmp.ne.s32.totalorder %s287, %s289
      %p293 = scmp.eq.s32.totalorder %s23, 0
      %p294 = por %p292, %p293
      %p295 = scmp.ne.s32.totalorder %s287, %s289
      %p296 = scmp.eq.s32.totalorder %s28, 1
      %p297 = por %p295, %p296
      %p298 = scmp.ne.s32.totalorder %s289, %s290
      %p299 = scmp.eq.s32.totalorder %s28, 0
      %p300 = por %p298, %p299
      %p301 = scmp.ne.s32.totalorder %s289, %s290
      %p302 = scmp.eq.s32.totalorder %s29, 1
      %p303 = por %p301, %p302
      %p305 = scmp.ne.s32.totalorder %s290, %s304
      %p306 = scmp.eq.s32.totalorder %s29, 0
      %p307 = por %p305, %p306
      %s309 = sadd.s32 %s308, 1
      %p312 = scmp.eq.s32.totalorder %s23, 1
      %p313 = scmp.ne.s32.totalorder %s308, %s310
      %p314 = scmp.eq.s32.totalorder %s23, 0
      %p315 = por %p313, %p314
      %p316 = scmp.ne.s32.totalorder %s308, %s310
      %p317 = scmp.eq.s32.totalorder %s28, 1
      %p318 = por %p316, %p317
      %p319 = scmp.ne.s32.totalorder %s310, %s311
      %p320 = scmp.eq.s32.totalorder %s28, 0
      %p321 = por %p319, %p320
      %p322 = scmp.ne.s32.totalorder %s310, %s311
      %p323 = scmp.eq.s32.totalorder %s29, 1
      %p324 = por %p322, %p323
      %p326 = scmp.ne.s32.totalorder %s311, %s325
      %p327 = scmp.eq.s32.totalorder %s29, 0
      %p328 = por %p326, %p327
      %s330 = sadd.s32 %s329, 1
      %p333 = scmp.eq.s32.totalorder %s23, 1
      %p334 = scmp.ne.s32.totalorder %s329, %s331
      %p335 = scmp.eq.s32.totalorder %s23, 0
      %p336 = por %p334, %p335
      %p337 = scmp.ne.s32.totalorder %s329, %s331
      %p338 = scmp.eq.s32.totalorder %s28, 1
      %p339 = por %p337, %p338
      %p340 = scmp.ne.s32.totalorder %s331, %s332
      %p341 = scmp.eq.s32.totalorder %s28, 0
      %p342 = por %p340, %p341
      %p343 = scmp.ne.s32.totalorder %s331, %s332
      %p344 = scmp.eq.s32.totalorder %s29, 1
      %p345 = por %p343, %p344
      %p347 = scmp.ne.s32.totalorder %s332, %s346
      %p348 = scmp.eq.s32.totalorder %s29, 0
      %p349 = por %p347, %p348
      %s350 = ssub.s32 %s23, %s30
      %p351 = scmp.eq.s32.totalorder %s350, 0
      %s353 = sadd.s32 %s352, 1
      %s354 = scalar_select %p351, %s352, %s353
      %p357 = pneg %p351
      %p358 = scmp.eq.s32.totalorder %s23, 1
      %p359 = por %p357, %p358
      %p360 = scmp.ne.s32.totalorder %s352, %s355
      %p361 = scmp.eq.s32.totalorder %s23, 0
      %p362 = por %p360, %p361
      %p363 = scmp.ne.s32.totalorder %s352, %s355
      %p364 = scmp.eq.s32.totalorder %s28, 1
      %p365 = por %p363, %p364
      %p366 = scmp.ne.s32.totalorder %s355, %s356
      %p367 = scmp.eq.s32.totalorder %s28, 0
      %p368 = por %p366, %p367
      %p369 = scmp.ne.s32.totalorder %s355, %s356
      %p370 = scmp.eq.s32.totalorder %s29, 1
      %p371 = por %p369, %p370
      %p373 = scmp.ne.s32.totalorder %s356, %s372
      %p374 = scmp.eq.s32.totalorder %s29, 0
      %p375 = por %p373, %p374
      %s376 = ssub.s32 %s23, %s30
      %p377 = scmp.eq.s32.totalorder %s376, 0
      %s379 = sadd.s32 %s378, 1
      %s380 = scalar_select %p377, %s378, %s379
      %p383 = pneg %p377
      %p384 = scmp.eq.s32.totalorder %s23, 1
      %p385 = por %p383, %p384
      %p386 = scmp.ne.s32.totalorder %s378, %s381
      %p387 = scmp.eq.s32.totalorder %s23, 0
      %p388 = por %p386, %p387
      %p389 = scmp.ne.s32.totalorder %s378, %s381
      %p390 = scmp.eq.s32.totalorder %s28, 1
      %p391 = por %p389, %p390
      %p392 = scmp.ne.s32.totalorder %s381, %s382
      %p393 = scmp.eq.s32.totalorder %s28, 0
      %p394 = por %p392, %p393
      %p395 = scmp.ne.s32.totalorder %s381, %s382
      %p396 = scmp.eq.s32.totalorder %s29, 1
      %p397 = por %p395, %p396
      %p399 = scmp.ne.s32.totalorder %s382, %s398
      %p400 = scmp.eq.s32.totalorder %s29, 0
      %p401 = por %p399, %p400
      %p402 = scmp.le.s32.totalorder 1, %s23
      %p403 = scmp.lt.s32.totalorder %s23, 3
      %p404 = pnand %p402, %p403
      %p405 = pneg %p404
      // Predicated region
      $region9: #{triplet_vgfm_forward.15} parent=5 // pred_check
        _
      $region10: #{triplet_vgfm_forward.15} parent=5 // pred_check_branch
        %407 = sbr.rel (%p404) target = $region12
      $region11: #{triplet_vgfm_forward.15} parent=5 // pred_region
        %s408 = ssub.s32 %s23, 1
        // Predicated region
        $region13: #{triplet_vgfm_forward.15} parent=11 // pred_check
          %p409 = pneg %p174
        $region14: #{triplet_vgfm_forward.15} parent=11 // pred_check_branch
          %411 = sbr.rel (%p409) target = $region16
        $region15: #{triplet_vgfm_forward.15} parent=11 // pred_region
          _
        $region16: #{triplet_vgfm_forward.15} parent=11 // pred_fallthru
          _
        // Predicated region
        $region17: #{triplet_vgfm_forward.15} parent=11 // pred_check
          %p412 = pneg %p195
        $region18: #{triplet_vgfm_forward.15} parent=11 // pred_check_branch
          %414 = sbr.rel (%p412) target = $region20
        $region19: #{triplet_vgfm_forward.15} parent=11 // pred_region
          _
        $region20: #{triplet_vgfm_forward.15} parent=11 // pred_fallthru
          _
        // Predicated region
        $region21: #{triplet_vgfm_forward.15} parent=11 // pred_check
          %p415 = pneg %p216
        $region22: #{triplet_vgfm_forward.15} parent=11 // pred_check_branch
          %417 = sbr.rel (%p415) target = $region24
        $region23: #{triplet_vgfm_forward.15} parent=11 // pred_region
          %s419 = ssub.s32 16, 16
          %420 = vsyncadd [#allocation3], %s419
          %s422 = sshll.u32 %s7, 4
          %s423 = int_to_ptr.vmem [resolvable:$true] %s422
          %425 = dma.vmem_to_smem %s423, 16, [#allocation2], [#allocation3]
        $region24: #{triplet_vgfm_forward.15} parent=11 // pred_fallthru
          _
        // Predicated region
        $region25: #{triplet_vgfm_forward.15} parent=11 // pred_check
          %p426 = pneg %p237
        $region26: #{triplet_vgfm_forward.15} parent=11 // pred_check_branch
          %428 = sbr.rel (%p426) target = $region28
        $region27: #{triplet_vgfm_forward.15} parent=11 // pred_region
          _
        $region28: #{triplet_vgfm_forward.15} parent=11 // pred_fallthru
          _
        // Predicated region
        $region29: #{triplet_vgfm_forward.15} parent=11 // pred_check
          %p429 = pneg %p258
        $region30: #{triplet_vgfm_forward.15} parent=11 // pred_check_branch
          %431 = sbr.rel (%p429) target = $region32
        $region31: #{triplet_vgfm_forward.15} parent=11 // pred_region
          _
        $region32: #{triplet_vgfm_forward.15} parent=11 // pred_fallthru
          _
        // Predicated region
        $region33: #{triplet_vgfm_forward.15} parent=11 // pred_check
          %p432 = pneg %p279
        $region34: #{triplet_vgfm_forward.15} parent=11 // pred_check_branch
          %434 = sbr.rel (%p432) target = $region36
        $region35: #{triplet_vgfm_forward.15} parent=11 // pred_region
          _
        $region36: #{triplet_vgfm_forward.15} parent=11 // pred_fallthru
          _
        // Predicated region
        $region37: #{triplet_vgfm_forward.15} parent=11 // pred_check
          %p435 = pneg %p300
        $region38: #{triplet_vgfm_forward.15} parent=11 // pred_check_branch
          %437 = sbr.rel (%p435) target = $region40
        $region39: #{triplet_vgfm_forward.15} parent=11 // pred_region
          _
        $region40: #{triplet_vgfm_forward.15} parent=11 // pred_fallthru
          _
        // Predicated region
        $region41: #{triplet_vgfm_forward.15} parent=11 // pred_check
          %p438 = pneg %p321
        $region42: #{triplet_vgfm_forward.15} parent=11 // pred_check_branch
          %440 = sbr.rel (%p438) target = $region44
        $region43: #{triplet_vgfm_forward.15} parent=11 // pred_region
          _
        $region44: #{triplet_vgfm_forward.15} parent=11 // pred_fallthru
          _
        // Predicated region
        $region45: #{triplet_vgfm_forward.15} parent=11 // pred_check
          %p441 = pneg %p342
        $region46: #{triplet_vgfm_forward.15} parent=11 // pred_check_branch
          %443 = sbr.rel (%p441) target = $region48
        $region47: #{triplet_vgfm_forward.15} parent=11 // pred_region
          _
        $region48: #{triplet_vgfm_forward.15} parent=11 // pred_fallthru
          _
      $region12: #{triplet_vgfm_forward.15} parent=5 // pred_fallthru
        _
      %p444 = scmp.lt.s32.totalorder %s23, 2
      // Predicated region
      $region49: #{triplet_vgfm_forward.15} parent=5 // pred_check
        %p445 = pneg %p444
      $region50: #{triplet_vgfm_forward.15} parent=5 // pred_check_branch
        %447 = sbr.rel (%p445) target = $region52
      $region51: #{triplet_vgfm_forward.15} parent=5 // pred_region
        // Predicated region
        $region53: #{triplet_vgfm_forward.15} parent=51 // pred_check
          %p448 = pneg %p43
        $region54: #{triplet_vgfm_forward.15} parent=51 // pred_check_branch
          %450 = sbr.rel (%p448) target = $region56
        $region55: #{triplet_vgfm_forward.15} parent=51 // pred_region
          %p451 = scmp.lt.s32.totalorder %s23, 1
          %s452 = scalar_select %p451, %s23, 1
          %s453 = smul.addr %s452, 4
          %s454 = scalar_lea.vmem %s0, %s453
        $region56: #{triplet_vgfm_forward.15} parent=51 // pred_fallthru
          _
        // Predicated region
        $region57: #{triplet_vgfm_forward.15} parent=51 // pred_check
          %p455 = pneg %p69
        $region58: #{triplet_vgfm_forward.15} parent=51 // pred_check_branch
          %457 = sbr.rel (%p455) target = $region60
        $region59: #{triplet_vgfm_forward.15} parent=51 // pred_region
          %p458 = scmp.lt.s32.totalorder %s23, 1
          %s459 = scalar_select %p458, %s23, 1
          %s460 = smul.addr %s459, 4
          %s461 = scalar_lea.vmem %s1, %s460
        $region60: #{triplet_vgfm_forward.15} parent=51 // pred_fallthru
          _
        // Predicated region
        $region61: #{triplet_vgfm_forward.15} parent=51 // pred_check
          %p462 = pneg %p95
        $region62: #{triplet_vgfm_forward.15} parent=51 // pred_check_branch
          %464 = sbr.rel (%p462) target = $region64
        $region63: #{triplet_vgfm_forward.15} parent=51 // pred_region
          %p465 = scmp.lt.s32.totalorder %s23, 1
          %s466 = scalar_select %p465, %s23, 1
          %s467 = smul.addr %s466, 4
          %s468 = scalar_lea.vmem %s2, %s467
        $region64: #{triplet_vgfm_forward.15} parent=51 // pred_fallthru
          _
        // Predicated region
        $region65: #{triplet_vgfm_forward.15} parent=51 // pred_check
          %p469 = pneg %p121
        $region66: #{triplet_vgfm_forward.15} parent=51 // pred_check_branch
          %471 = sbr.rel (%p469) target = $region68
        $region67: #{triplet_vgfm_forward.15} parent=51 // pred_region
          %p472 = scmp.lt.s32.totalorder %s23, 1
          %s473 = scalar_select %p472, %s23, 1
          %s474 = smul.addr %s473, 4
          %s475 = scalar_lea.vmem %s3, %s474
        $region68: #{triplet_vgfm_forward.15} parent=51 // pred_fallthru
          _
        // Predicated region
        $region69: #{triplet_vgfm_forward.15} parent=51 // pred_check
          %p476 = pneg %p147
        $region70: #{triplet_vgfm_forward.15} parent=51 // pred_check_branch
          %478 = sbr.rel (%p476) target = $region72
        $region71: #{triplet_vgfm_forward.15} parent=51 // pred_region
          %p479 = scmp.lt.s32.totalorder %s23, 1
          %s480 = scalar_select %p479, %s23, 1
          %s481 = smul.addr %s480, 4
          %s482 = scalar_lea.vmem %s4, %s481
        $region72: #{triplet_vgfm_forward.15} parent=51 // pred_fallthru
          _
      $region52: #{triplet_vgfm_forward.15} parent=5 // pred_fallthru
        _
      %p483 = scmp.le.s32.totalorder 1, %s23
      %p484 = scmp.lt.s32.totalorder %s23, 3
      %p485 = pnand %p483, %p484
      %p486 = pneg %p485
      // Predicated region
      $region73: #{triplet_vgfm_forward.15} parent=5 // pred_check
        _
      $region74: #{triplet_vgfm_forward.15} parent=5 // pred_check_branch
        %488 = sbr.rel (%p485) target = $region76
      $region75: #{triplet_vgfm_forward.15} parent=5 // pred_region
        %s489 = ssub.s32 %s23, 1
        // Predicated region
        $region77: #{triplet_vgfm_forward.15} parent=75 // pred_check
          %p490 = pneg %p216
        $region78: #{triplet_vgfm_forward.15} parent=75 // pred_check_branch
          %492 = sbr.rel (%p490) target = $region80
        $region79: #{triplet_vgfm_forward.15} parent=75 // pred_region
          %493 = dma.done [#allocation3], 16
        $region80: #{triplet_vgfm_forward.15} parent=75 // pred_fallthru
          _
        %494 = sfence
        %p495 = scmp.lt.s32.totalorder %s28, 1
        %s496 = scalar_select %p495, %s28, 1
        %s497 = smul.addr %s496, 4
        %s498 = scalar_lea.vmem %s0, %s497
        %p499 = pneg %p49
        %p500 = pneg %p46
        %p501 = scmp.lt.s32.totalorder %s28, 1
        %s502 = scalar_select %p501, %s28, 1
        %s503 = smul.addr %s502, 4
        %s504 = scalar_lea.vmem %s1, %s503
        %p505 = pneg %p75
        %p506 = pneg %p72
        %p507 = scmp.lt.s32.totalorder %s28, 1
        %s508 = scalar_select %p507, %s28, 1
        %s509 = smul.addr %s508, 4
        %s510 = scalar_lea.vmem %s2, %s509
        %p511 = pneg %p101
        %p512 = pneg %p98
        %p513 = scmp.lt.s32.totalorder %s28, 1
        %s514 = scalar_select %p513, %s28, 1
        %s515 = smul.addr %s514, 4
        %s516 = scalar_lea.vmem %s3, %s515
        %p517 = pneg %p127
        %p518 = pneg %p124
        %p519 = scmp.lt.s32.totalorder %s28, 1
        %s520 = scalar_select %p519, %s28, 1
        %s521 = smul.addr %s520, 4
        %s522 = scalar_lea.vmem %s4, %s521
        %p523 = pneg %p153
        %p524 = pneg %p150
        %p525 = pneg %p174
        %p526 = pneg %p171
        %p527 = pneg %p195
        %p528 = pneg %p192
        %p529 = pneg %p216
        %p530 = pneg %p213
        %p531 = pneg %p237
        %p532 = pneg %p234
        %p533 = pneg %p258
        %p534 = pneg %p255
        %p535 = pneg %p279
        %p536 = pneg %p276
        %p537 = pneg %p300
        %p538 = pneg %p297
        %p539 = pneg %p321
        %p540 = pneg %p318
        %p541 = pneg %p342
        %p542 = pneg %p339
        %p543 = pneg %p368
        %p544 = pneg %p365
        %p545 = scmp.lt.s32.totalorder %s28, 1
        %s546 = scalar_select %p545, %s28, 1
        %s547 = smul.addr %s546, 4
        %s548 = scalar_lea.vmem %s14, %s547
        %p549 = pneg %p394
        %p550 = pneg %p391
        %p551 = scmp.lt.s32.totalorder %s28, 1
        %s552 = scalar_select %p551, %s28, 1
        %s553 = smul.addr %s552, 4
        %s554 = scalar_lea.vmem %s15, %s553
        %p555 = scmp.lt.s32.totalorder %s28, 1
        %s556 = scalar_select %p555, %s28, 1
        %s557 = smul.addr %s556, 4
        %s558 = scalar_lea.vmem %s0, %s557
        %p559 = scmp.lt.s32.totalorder %s28, 1
        %s560 = scalar_select %p559, %s28, 1
        %s561 = smul.addr %s560, 4
        %s562 = scalar_lea.vmem %s1, %s561
        %p563 = scmp.lt.s32.totalorder %s28, 1
        %s564 = scalar_select %p563, %s28, 1
        %s565 = smul.addr %s564, 4
        %s566 = scalar_lea.vmem %s2, %s565
        %p567 = scmp.lt.s32.totalorder %s28, 1
        %s568 = scalar_select %p567, %s28, 1
        %s569 = smul.addr %s568, 4
        %s570 = scalar_lea.vmem %s3, %s569
        %p571 = scmp.lt.s32.totalorder %s28, 1
        %s572 = scalar_select %p571, %s28, 1
        %s573 = smul.addr %s572, 4
        %s574 = scalar_lea.vmem %s4, %s573
        %p575 = scmp.lt.s32.totalorder %s28, 1
        %s576 = scalar_select %p575, %s28, 1
        %s577 = smul.addr %s576, 4
        %s578 = scalar_lea.vmem %s14, %s577
        %p579 = scmp.lt.s32.totalorder %s28, 1
        %s580 = scalar_select %p579, %s28, 1
        %s581 = smul.addr %s580, 4
        %s582 = scalar_lea.vmem %s15, %s581
        %v584 = vld [vmem:[%s558] sm:$0xf]
        %v585 = vunpack.c.l.bf16 %v584
        %v586 = vld [vmem:[%s562] sm:$0xf]
        %v587 = vunpack.c.l.bf16 %v586
        %v588 = vld [vmem:[%s566] sm:$0xf]
        %v589 = vunpack.c.l.bf16 %v588
        %v590 = vld [vmem:[%s570] sm:$0xf]
        %v591 = vunpack.c.l.bf16 %v590
        %v592 = vld [vmem:[%s5] sm:$0xff]
        %v593 = vld [vmem:[%s6] sm:$0xff]
        %v594 = vlaneseq
        %v595 = vshrl.u32 %v594, 7
        %v596 = vsub.s32 0, %v595
        %v597 = vrot.slane %v592, %v596
        %v598 = vmul.f32 %v585, %v597
        %v599 = vlaneseq
        %v600 = vshrl.u32 %v599, 7
        %v601 = vsub.s32 0, %v600
        %v602 = vrot.slane %v593, %v601
        %v603 = vmul.f32 %v589, %v602
        %v604 = vadd.f32 %v598, %v603
        %605 = vadd.xlane.f32.xlu0 %v604
        %v606 = vpop.xlane.xlu0 %605
        %s607 = sld [smem:[#allocation2]]
        %v608 = vstv %s607
        %v609 = vadd.f32 %v606, %v608
        %v610 = vxor.u32 %v609, 2147483648
        %v611 = vmul.f32 %v610, 1.442695
        %v612 = vpow.pop %v611
        %v613 = vadd.f32 %v612, 1.0
        %v614 = vrcp.pop %v613
        %v615 = vmul.f32 1.0, %v614
        %v616 = vlaneseq
        %v617 = vshrl.u32 %v616, 7
        %v618 = vsub.s32 1, %v617
        %v619 = vrot.slane %v592, %v618
        %v620 = vmul.f32 %v587, %v619
        %v621 = vlaneseq
        %v622 = vshrl.u32 %v621, 7
        %v623 = vsub.s32 1, %v622
        %v624 = vrot.slane %v593, %v623
        %v625 = vmul.f32 %v589, %v624
        %v626 = vadd.f32 %v620, %v625
        %627 = vadd.xlane.f32.xlu0 %v626
        %v628 = vpop.xlane.xlu0 %627
        %s629 = sld [smem:[#allocation2 + $0x1]]
        %v630 = vstv %s629
        %v631 = vadd.f32 %v628, %v630
        %v632 = vxor.u32 %v631, 2147483648
        %v633 = vmul.f32 %v632, 1.442695
        %v634 = vpow.pop %v633
        %v635 = vadd.f32 %v634, 1.0
        %v636 = vrcp.pop %v635
        %v637 = vmul.f32 1.0, %v636
        %v638 = vadd.f32 %v615, %v637
        %v639 = vmul.f32 %v638, %v589
        %v640 = vlaneseq
        %v641 = vshrl.u32 %v640, 7
        %v642 = vsub.s32 2, %v641
        %v643 = vrot.slane %v592, %v642
        %v644 = vmul.f32 %v585, %v643
        %v645 = vlaneseq
        %v646 = vshrl.u32 %v645, 7
        %v647 = vsub.s32 2, %v646
        %v648 = vrot.slane %v593, %v647
        %v649 = vmul.f32 %v589, %v648
        %v650 = vadd.f32 %v644, %v649
        %651 = vadd.xlane.f32.xlu0 %v650
        %v652 = vpop.xlane.xlu0 %651
        %s653 = sld [smem:[#allocation2 + $0x2]]
        %v654 = vstv %s653
        %v655 = vadd.f32 %v652, %v654
        %v656 = vxor.u32 %v655, 2147483648
        %v657 = vmul.f32 %v656, 1.442695
        %v658 = vpow.pop %v657
        %v659 = vadd.f32 %v658, 1.0
        %v660 = vrcp.pop %v659
        %v661 = vmul.f32 1.0, %v660
        %v662 = vmul.f32 %v661, %v585
        %v663 = vlaneseq
        %v664 = vshrl.u32 %v663, 7
        %v665 = vsub.s32 3, %v664
        %v666 = vrot.slane %v592, %v665
        %v667 = vmul.f32 %v587, %v666
        %v668 = vlaneseq
        %v669 = vshrl.u32 %v668, 7
        %v670 = vsub.s32 3, %v669
        %v671 = vrot.slane %v593, %v670
        %v672 = vmul.f32 %v589, %v671
        %v673 = vadd.f32 %v667, %v672
        %674 = vadd.xlane.f32.xlu0 %v673
        %v675 = vpop.xlane.xlu0 %674
        %s676 = sld [smem:[#allocation2 + $0x3]]
        %v677 = vstv %s676
        %v678 = vadd.f32 %v675, %v677
        %v679 = vxor.u32 %v678, 2147483648
        %v680 = vmul.f32 %v679, 1.442695
        %v681 = vpow.pop %v680
        %v682 = vadd.f32 %v681, 1.0
        %v683 = vrcp.pop %v682
        %v684 = vmul.f32 1.0, %v683
        %v685 = vmul.f32 %v684, %v587
        %v686 = vadd.f32 %v662, %v685
        %v687 = vlaneseq
        %v688 = vshrl.u32 %v687, 7
        %v689 = vsub.s32 4, %v688
        %v690 = vrot.slane %v592, %v689
        %v691 = vmul.f32 %v591, %v690
        %v692 = vlaneseq
        %v693 = vshrl.u32 %v692, 7
        %v694 = vsub.s32 4, %v693
        %v695 = vrot.slane %v593, %v694
        %v696 = vmul.f32 %v589, %v695
        %v697 = vadd.f32 %v691, %v696
        %698 = vadd.xlane.f32.xlu0 %v697
        %v699 = vpop.xlane.xlu0 %698
        %s700 = sld [smem:[#allocation2 + $0x4]]
        %v701 = vstv %s700
        %v702 = vadd.f32 %v699, %v701
        %v703 = vxor.u32 %v702, 2147483648
        %v704 = vmul.f32 %v703, 1.442695
        %v705 = vpow.pop %v704
        %v706 = vadd.f32 %v705, 1.0
        %v707 = vrcp.pop %v706
        %v708 = vmul.f32 1.0, %v707
        %v709 = vmul.f32 %v708, %v591
        %v710 = vadd.f32 %v686, %v709
        %v711 = vld [vmem:[%s574] sm:$0xf]
        %v712 = vunpack.c.l.bf16 %v711
        %v713 = vadd.f32 %v710, %v712
        %v714 = vpack.c.bf16 %v639, %v639
        %715 = vst [vmem:[%s578] sm:$0xf] %v714
        %v716 = vpack.c.bf16 %v713, %v713
        %v717 = vld [vmem:[%s8] sm:$0xff]
        %v718 = vld [vmem:[%s8 + $0x8] sm:$0xff]
        %v719 = vld [vmem:[%s8 + $0x10] sm:$0xff]
        %v720 = vld [vmem:[%s8 + $0x18] sm:$0xff]
        %v721 = vld [vmem:[%s8 + $0x20] sm:$0xff]
        %v722 = vld [vmem:[%s8 + $0x28] sm:$0xff]
        %v723 = vld [vmem:[%s8 + $0x30] sm:$0xff]
        %v724 = vld [vmem:[%s8 + $0x38] sm:$0xff]
        %v725 = vld [vmem:[%s8 + $0x40] sm:$0xff]
        %v726 = vld [vmem:[%s8 + $0x48] sm:$0xff]
        %v727 = vld [vmem:[%s8 + $0x50] sm:$0xff]
        %v728 = vld [vmem:[%s8 + $0x58] sm:$0xff]
        %v729 = vld [vmem:[%s8 + $0x60] sm:$0xff]
        %v730 = vld [vmem:[%s8 + $0x68] sm:$0xff]
        %v731 = vld [vmem:[%s8 + $0x70] sm:$0xff]
        %v732 = vld [vmem:[%s8 + $0x78] sm:$0xff]
        %v733 = vld [vmem:[%s8 + $0x80] sm:$0xff]
        %v734 = vld [vmem:[%s8 + $0x88] sm:$0xff]
        %v735 = vld [vmem:[%s8 + $0x90] sm:$0xff]
        %v736 = vld [vmem:[%s8 + $0x98] sm:$0xff]
        %v737 = vld [vmem:[%s8 + $0xa0] sm:$0xff]
        %v738 = vld [vmem:[%s8 + $0xa8] sm:$0xff]
        %v739 = vld [vmem:[%s8 + $0xb0] sm:$0xff]
        %v740 = vld [vmem:[%s8 + $0xb8] sm:$0xff]
        %v741 = vld [vmem:[%s8 + $0xc0] sm:$0xff]
        %v742 = vld [vmem:[%s8 + $0xc8] sm:$0xff]
        %v743 = vld [vmem:[%s8 + $0xd0] sm:$0xff]
        %v744 = vld [vmem:[%s8 + $0xd8] sm:$0xff]
        %v745 = vld [vmem:[%s8 + $0xe0] sm:$0xff]
        %v746 = vld [vmem:[%s8 + $0xe8] sm:$0xff]
        %v747 = vld [vmem:[%s8 + $0xf0] sm:$0xff]
        %v748 = vld [vmem:[%s8 + $0xf8] sm:$0xff]
        %v749 = vld [vmem:[%s9] sm:$0xf]
        %v750 = vld [vmem:[%s9 + $0x4] sm:$0xf]
        %v751 = vld [vmem:[%s9 + $0x8] sm:$0xf]
        %v752 = vld [vmem:[%s9 + $0xc] sm:$0xf]
        %v753 = vld [vmem:[%s9 + $0x10] sm:$0xf]
        %v754 = vld [vmem:[%s9 + $0x14] sm:$0xf]
        %v755 = vld [vmem:[%s9 + $0x18] sm:$0xf]
        %v756 = vld [vmem:[%s9 + $0x1c] sm:$0xf]
        %v757 = vld [vmem:[%s9 + $0x20] sm:$0xf]
        %v758 = vld [vmem:[%s9 + $0x24] sm:$0xf]
        %v759 = vld [vmem:[%s9 + $0x28] sm:$0xf]
        %v760 = vld [vmem:[%s9 + $0x2c] sm:$0xf]
        %v761 = vld [vmem:[%s9 + $0x30] sm:$0xf]
        %v762 = vld [vmem:[%s9 + $0x34] sm:$0xf]
        %v763 = vld [vmem:[%s9 + $0x38] sm:$0xf]
        %v764 = vld [vmem:[%s9 + $0x3c] sm:$0xf]
        %v765 = vld [vmem:[%s10] sm:$0xf]
        %v766 = vld [vmem:[%s10 + $0x4] sm:$0xf]
        %v767 = vld [vmem:[%s10 + $0x8] sm:$0xf]
        %v768 = vld [vmem:[%s10 + $0xc] sm:$0xf]
        %v769 = vld [vmem:[%s10 + $0x10] sm:$0xf]
        %v770 = vld [vmem:[%s10 + $0x14] sm:$0xf]
        %v771 = vld [vmem:[%s10 + $0x18] sm:$0xf]
        %v772 = vld [vmem:[%s10 + $0x1c] sm:$0xf]
        %v773 = vld [vmem:[%s10 + $0x20] sm:$0xf]
        %v774 = vld [vmem:[%s10 + $0x24] sm:$0xf]
        %v775 = vld [vmem:[%s10 + $0x28] sm:$0xf]
        %v776 = vld [vmem:[%s10 + $0x2c] sm:$0xf]
        %v777 = vld [vmem:[%s10 + $0x30] sm:$0xf]
        %v778 = vld [vmem:[%s10 + $0x34] sm:$0xf]
        %v779 = vld [vmem:[%s10 + $0x38] sm:$0xf]
        %v780 = vld [vmem:[%s10 + $0x3c] sm:$0xf]
        %v781 = vld [vmem:[%s11] sm:$0x3]
        %v782 = vld [vmem:[%s12] sm:$0x1]
        %v783 = vld [vmem:[%s13] sm:$0x1]
        %v785 = vlaneseq
        %v786 = vshrl.u32 %v785, 7
        %v787 = vsub.s32 0, %v786
        %v788 = vrot.slane %v781, %v787
        %v789 = vlaneseq
        %v790 = vshrl.u32 %v789, 7
        %v791 = vsub.s32 1, %v790
        %v792 = vrot.slane %v781, %v791
        %v827 = vunpack.c.l.b16 %v717
        %v828 = vunpack.c.h.b16 %v717
        %v829 = vunpack.c.l.b16 %v718
        %v830 = vunpack.c.h.b16 %v718
        %v831 = vunpack.c.l.b16 %v719
        %v832 = vunpack.c.h.b16 %v719
        %v833 = vunpack.c.l.b16 %v720
        %v834 = vunpack.c.h.b16 %v720
        %v835 = vunpack.c.l.b16 %v721
        %v836 = vunpack.c.h.b16 %v721
        %v837 = vunpack.c.l.b16 %v722
        %v838 = vunpack.c.h.b16 %v722
        %v839 = vunpack.c.l.b16 %v723
        %v840 = vunpack.c.h.b16 %v723
        %v841 = vunpack.c.l.b16 %v724
        %v842 = vunpack.c.h.b16 %v724
        %v843 = vunpack.c.l.b16 %v725
        %v844 = vunpack.c.h.b16 %v725
        %v845 = vunpack.c.l.b16 %v726
        %v846 = vunpack.c.h.b16 %v726
        %v847 = vunpack.c.l.b16 %v727
        %v848 = vunpack.c.h.b16 %v727
        %v849 = vunpack.c.l.b16 %v728
        %v850 = vunpack.c.h.b16 %v728
        %v851 = vunpack.c.l.b16 %v729
        %v852 = vunpack.c.h.b16 %v729
        %v853 = vunpack.c.l.b16 %v730
        %v854 = vunpack.c.h.b16 %v730
        %v855 = vunpack.c.l.b16 %v731
        %v856 = vunpack.c.h.b16 %v731
        %v857 = vunpack.c.l.b16 %v732
        %v858 = vunpack.c.h.b16 %v732
        %v859 = vunpack.c.l.b16 %v733
        %v860 = vunpack.c.h.b16 %v733
        %v861 = vunpack.c.l.b16 %v734
        %v862 = vunpack.c.h.b16 %v734
        %v863 = vunpack.c.l.b16 %v735
        %v864 = vunpack.c.h.b16 %v735
        %v865 = vunpack.c.l.b16 %v736
        %v866 = vunpack.c.h.b16 %v736
        %v867 = vunpack.c.l.b16 %v737
        %v868 = vunpack.c.h.b16 %v737
        %v869 = vunpack.c.l.b16 %v738
        %v870 = vunpack.c.h.b16 %v738
        %v871 = vunpack.c.l.b16 %v739
        %v872 = vunpack.c.h.b16 %v739
        %v873 = vunpack.c.l.b16 %v740
        %v874 = vunpack.c.h.b16 %v740
        %v875 = vunpack.c.l.b16 %v741
        %v876 = vunpack.c.h.b16 %v741
        %v877 = vunpack.c.l.b16 %v742
        %v878 = vunpack.c.h.b16 %v742
        %v879 = vunpack.c.l.b16 %v743
        %v880 = vunpack.c.h.b16 %v743
        %v881 = vunpack.c.l.b16 %v744
        %v882 = vunpack.c.h.b16 %v744
        %v883 = vunpack.c.l.b16 %v745
        %v884 = vunpack.c.h.b16 %v745
        %v885 = vunpack.c.l.b16 %v746
        %v886 = vunpack.c.h.b16 %v746
        %v887 = vunpack.c.l.b16 %v747
        %v888 = vunpack.c.h.b16 %v747
        %v889 = vunpack.c.l.b16 %v748
        %v890 = vunpack.c.h.b16 %v748
        %v891 = vpack.c.b16 %v829, %v827
        %v892 = vpack.c.b16 %v830, %v828
        %v893 = vpack.c.b16 %v833, %v831
        %v894 = vpack.c.b16 %v834, %v832
        %v895 = vpack.c.b16 %v837, %v835
        %v896 = vpack.c.b16 %v838, %v836
        %v897 = vpack.c.b16 %v841, %v839
        %v898 = vpack.c.b16 %v842, %v840
        %v899 = vpack.c.b16 %v845, %v843
        %v900 = vpack.c.b16 %v846, %v844
        %v901 = vpack.c.b16 %v849, %v847
        %v902 = vpack.c.b16 %v850, %v848
        %v903 = vpack.c.b16 %v853, %v851
        %v904 = vpack.c.b16 %v854, %v852
        %v905 = vpack.c.b16 %v857, %v855
        %v906 = vpack.c.b16 %v858, %v856
        %v907 = vpack.c.b16 %v861, %v859
        %v908 = vpack.c.b16 %v862, %v860
        %v909 = vpack.c.b16 %v865, %v863
        %v910 = vpack.c.b16 %v866, %v864
        %v911 = vpack.c.b16 %v869, %v867
        %v912 = vpack.c.b16 %v870, %v868
        %v913 = vpack.c.b16 %v873, %v871
        %v914 = vpack.c.b16 %v874, %v872
        %v915 = vpack.c.b16 %v877, %v875
        %v916 = vpack.c.b16 %v878, %v876
        %v917 = vpack.c.b16 %v881, %v879
        %v918 = vpack.c.b16 %v882, %v880
        %v919 = vpack.c.b16 %v885, %v883
        %v920 = vpack.c.b16 %v886, %v884
        %v921 = vpack.c.b16 %v889, %v887
        %v922 = vpack.c.b16 %v890, %v888
        %955 = vmatprep.subr.bf16.mxu0 %v892
        %956 = vmatpush1.bf16.msra.mxu0 %v891
        %957 = vmatprep.subr.bf16.mxu0 %v894
        %958 = vmatpush1.bf16.msra.mxu0 %v893
        %959 = vmatprep.subr.bf16.mxu0 %v896
        %960 = vmatpush1.bf16.msra.mxu0 %v895
        %961 = vmatprep.subr.bf16.mxu0 %v898
        %962 = vmatpush1.bf16.msra.mxu0 %v897
        %963 = vmatprep.subr.bf16.mxu0 %v900
        %964 = vmatpush1.bf16.msra.mxu0 %v899
        %965 = vmatprep.subr.bf16.mxu0 %v902
        %966 = vmatpush1.bf16.msra.mxu0 %v901
        %967 = vmatprep.subr.bf16.mxu0 %v904
        %968 = vmatpush1.bf16.msra.mxu0 %v903
        %969 = vmatprep.subr.bf16.mxu0 %v906
        %970 = vmatpush1.bf16.msra.mxu0 %v905
        %971 = vmatprep.subr.bf16.mxu0 %v908
        %972 = vmatpush1.bf16.msra.mxu0 %v907
        %973 = vmatprep.subr.bf16.mxu0 %v910
        %974 = vmatpush1.bf16.msra.mxu0 %v909
        %975 = vmatprep.subr.bf16.mxu0 %v912
        %976 = vmatpush1.bf16.msra.mxu0 %v911
        %977 = vmatprep.subr.bf16.mxu0 %v914
        %978 = vmatpush1.bf16.msra.mxu0 %v913
        %979 = vmatprep.subr.bf16.mxu0 %v916
        %980 = vmatpush1.bf16.msra.mxu0 %v915
        %981 = vmatprep.subr.bf16.mxu0 %v918
        %982 = vmatpush1.bf16.msra.mxu0 %v917
        %983 = vmatprep.subr.bf16.mxu0 %v920
        %984 = vmatpush1.bf16.msra.mxu0 %v919
        %985 = vmatprep.subr.bf16.mxu0 %v922
        %986 = vmatpush1.bf16.msra.mxu0 %v921
        %987 = vmatprep.mubr.bf16.mxu0 %v588
        %988 = vmatmul.mubr.bf16.gmra.mrb[0].mxu0 %v716
        %v989 = vpop.f32.mrb[0].mxu0
        %v990 = vadd.f32 %v788, %v989
        %v991 = vpop.f32.mrb[0].mxu0
        %v992 = vadd.f32 %v792, %v991
        %v993 = vpop.f32.mrb[0].mxu0
        %v994 = vpop.f32.mrb[0].mxu0
        %995 = vdwg.mxu0
        %v997 = vlaneseq
        %v998 = vshrl.u32 %v997, 7
        %v999 = vsub.s32 0, %v998
        %v1000 = vrot.slane %v782, %v999
        %v1018 = vunpack.c.l.b16 %v749
        %v1019 = vunpack.c.l.b16 %v750
        %v1020 = vunpack.c.l.b16 %v751
        %v1021 = vunpack.c.l.b16 %v752
        %v1022 = vunpack.c.l.b16 %v753
        %v1023 = vunpack.c.l.b16 %v754
        %v1024 = vunpack.c.l.b16 %v755
        %v1025 = vunpack.c.l.b16 %v756
        %v1026 = vunpack.c.l.b16 %v757
        %v1027 = vunpack.c.l.b16 %v758
        %v1028 = vunpack.c.l.b16 %v759
        %v1029 = vunpack.c.l.b16 %v760
        %v1030 = vunpack.c.l.b16 %v761
        %v1031 = vunpack.c.l.b16 %v762
        %v1032 = vunpack.c.l.b16 %v763
        %v1033 = vunpack.c.l.b16 %v764
        %v1034 = vpack.c.b16 %v1019, %v1018
        %v1035 = vpack.c.b16 %v1021, %v1020
        %v1036 = vpack.c.b16 %v1023, %v1022
        %v1037 = vpack.c.b16 %v1025, %v1024
        %v1038 = vpack.c.b16 %v1027, %v1026
        %v1039 = vpack.c.b16 %v1029, %v1028
        %v1040 = vpack.c.b16 %v1031, %v1030
        %v1041 = vpack.c.b16 %v1033, %v1032
        %1050 = vmatprep.subr.bf16.mxu0 0
        %1051 = vmatpush1.bf16.msra.mxu0 %v1034
        %1052 = vmatprep.subr.bf16.mxu0 0
        %1053 = vmatpush1.bf16.msra.mxu0 %v1035
        %1054 = vmatprep.subr.bf16.mxu0 0
        %1055 = vmatpush1.bf16.msra.mxu0 %v1036
        %1056 = vmatprep.subr.bf16.mxu0 0
        %1057 = vmatpush1.bf16.msra.mxu0 %v1037
        %1058 = vmatprep.subr.bf16.mxu0 0
        %1059 = vmatpush1.bf16.msra.mxu0 %v1038
        %1060 = vmatprep.subr.bf16.mxu0 0
        %1061 = vmatpush1.bf16.msra.mxu0 %v1039
        %1062 = vmatprep.subr.bf16.mxu0 0
        %1063 = vmatpush1.bf16.msra.mxu0 %v1040
        %1064 = vmatprep.subr.bf16.mxu0 0
        %1065 = vmatpush1.bf16.msra.mxu0 %v1041
        %1066 = vmatprep.subr.bf16.mxu0 0
        %1067 = vmatpush1.bf16.msra.mxu0 0
        %1068 = vmatprep.subr.bf16.mxu0 0
        %1069 = vmatpush1.bf16.msra.mxu0 0
        %1070 = vmatprep.subr.bf16.mxu0 0
        %1071 = vmatpush1.bf16.msra.mxu0 0
        %1072 = vmatprep.subr.bf16.mxu0 0
        %1073 = vmatpush1.bf16.msra.mxu0 0
        %1074 = vmatprep.subr.bf16.mxu0 0
        %1075 = vmatpush1.bf16.msra.mxu0 0
        %1076 = vmatprep.subr.bf16.mxu0 0
        %1077 = vmatpush1.bf16.msra.mxu0 0
        %1078 = vmatprep.subr.bf16.mxu0 0
        %1079 = vmatpush1.bf16.msra.mxu0 0
        %1080 = vmatprep.subr.bf16.mxu0 0
        %1081 = vmatpush1.bf16.msra.mxu0 0
        %1082 = vmatprep.mubr.bf16.mxu0 0
        %1083 = vmatmul.mubr.bf16.gmra.mrb[0].mxu0 %v716
        %v1084 = vpop.f32.mrb[0].mxu0
        %v1085 = vadd.f32 %v1000, %v1084
        %v1086 = vpop.f32.mrb[0].mxu0
        %v1087 = vpop.f32.mrb[0].mxu0
        %v1088 = vpop.f32.mrb[0].mxu0
        %1089 = vdwg.mxu0
        %v1091 = vlaneseq
        %v1092 = vshrl.u32 %v1091, 7
        %v1093 = vsub.s32 0, %v1092
        %v1094 = vrot.slane %v783, %v1093
        %v1112 = vunpack.c.l.b16 %v765
        %v1113 = vunpack.c.l.b16 %v766
        %v1114 = vunpack.c.l.b16 %v767
        %v1115 = vunpack.c.l.b16 %v768
        %v1116 = vunpack.c.l.b16 %v769
        %v1117 = vunpack.c.l.b16 %v770
        %v1118 = vunpack.c.l.b16 %v771
        %v1119 = vunpack.c.l.b16 %v772
        %v1120 = vunpack.c.l.b16 %v773
        %v1121 = vunpack.c.l.b16 %v774
        %v1122 = vunpack.c.l.b16 %v775
        %v1123 = vunpack.c.l.b16 %v776
        %v1124 = vunpack.c.l.b16 %v777
        %v1125 = vunpack.c.l.b16 %v778
        %v1126 = vunpack.c.l.b16 %v779
        %v1127 = vunpack.c.l.b16 %v780
        %v1128 = vpack.c.b16 %v1113, %v1112
        %v1129 = vpack.c.b16 %v1115, %v1114
        %v1130 = vpack.c.b16 %v1117, %v1116
        %v1131 = vpack.c.b16 %v1119, %v1118
        %v1132 = vpack.c.b16 %v1121, %v1120
        %v1133 = vpack.c.b16 %v1123, %v1122
        %v1134 = vpack.c.b16 %v1125, %v1124
        %v1135 = vpack.c.b16 %v1127, %v1126
        %1144 = vmatprep.subr.bf16.mxu0 0
        %1145 = vmatpush1.bf16.msra.mxu0 %v1128
        %1146 = vmatprep.subr.bf16.mxu0 0
        %1147 = vmatpush1.bf16.msra.mxu0 %v1129
        %1148 = vmatprep.subr.bf16.mxu0 0
        %1149 = vmatpush1.bf16.msra.mxu0 %v1130
        %1150 = vmatprep.subr.bf16.mxu0 0
        %1151 = vmatpush1.bf16.msra.mxu0 %v1131
        %1152 = vmatprep.subr.bf16.mxu0 0
        %1153 = vmatpush1.bf16.msra.mxu0 %v1132
        %1154 = vmatprep.subr.bf16.mxu0 0
        %1155 = vmatpush1.bf16.msra.mxu0 %v1133
        %1156 = vmatprep.subr.bf16.mxu0 0
        %1157 = vmatpush1.bf16.msra.mxu0 %v1134
        %1158 = vmatprep.subr.bf16.mxu0 0
        %1159 = vmatpush1.bf16.msra.mxu0 %v1135
        %1160 = vmatprep.subr.bf16.mxu0 0
        %1161 = vmatpush1.bf16.msra.mxu0 0
        %1162 = vmatprep.subr.bf16.mxu0 0
        %1163 = vmatpush1.bf16.msra.mxu0 0
        %1164 = vmatprep.subr.bf16.mxu0 0
        %1165 = vmatpush1.bf16.msra.mxu0 0
        %1166 = vmatprep.subr.bf16.mxu0 0
        %1167 = vmatpush1.bf16.msra.mxu0 0
        %1168 = vmatprep.subr.bf16.mxu0 0
        %1169 = vmatpush1.bf16.msra.mxu0 0
        %1170 = vmatprep.subr.bf16.mxu0 0
        %1171 = vmatpush1.bf16.msra.mxu0 0
        %1172 = vmatprep.subr.bf16.mxu0 0
        %1173 = vmatpush1.bf16.msra.mxu0 0
        %1174 = vmatprep.subr.bf16.mxu0 0
        %1175 = vmatpush1.bf16.msra.mxu0 0
        %1176 = vmatprep.mubr.bf16.mxu0 0
        %1177 = vmatmul.mubr.bf16.gmra.mrb[0].mxu0 %v588
        %v1178 = vpop.f32.mrb[0].mxu0
        %v1179 = vadd.f32 %v1094, %v1178
        %v1180 = vpop.f32.mrb[0].mxu0
        %v1181 = vpop.f32.mrb[0].mxu0
        %v1182 = vpop.f32.mrb[0].mxu0
        %1183 = vdwg.mxu0
        %v1184 = vxor.u32 %v990, 2147483648
        %v1185 = vmul.f32 %v1184, 1.442695
        %v1186 = vpow.pop %v1185
        %v1187 = vadd.f32 %v1186, 1.0
        %v1188 = vrcp.pop %v1187
        %v1189 = vmul.f32 1.0, %v1188
        %v1190 = vxor.u32 %v992, 2147483648
        %v1191 = vmul.f32 %v1190, 1.442695
        %v1192 = vpow.pop %v1191
        %v1193 = vadd.f32 %v1192, 1.0
        %v1194 = vrcp.pop %v1193
        %v1195 = vmul.f32 1.0, %v1194
        %v1196 = vmul.f32 %v1189, %v1179
        %v1197 = vadd.f32 %v1085, %v1196
        %v1198 = vtanh.pop %v1197
        %v1199 = vsub.f32 1.0, %v1195
        %v1200 = vmul.f32 %v1199, %v1198
        %v1201 = vmul.f32 %v1195, %v589
        %v1202 = vadd.f32 %v1200, %v1201
        %v1203 = vpack.c.bf16 %v1202, %v1202
        %1204 = vst [vmem:[%s582] sm:$0xf] %v1203
        %p1205 = scmp.lt.s32.totalorder %s28, 1
        %s1206 = scalar_select %p1205, %s28, 1
        %s1207 = smul.addr %s1206, 4
        %s1208 = scalar_lea.vmem %s14, %s1207
        %p1209 = scmp.lt.s32.totalorder %s28, 1
        %s1210 = scalar_select %p1209, %s28, 1
        %s1211 = smul.addr %s1210, 4
        %s1212 = scalar_lea.vmem %s15, %s1211
        // Predicated region
        $region81: #{triplet_vgfm_forward.15} parent=75 // pred_check
          %p1213 = pneg %p365
        $region82: #{triplet_vgfm_forward.15} parent=75 // pred_check_branch
          %1215 = sbr.rel (%p1213) target = $region84
        $region83: #{triplet_vgfm_forward.15} parent=75 // pred_region
          _
        $region84: #{triplet_vgfm_forward.15} parent=75 // pred_fallthru
          _
        // Predicated region
        $region85: #{triplet_vgfm_forward.15} parent=75 // pred_check
          %p1216 = pneg %p391
        $region86: #{triplet_vgfm_forward.15} parent=75 // pred_check_branch
          %1218 = sbr.rel (%p1216) target = $region88
        $region87: #{triplet_vgfm_forward.15} parent=75 // pred_region
          _
        $region88: #{triplet_vgfm_forward.15} parent=75 // pred_fallthru
          _
      $region76: #{triplet_vgfm_forward.15} parent=5 // pred_fallthru
        _
      %p1219 = scmp.le.s32.totalorder 2, %s23
      // Predicated region
      $region89: #{triplet_vgfm_forward.15} parent=5 // pred_check
        %p1220 = pneg %p1219
      $region90: #{triplet_vgfm_forward.15} parent=5 // pred_check_branch
        %1222 = sbr.rel (%p1220) target = $region92
      $region91: #{triplet_vgfm_forward.15} parent=5 // pred_region
        %s1223 = ssub.s32 %s23, 2
        // Predicated region
        $region93: #{triplet_vgfm_forward.15} parent=91 // pred_check
          %p1224 = pneg %p371
        $region94: #{triplet_vgfm_forward.15} parent=91 // pred_check_branch
          %1226 = sbr.rel (%p1224) target = $region96
        $region95: #{triplet_vgfm_forward.15} parent=91 // pred_region
          %p1227 = scmp.lt.s32.totalorder %s29, 1
          %s1228 = scalar_select %p1227, %s29, 1
          %s1229 = smul.addr %s1228, 4
          %s1230 = scalar_lea.vmem %s14, %s1229
        $region96: #{triplet_vgfm_forward.15} parent=91 // pred_fallthru
          _
        // Predicated region
        $region97: #{triplet_vgfm_forward.15} parent=91 // pred_check
          %p1231 = pneg %p397
        $region98: #{triplet_vgfm_forward.15} parent=91 // pred_check_branch
          %1233 = sbr.rel (%p1231) target = $region100
        $region99: #{triplet_vgfm_forward.15} parent=91 // pred_region
          %p1234 = scmp.lt.s32.totalorder %s29, 1
          %s1235 = scalar_select %p1234, %s29, 1
          %s1236 = smul.addr %s1235, 4
          %s1237 = scalar_lea.vmem %s15, %s1236
        $region100: #{triplet_vgfm_forward.15} parent=91 // pred_fallthru
          _
      $region92: #{triplet_vgfm_forward.15} parent=5 // pred_fallthru
        _
    $region6: #{triplet_vgfm_forward.15} parent=1 // loop_footer
      %s27 = sadd.s32 1, %s23
    $region7: #{triplet_vgfm_forward.15} parent=1 // loop_footer_branch
      %22 = sbr.rel target = $region3
    $region8: #{triplet_vgfm_forward.15} parent=1 // loop_exit
      _
    %1238 = vsyncpa [#allocation3], 1
    %s1239 = scalar_lea.sflag [#allocation3], 1
    %1240 = vsyncpa %s1239, 1

// kernel: triplet_vgfm_forward.17
$region0: #{triplet_vgfm_forward.17}
  #allocation0 [shape = 'u32[]', space=smem, size = 0x4, offset = 0x4, fixed_abs, tag = 'smem constant byte address 0x4 - core index']
  #allocation1 [shape = 'u32[144,128]{1,0:T(1,128)}', space=vmem, size = 0x12000, scoped, tag = 'internal scratch']
  %s0 = inlined_call_operand.vmem [shape: bf16[8,128], index: 0, kind: input, shape index: {}]
  %s1 = inlined_call_operand.vmem [shape: bf16[8,128], index: 1, kind: input, shape index: {}, may-alias: {1,8}]
  %s2 = inlined_call_operand.vmem [shape: bf16[256,256], index: 2, kind: input, shape index: {}]
  %s3 = inlined_call_operand.vmem [shape: bf16[128,128], index: 3, kind: input, shape index: {}]
  %s4 = inlined_call_operand.vmem [shape: bf16[128,128], index: 4, kind: input, shape index: {}]
  %s5 = inlined_call_operand.vmem [shape: f32[1,256], index: 5, kind: input, shape index: {}]
  %s6 = inlined_call_operand.vmem [shape: f32[1,128], index: 6, kind: input, shape index: {}]
  %s7 = inlined_call_operand.vmem [shape: f32[1,128], index: 7, kind: input, shape index: {}]
  %s8 = inlined_call_operand.vmem [shape: bf16[8,128], index: 8, kind: output, shape index: {}, may-alias: {1,8}]
  %s9 = sld [smem:[#allocation0]]
  $region42: #{triplet_vgfm_forward.17} parent=0
    _
  %s11 = ssub.s32 1, %s9
  %s12 = scalar_select 0, %s11, %s9
  // Predicated region
  $region2: #{triplet_vgfm_forward.17} parent=0 // pred_check
    _
  $region3: #{triplet_vgfm_forward.17} parent=0 // pred_check_branch
    %14 = sbr.rel (0) target = $region5
  $region4: #{triplet_vgfm_forward.17} parent=0 // pred_region
    _
  $region5: #{triplet_vgfm_forward.17} parent=0 // pred_fallthru
    _
  // Predicated region
  $region6: #{triplet_vgfm_forward.17} parent=0 // pred_check
    _
  $region7: #{triplet_vgfm_forward.17} parent=0 // pred_check_branch
    %16 = sbr.rel (0) target = $region9
  $region8: #{triplet_vgfm_forward.17} parent=0 // pred_region
    _
  $region9: #{triplet_vgfm_forward.17} parent=0 // pred_fallthru
    _
  // Predicated region
  $region10: #{triplet_vgfm_forward.17} parent=0 // pred_check
    _
  $region11: #{triplet_vgfm_forward.17} parent=0 // pred_check_branch
    %18 = sbr.rel (0) target = $region13
  $region12: #{triplet_vgfm_forward.17} parent=0 // pred_region
    _
  $region13: #{triplet_vgfm_forward.17} parent=0 // pred_fallthru
    _
  // Predicated region
  $region14: #{triplet_vgfm_forward.17} parent=0 // pred_check
    _
  $region15: #{triplet_vgfm_forward.17} parent=0 // pred_check_branch
    %20 = sbr.rel (0) target = $region17
  $region16: #{triplet_vgfm_forward.17} parent=0 // pred_region
    _
  $region17: #{triplet_vgfm_forward.17} parent=0 // pred_fallthru
    _
  // Predicated region
  $region18: #{triplet_vgfm_forward.17} parent=0 // pred_check
    _
  $region19: #{triplet_vgfm_forward.17} parent=0 // pred_check_branch
    %22 = sbr.rel (0) target = $region21
  $region20: #{triplet_vgfm_forward.17} parent=0 // pred_region
    _
  $region21: #{triplet_vgfm_forward.17} parent=0 // pred_fallthru
    _
  // Predicated region
  $region22: #{triplet_vgfm_forward.17} parent=0 // pred_check
    _
  $region23: #{triplet_vgfm_forward.17} parent=0 // pred_check_branch
    %24 = sbr.rel (0) target = $region25
  $region24: #{triplet_vgfm_forward.17} parent=0 // pred_region
    _
  $region25: #{triplet_vgfm_forward.17} parent=0 // pred_fallthru
    _
  // Predicated region
  $region26: #{triplet_vgfm_forward.17} parent=0 // pred_check
    _
  $region27: #{triplet_vgfm_forward.17} parent=0 // pred_check_branch
    %26 = sbr.rel (0) target = $region29
  $region28: #{triplet_vgfm_forward.17} parent=0 // pred_region
    _
  $region29: #{triplet_vgfm_forward.17} parent=0 // pred_fallthru
    _
  // Predicated region
  $region30: #{triplet_vgfm_forward.17} parent=0 // pred_check
    _
  $region31: #{triplet_vgfm_forward.17} parent=0 // pred_check_branch
    %28 = sbr.rel (0) target = $region33
  $region32: #{triplet_vgfm_forward.17} parent=0 // pred_region
    _
  $region33: #{triplet_vgfm_forward.17} parent=0 // pred_fallthru
    _
  %v30 = vld [vmem:[%s0] sm:$0xf]
  %v31 = vld [vmem:[%s1] sm:$0xf]
  %v32 = vld [vmem:[%s2] sm:$0xff]
  %v33 = vld [vmem:[%s2 + $0x8] sm:$0xff]
  %v34 = vld [vmem:[%s2 + $0x10] sm:$0xff]
  %v35 = vld [vmem:[%s2 + $0x18] sm:$0xff]
  %v36 = vld [vmem:[%s2 + $0x20] sm:$0xff]
  %v37 = vld [vmem:[%s2 + $0x28] sm:$0xff]
  %v38 = vld [vmem:[%s2 + $0x30] sm:$0xff]
  %v39 = vld [vmem:[%s2 + $0x38] sm:$0xff]
  %v40 = vld [vmem:[%s2 + $0x40] sm:$0xff]
  %v41 = vld [vmem:[%s2 + $0x48] sm:$0xff]
  %v42 = vld [vmem:[%s2 + $0x50] sm:$0xff]
  %v43 = vld [vmem:[%s2 + $0x58] sm:$0xff]
  %v44 = vld [vmem:[%s2 + $0x60] sm:$0xff]
  %v45 = vld [vmem:[%s2 + $0x68] sm:$0xff]
  %v46 = vld [vmem:[%s2 + $0x70] sm:$0xff]
  %v47 = vld [vmem:[%s2 + $0x78] sm:$0xff]
  %v48 = vld [vmem:[%s2 + $0x80] sm:$0xff]
  %v49 = vld [vmem:[%s2 + $0x88] sm:$0xff]
  %v50 = vld [vmem:[%s2 + $0x90] sm:$0xff]
  %v51 = vld [vmem:[%s2 + $0x98] sm:$0xff]
  %v52 = vld [vmem:[%s2 + $0xa0] sm:$0xff]
  %v53 = vld [vmem:[%s2 + $0xa8] sm:$0xff]
  %v54 = vld [vmem:[%s2 + $0xb0] sm:$0xff]
  %v55 = vld [vmem:[%s2 + $0xb8] sm:$0xff]
  %v56 = vld [vmem:[%s2 + $0xc0] sm:$0xff]
  %v57 = vld [vmem:[%s2 + $0xc8] sm:$0xff]
  %v58 = vld [vmem:[%s2 + $0xd0] sm:$0xff]
  %v59 = vld [vmem:[%s2 + $0xd8] sm:$0xff]
  %v60 = vld [vmem:[%s2 + $0xe0] sm:$0xff]
  %v61 = vld [vmem:[%s2 + $0xe8] sm:$0xff]
  %v62 = vld [vmem:[%s2 + $0xf0] sm:$0xff]
  %v63 = vld [vmem:[%s2 + $0xf8] sm:$0xff]
  %v64 = vld [vmem:[%s3] sm:$0xf]
  %v65 = vld [vmem:[%s3 + $0x4] sm:$0xf]
  %v66 = vld [vmem:[%s3 + $0x8] sm:$0xf]
  %v67 = vld [vmem:[%s3 + $0xc] sm:$0xf]
  %v68 = vld [vmem:[%s3 + $0x10] sm:$0xf]
  %v69 = vld [vmem:[%s3 + $0x14] sm:$0xf]
  %v70 = vld [vmem:[%s3 + $0x18] sm:$0xf]
  %v71 = vld [vmem:[%s3 + $0x1c] sm:$0xf]
  %v72 = vld [vmem:[%s3 + $0x20] sm:$0xf]
  %v73 = vld [vmem:[%s3 + $0x24] sm:$0xf]
  %v74 = vld [vmem:[%s3 + $0x28] sm:$0xf]
  %v75 = vld [vmem:[%s3 + $0x2c] sm:$0xf]
  %v76 = vld [vmem:[%s3 + $0x30] sm:$0xf]
  %v77 = vld [vmem:[%s3 + $0x34] sm:$0xf]
  %v78 = vld [vmem:[%s3 + $0x38] sm:$0xf]
  %v79 = vld [vmem:[%s3 + $0x3c] sm:$0xf]
  %v80 = vld [vmem:[%s4] sm:$0xf]
  %v81 = vld [vmem:[%s4 + $0x4] sm:$0xf]
  %v82 = vld [vmem:[%s4 + $0x8] sm:$0xf]
  %v83 = vld [vmem:[%s4 + $0xc] sm:$0xf]
  %v84 = vld [vmem:[%s4 + $0x10] sm:$0xf]
  %v85 = vld [vmem:[%s4 + $0x14] sm:$0xf]
  %v86 = vld [vmem:[%s4 + $0x18] sm:$0xf]
  %v87 = vld [vmem:[%s4 + $0x1c] sm:$0xf]
  %v88 = vld [vmem:[%s4 + $0x20] sm:$0xf]
  %v89 = vld [vmem:[%s4 + $0x24] sm:$0xf]
  %v90 = vld [vmem:[%s4 + $0x28] sm:$0xf]
  %v91 = vld [vmem:[%s4 + $0x2c] sm:$0xf]
  %v92 = vld [vmem:[%s4 + $0x30] sm:$0xf]
  %v93 = vld [vmem:[%s4 + $0x34] sm:$0xf]
  %v94 = vld [vmem:[%s4 + $0x38] sm:$0xf]
  %v95 = vld [vmem:[%s4 + $0x3c] sm:$0xf]
  %v96 = vld [vmem:[%s5] sm:$0x3]
  %v97 = vld [vmem:[%s6] sm:$0x1]
  %v98 = vld [vmem:[%s7] sm:$0x1]
  %v100 = vlaneseq
  %v101 = vshrl.u32 %v100, 7
  %v102 = vsub.s32 0, %v101
  %v103 = vrot.slane %v96, %v102
  %v104 = vlaneseq
  %v105 = vshrl.u32 %v104, 7
  %v106 = vsub.s32 1, %v105
  %v107 = vrot.slane %v96, %v106
  %v142 = vunpack.c.l.b16 %v32
  %v143 = vunpack.c.h.b16 %v32
  %v144 = vunpack.c.l.b16 %v33
  %v145 = vunpack.c.h.b16 %v33
  %v146 = vunpack.c.l.b16 %v34
  %v147 = vunpack.c.h.b16 %v34
  %v148 = vunpack.c.l.b16 %v35
  %v149 = vunpack.c.h.b16 %v35
  %v150 = vunpack.c.l.b16 %v36
  %v151 = vunpack.c.h.b16 %v36
  %v152 = vunpack.c.l.b16 %v37
  %v153 = vunpack.c.h.b16 %v37
  %v154 = vunpack.c.l.b16 %v38
  %v155 = vunpack.c.h.b16 %v38
  %v156 = vunpack.c.l.b16 %v39
  %v157 = vunpack.c.h.b16 %v39
  %v158 = vunpack.c.l.b16 %v40
  %v159 = vunpack.c.h.b16 %v40
  %v160 = vunpack.c.l.b16 %v41
  %v161 = vunpack.c.h.b16 %v41
  %v162 = vunpack.c.l.b16 %v42
  %v163 = vunpack.c.h.b16 %v42
  %v164 = vunpack.c.l.b16 %v43
  %v165 = vunpack.c.h.b16 %v43
  %v166 = vunpack.c.l.b16 %v44
  %v167 = vunpack.c.h.b16 %v44
  %v168 = vunpack.c.l.b16 %v45
  %v169 = vunpack.c.h.b16 %v45
  %v170 = vunpack.c.l.b16 %v46
  %v171 = vunpack.c.h.b16 %v46
  %v172 = vunpack.c.l.b16 %v47
  %v173 = vunpack.c.h.b16 %v47
  %v174 = vunpack.c.l.b16 %v48
  %v175 = vunpack.c.h.b16 %v48
  %v176 = vunpack.c.l.b16 %v49
  %v177 = vunpack.c.h.b16 %v49
  %v178 = vunpack.c.l.b16 %v50
  %v179 = vunpack.c.h.b16 %v50
  %v180 = vunpack.c.l.b16 %v51
  %v181 = vunpack.c.h.b16 %v51
  %v182 = vunpack.c.l.b16 %v52
  %v183 = vunpack.c.h.b16 %v52
  %v184 = vunpack.c.l.b16 %v53
  %v185 = vunpack.c.h.b16 %v53
  %v186 = vunpack.c.l.b16 %v54
  %v187 = vunpack.c.h.b16 %v54
  %v188 = vunpack.c.l.b16 %v55
  %v189 = vunpack.c.h.b16 %v55
  %v190 = vunpack.c.l.b16 %v56
  %v191 = vunpack.c.h.b16 %v56
  %v192 = vunpack.c.l.b16 %v57
  %v193 = vunpack.c.h.b16 %v57
  %v194 = vunpack.c.l.b16 %v58
  %v195 = vunpack.c.h.b16 %v58
  %v196 = vunpack.c.l.b16 %v59
  %v197 = vunpack.c.h.b16 %v59
  %v198 = vunpack.c.l.b16 %v60
  %v199 = vunpack.c.h.b16 %v60
  %v200 = vunpack.c.l.b16 %v61
  %v201 = vunpack.c.h.b16 %v61
  %v202 = vunpack.c.l.b16 %v62
  %v203 = vunpack.c.h.b16 %v62
  %v204 = vunpack.c.l.b16 %v63
  %v205 = vunpack.c.h.b16 %v63
  %v206 = vpack.c.b16 %v144, %v142
  %v207 = vpack.c.b16 %v145, %v143
  %v208 = vpack.c.b16 %v148, %v146
  %v209 = vpack.c.b16 %v149, %v147
  %v210 = vpack.c.b16 %v152, %v150
  %v211 = vpack.c.b16 %v153, %v151
  %v212 = vpack.c.b16 %v156, %v154
  %v213 = vpack.c.b16 %v157, %v155
  %v214 = vpack.c.b16 %v160, %v158
  %v215 = vpack.c.b16 %v161, %v159
  %v216 = vpack.c.b16 %v164, %v162
  %v217 = vpack.c.b16 %v165, %v163
  %v218 = vpack.c.b16 %v168, %v166
  %v219 = vpack.c.b16 %v169, %v167
  %v220 = vpack.c.b16 %v172, %v170
  %v221 = vpack.c.b16 %v173, %v171
  %v222 = vpack.c.b16 %v176, %v174
  %v223 = vpack.c.b16 %v177, %v175
  %v224 = vpack.c.b16 %v180, %v178
  %v225 = vpack.c.b16 %v181, %v179
  %v226 = vpack.c.b16 %v184, %v182
  %v227 = vpack.c.b16 %v185, %v183
  %v228 = vpack.c.b16 %v188, %v186
  %v229 = vpack.c.b16 %v189, %v187
  %v230 = vpack.c.b16 %v192, %v190
  %v231 = vpack.c.b16 %v193, %v191
  %v232 = vpack.c.b16 %v196, %v194
  %v233 = vpack.c.b16 %v197, %v195
  %v234 = vpack.c.b16 %v200, %v198
  %v235 = vpack.c.b16 %v201, %v199
  %v236 = vpack.c.b16 %v204, %v202
  %v237 = vpack.c.b16 %v205, %v203
  %270 = vmatprep.subr.bf16.mxu0 %v207
  %271 = vmatpush1.bf16.msra.mxu0 %v206
  %272 = vmatprep.subr.bf16.mxu0 %v209
  %273 = vmatpush1.bf16.msra.mxu0 %v208
  %274 = vmatprep.subr.bf16.mxu0 %v211
  %275 = vmatpush1.bf16.msra.mxu0 %v210
  %276 = vmatprep.subr.bf16.mxu0 %v213
  %277 = vmatpush1.bf16.msra.mxu0 %v212
  %278 = vmatprep.subr.bf16.mxu0 %v215
  %279 = vmatpush1.bf16.msra.mxu0 %v214
  %280 = vmatprep.subr.bf16.mxu0 %v217
  %281 = vmatpush1.bf16.msra.mxu0 %v216
  %282 = vmatprep.subr.bf16.mxu0 %v219
  %283 = vmatpush1.bf16.msra.mxu0 %v218
  %284 = vmatprep.subr.bf16.mxu0 %v221
  %285 = vmatpush1.bf16.msra.mxu0 %v220
  %286 = vmatprep.subr.bf16.mxu0 %v223
  %287 = vmatpush1.bf16.msra.mxu0 %v222
  %288 = vmatprep.subr.bf16.mxu0 %v225
  %289 = vmatpush1.bf16.msra.mxu0 %v224
  %290 = vmatprep.subr.bf16.mxu0 %v227
  %291 = vmatpush1.bf16.msra.mxu0 %v226
  %292 = vmatprep.subr.bf16.mxu0 %v229
  %293 = vmatpush1.bf16.msra.mxu0 %v228
  %294 = vmatprep.subr.bf16.mxu0 %v231
  %295 = vmatpush1.bf16.msra.mxu0 %v230
  %296 = vmatprep.subr.bf16.mxu0 %v233
  %297 = vmatpush1.bf16.msra.mxu0 %v232
  %298 = vmatprep.subr.bf16.mxu0 %v235
  %299 = vmatpush1.bf16.msra.mxu0 %v234
  %300 = vmatprep.subr.bf16.mxu0 %v237
  %301 = vmatpush1.bf16.msra.mxu0 %v236
  %302 = vmatprep.mubr.bf16.mxu0 %v31
  %303 = vmatmul.mubr.bf16.gmra.mrb[0].mxu0 %v30
  %v304 = vpop.f32.mrb[0].mxu0
  %v305 = vadd.f32 %v103, %v304
  %v306 = vpop.f32.mrb[0].mxu0
  %v307 = vadd.f32 %v107, %v306
  %v308 = vpop.f32.mrb[0].mxu0
  %v309 = vpop.f32.mrb[0].mxu0
  %310 = vdwg.mxu0
  %v312 = vlaneseq
  %v313 = vshrl.u32 %v312, 7
  %v314 = vsub.s32 0, %v313
  %v315 = vrot.slane %v97, %v314
  %v333 = vunpack.c.l.b16 %v64
  %v334 = vunpack.c.l.b16 %v65
  %v335 = vunpack.c.l.b16 %v66
  %v336 = vunpack.c.l.b16 %v67
  %v337 = vunpack.c.l.b16 %v68
  %v338 = vunpack.c.l.b16 %v69
  %v339 = vunpack.c.l.b16 %v70
  %v340 = vunpack.c.l.b16 %v71
  %v341 = vunpack.c.l.b16 %v72
  %v342 = vunpack.c.l.b16 %v73
  %v343 = vunpack.c.l.b16 %v74
  %v344 = vunpack.c.l.b16 %v75
  %v345 = vunpack.c.l.b16 %v76
  %v346 = vunpack.c.l.b16 %v77
  %v347 = vunpack.c.l.b16 %v78
  %v348 = vunpack.c.l.b16 %v79
  %v349 = vpack.c.b16 %v334, %v333
  %v350 = vpack.c.b16 %v336, %v335
  %v351 = vpack.c.b16 %v338, %v337
  %v352 = vpack.c.b16 %v340, %v339
  %v353 = vpack.c.b16 %v342, %v341
  %v354 = vpack.c.b16 %v344, %v343
  %v355 = vpack.c.b16 %v346, %v345
  %v356 = vpack.c.b16 %v348, %v347
  %365 = vmatprep.subr.bf16.mxu0 0
  %366 = vmatpush1.bf16.msra.mxu0 %v349
  %367 = vmatprep.subr.bf16.mxu0 0
  %368 = vmatpush1.bf16.msra.mxu0 %v350
  %369 = vmatprep.subr.bf16.mxu0 0
  %370 = vmatpush1.bf16.msra.mxu0 %v351
  %371 = vmatprep.subr.bf16.mxu0 0
  %372 = vmatpush1.bf16.msra.mxu0 %v352
  %373 = vmatprep.subr.bf16.mxu0 0
  %374 = vmatpush1.bf16.msra.mxu0 %v353
  %375 = vmatprep.subr.bf16.mxu0 0
  %376 = vmatpush1.bf16.msra.mxu0 %v354
  %377 = vmatprep.subr.bf16.mxu0 0
  %378 = vmatpush1.bf16.msra.mxu0 %v355
  %379 = vmatprep.subr.bf16.mxu0 0
  %380 = vmatpush1.bf16.msra.mxu0 %v356
  %381 = vmatprep.subr.bf16.mxu0 0
  %382 = vmatpush1.bf16.msra.mxu0 0
  %383 = vmatprep.subr.bf16.mxu0 0
  %384 = vmatpush1.bf16.msra.mxu0 0
  %385 = vmatprep.subr.bf16.mxu0 0
  %386 = vmatpush1.bf16.msra.mxu0 0
  %387 = vmatprep.subr.bf16.mxu0 0
  %388 = vmatpush1.bf16.msra.mxu0 0
  %389 = vmatprep.subr.bf16.mxu0 0
  %390 = vmatpush1.bf16.msra.mxu0 0
  %391 = vmatprep.subr.bf16.mxu0 0
  %392 = vmatpush1.bf16.msra.mxu0 0
  %393 = vmatprep.subr.bf16.mxu0 0
  %394 = vmatpush1.bf16.msra.mxu0 0
  %395 = vmatprep.subr.bf16.mxu0 0
  %396 = vmatpush1.bf16.msra.mxu0 0
  %397 = vmatprep.mubr.bf16.mxu0 0
  %398 = vmatmul.mubr.bf16.gmra.mrb[0].mxu0 %v30
  %v399 = vpop.f32.mrb[0].mxu0
  %v400 = vadd.f32 %v315, %v399
  %v401 = vpop.f32.mrb[0].mxu0
  %v402 = vpop.f32.mrb[0].mxu0
  %v403 = vpop.f32.mrb[0].mxu0
  %404 = vdwg.mxu0
  %v406 = vlaneseq
  %v407 = vshrl.u32 %v406, 7
  %v408 = vsub.s32 0, %v407
  %v409 = vrot.slane %v98, %v408
  %v427 = vunpack.c.l.b16 %v80
  %v428 = vunpack.c.l.b16 %v81
  %v429 = vunpack.c.l.b16 %v82
  %v430 = vunpack.c.l.b16 %v83
  %v431 = vunpack.c.l.b16 %v84
  %v432 = vunpack.c.l.b16 %v85
  %v433 = vunpack.c.l.b16 %v86
  %v434 = vunpack.c.l.b16 %v87
  %v435 = vunpack.c.l.b16 %v88
  %v436 = vunpack.c.l.b16 %v89
  %v437 = vunpack.c.l.b16 %v90
  %v438 = vunpack.c.l.b16 %v91
  %v439 = vunpack.c.l.b16 %v92
  %v440 = vunpack.c.l.b16 %v93
  %v441 = vunpack.c.l.b16 %v94
  %v442 = vunpack.c.l.b16 %v95
  %v443 = vpack.c.b16 %v428, %v427
  %v444 = vpack.c.b16 %v430, %v429
  %v445 = vpack.c.b16 %v432, %v431
  %v446 = vpack.c.b16 %v434, %v433
  %v447 = vpack.c.b16 %v436, %v435
  %v448 = vpack.c.b16 %v438, %v437
  %v449 = vpack.c.b16 %v440, %v439
  %v450 = vpack.c.b16 %v442, %v441
  %459 = vmatprep.subr.bf16.mxu0 0
  %460 = vmatpush1.bf16.msra.mxu0 %v443
  %461 = vmatprep.subr.bf16.mxu0 0
  %462 = vmatpush1.bf16.msra.mxu0 %v444
  %463 = vmatprep.subr.bf16.mxu0 0
  %464 = vmatpush1.bf16.msra.mxu0 %v445
  %465 = vmatprep.subr.bf16.mxu0 0
  %466 = vmatpush1.bf16.msra.mxu0 %v446
  %467 = vmatprep.subr.bf16.mxu0 0
  %468 = vmatpush1.bf16.msra.mxu0 %v447
  %469 = vmatprep.subr.bf16.mxu0 0
  %470 = vmatpush1.bf16.msra.mxu0 %v448
  %471 = vmatprep.subr.bf16.mxu0 0
  %472 = vmatpush1.bf16.msra.mxu0 %v449
  %473 = vmatprep.subr.bf16.mxu0 0
  %474 = vmatpush1.bf16.msra.mxu0 %v450
  %475 = vmatprep.subr.bf16.mxu0 0
  %476 = vmatpush1.bf16.msra.mxu0 0
  %477 = vmatprep.subr.bf16.mxu0 0
  %478 = vmatpush1.bf16.msra.mxu0 0
  %479 = vmatprep.subr.bf16.mxu0 0
  %480 = vmatpush1.bf16.msra.mxu0 0
  %481 = vmatprep.subr.bf16.mxu0 0
  %482 = vmatpush1.bf16.msra.mxu0 0
  %483 = vmatprep.subr.bf16.mxu0 0
  %484 = vmatpush1.bf16.msra.mxu0 0
  %485 = vmatprep.subr.bf16.mxu0 0
  %486 = vmatpush1.bf16.msra.mxu0 0
  %487 = vmatprep.subr.bf16.mxu0 0
  %488 = vmatpush1.bf16.msra.mxu0 0
  %489 = vmatprep.subr.bf16.mxu0 0
  %490 = vmatpush1.bf16.msra.mxu0 0
  %491 = vmatprep.mubr.bf16.mxu0 0
  %492 = vmatmul.mubr.bf16.gmra.mrb[0].mxu0 %v31
  %v493 = vpop.f32.mrb[0].mxu0
  %v494 = vadd.f32 %v409, %v493
  %v495 = vpop.f32.mrb[0].mxu0
  %v496 = vpop.f32.mrb[0].mxu0
  %v497 = vpop.f32.mrb[0].mxu0
  %498 = vdwg.mxu0
  %v499 = vxor.u32 %v305, 2147483648
  %v500 = vmul.f32 %v499, 1.442695
  %v501 = vpow.pop %v500
  %v502 = vadd.f32 %v501, 1.0
  %v503 = vrcp.pop %v502
  %v504 = vmul.f32 1.0, %v503
  %v505 = vxor.u32 %v307, 2147483648
  %v506 = vmul.f32 %v505, 1.442695
  %v507 = vpow.pop %v506
  %v508 = vadd.f32 %v507, 1.0
  %v509 = vrcp.pop %v508
  %v510 = vmul.f32 1.0, %v509
  %v511 = vmul.f32 %v504, %v494
  %v512 = vadd.f32 %v400, %v511
  %v513 = vtanh.pop %v512
  %v514 = vsub.f32 1.0, %v510
  %v515 = vmul.f32 %v514, %v513
  %v516 = vunpack.c.l.bf16 %v31
  %v517 = vmul.f32 %v510, %v516
  %v518 = vadd.f32 %v515, %v517
  %v519 = vpack.c.bf16 %v518, %v518
  %520 = vst [vmem:[%s8] sm:$0xf] %v519
  // Predicated region
  $region34: #{triplet_vgfm_forward.17} parent=0 // pred_check
    _
  $region35: #{triplet_vgfm_forward.17} parent=0 // pred_check_branch
    %522 = sbr.rel (0) target = $region37
  $region36: #{triplet_vgfm_forward.17} parent=0 // pred_region
    _
  $region37: #{triplet_vgfm_forward.17} parent=0 // pred_fallthru
    _
  // Predicated region
  $region38: #{triplet_vgfm_forward.17} parent=0 // pred_check
    _
  $region39: #{triplet_vgfm_forward.17} parent=0 // pred_check_branch
    %524 = sbr.rel (0) target = $region41
  $region40: #{triplet_vgfm_forward.17} parent=0 // pred_region
    _
  $region41: #{triplet_vgfm_forward.17} parent=0 // pred_fallthru
    _

</llo_original>
